<compile_context>
chip_gen: v6e
topology: v6e:2x2x1
jax: 0.10.0
libtpu: 0.0.40
codegen_flags: <defaults>
</compile_context>

<pallas_src>
import math
import functools

import jax
import jax.numpy as jnp
from jax.experimental import pallas as pl
from jax.experimental.pallas import tpu as pltpu


# ----------------------------------------------------------------------------
# small in-kernel helpers (pure jnp, traced inside the kernels)
# ----------------------------------------------------------------------------

def _layer_norm(y, g, b, eps):
    mean = jnp.mean(y, axis=-1, keepdims=True)
    var = jnp.mean((y - mean) ** 2, axis=-1, keepdims=True)
    return (y - mean) * jax.lax.rsqrt(var + eps) * g + b


def _gelu_exact(y):
    # matches PyTorch F.gelu default (erf form)
    return 0.5 * y * (1.0 + jax.lax.erf(y * (1.0 / math.sqrt(2.0))))


def _silu(y):
    return y * jax.nn.sigmoid(y)


# ----------------------------------------------------------------------------
# Kernel 1: prologue  (time-embedding MLP + positional / time add), grid=(1,)
# ----------------------------------------------------------------------------

def _prologue_kernel(te_ref, tw1_ref, tb1_ref, tw2_ref, tb2_ref,
                     xe_ref, pos_ref, o_ref, *, B, S, D):
    te = te_ref[...]                                           # (B, D) f32
    h = jnp.dot(te.astype(jnp.bfloat16), tw1_ref[...],
                preferred_element_type=jnp.float32) + tb1_ref[...]
    h = _silu(h)
    time_emb = jnp.dot(h.astype(jnp.bfloat16), tw2_ref[...],
                       preferred_element_type=jnp.float32) + tb2_ref[...]   # (B, D)
    x = xe_ref[...] + pos_ref[...] + time_emb[:, None, :]      # (B, S, D) f32
    # dropout -> identity (eval mode)
    o_ref[...] = x.reshape(B * S, D)


def run_prologue(te, tw1, tb1, tw2, tb2, x_embeds, pos):
    B, S, D = x_embeds.shape
    kernel = functools.partial(_prologue_kernel, B=B, S=S, D=D)
    return pl.pallas_call(
        kernel,
        out_shape=jax.ShapeDtypeStruct((B * S, D), jnp.float32),
        grid=(1,),
        in_specs=[
            pl.BlockSpec(te.shape, lambda i: (0, 0)),
            pl.BlockSpec(tw1.shape, lambda i: (0, 0)),
            pl.BlockSpec(tb1.shape, lambda i: (0, 0)),
            pl.BlockSpec(tw2.shape, lambda i: (0, 0)),
            pl.BlockSpec(tb2.shape, lambda i: (0, 0)),
            pl.BlockSpec((B, S, D), lambda i: (0, 0, 0)),
            pl.BlockSpec((1, S, D), lambda i: (0, 0, 0)),
        ],
        out_specs=pl.BlockSpec((B * S, D), lambda i: (0, 0)),
        compiler_params=pltpu.CompilerParams(dimension_semantics=("arbitrary",)),
    )(te, tw1, tb1, tw2, tb2, x_embeds, pos)


# ----------------------------------------------------------------------------
# Kernel 2: one whole transformer-encoder path per grid step, grid=(num_paths,)
# ----------------------------------------------------------------------------

_PATH_WEIGHT_NAMES = ["wqkv", "bqkv", "wo", "bo", "ln1w", "ln1b",
                      "wff1", "bff1", "wff2", "bff2", "ln2w", "ln2b"]


def _paths_kernel(x_ref, wqkv_ref, bqkv_ref, wo_ref, bo_ref, ln1w_ref, ln1b_ref,
                  wff1_ref, bff1_ref, wff2_ref, bff2_ref, ln2w_ref, ln2b_ref,
                  o_ref, *, num_layers, nhead, B, S, D, eps):
    H = nhead
    Dh = D // H
    scale = 1.0 / math.sqrt(Dh)

    h = x_ref[...]                                             # (B*S, D) f32
    for l in range(num_layers):
        # ---- fused QKV projection (bf16 MXU, f32 accumulate) ----
        qkv = jnp.dot(h.astype(jnp.bfloat16), wqkv_ref[0, l],
                      preferred_element_type=jnp.float32) + bqkv_ref[0, l]

        # ---- multi-head self-attention, fully in VMEM (f32 softmax) ----
        attn_rows = []
        for b in range(B):
            qkv_b = qkv[b * S:(b + 1) * S, :]                  # (S, 3D)
            head_outs = []
            for hh in range(H):
                q = qkv_b[:, hh * Dh:(hh + 1) * Dh]            # (S, Dh)
                k = qkv_b[:, D + hh * Dh:D + (hh + 1) * Dh]
                v = qkv_b[:, 2 * D + hh * Dh:2 * D + (hh + 1) * Dh]
                s = jnp.einsum("qd,kd->qk", q, k,
                               preferred_element_type=jnp.float32) * scale
                s = s - jnp.max(s, axis=-1, keepdims=True)
                e = jnp.exp(s)
                p = e / jnp.sum(e, axis=-1, keepdims=True)
                head_outs.append(jnp.dot(p, v, preferred_element_type=jnp.float32))
            attn_rows.append(jnp.concatenate(head_outs, axis=1))   # (S, D)
        attn = jnp.concatenate(attn_rows, axis=0)                  # (B*S, D)

        # ---- out-proj + residual + LayerNorm (post-norm) ----
        y = jnp.dot(attn.astype(jnp.bfloat16), wo_ref[0, l],
                    preferred_element_type=jnp.float32) + bo_ref[0, l]
        h = _layer_norm(y + h, ln1w_ref[0, l], ln1b_ref[0, l], eps)

        # ---- feed-forward (GELU) + residual + LayerNorm ----
        f = jnp.dot(h.astype(jnp.bfloat16), wff1_ref[0, l],
                    preferred_element_type=jnp.float32) + bff1_ref[0, l]
        f = _gelu_exact(f)
        f = jnp.dot(f.astype(jnp.bfloat16), wff2_ref[0, l],
                    preferred_element_type=jnp.float32) + bff2_ref[0, l]
        h = _layer_norm(f + h, ln2w_ref[0, l], ln2b_ref[0, l], eps)

    o_ref[0] = h                                               # (B*S, D) f32


def run_paths(x2d, params, *, num_layers, nhead, B, S, D, num_paths, eps=1e-5):
    BS = B * S
    w_args = [params[n] for n in _PATH_WEIGHT_NAMES]

    def w_spec(arr):
        nd = arr.ndim
        return pl.BlockSpec((1,) + arr.shape[1:],
                            lambda p, nd=nd: (p,) + (0,) * (nd - 1))

    in_specs = [pl.BlockSpec((BS, D), lambda p: (0, 0))] + [w_spec(a) for a in w_args]
    kernel = functools.partial(_paths_kernel, num_layers=num_layers, nhead=nhead,
                               B=B, S=S, D=D, eps=eps)
    return pl.pallas_call(
        kernel,
        out_shape=jax.ShapeDtypeStruct((num_paths, BS, D), jnp.float32),
        grid=(num_paths,),
        in_specs=in_specs,
        out_specs=pl.BlockSpec((1, BS, D), lambda p: (p, 0, 0)),
        compiler_params=pltpu.CompilerParams(dimension_semantics=("parallel",)),
    )(x2d, *w_args)


# ----------------------------------------------------------------------------
# Kernel 3: path features -> weighting MLP -> softmax -> weighted combine ->
#           output projection, single grid step over the whole stacked tensor
# ----------------------------------------------------------------------------

def _combine_kernel(st_ref, pw1_ref, pb1_ref, pw2_ref, pb2_ref, ow_ref, ob_ref,
                    o_ref, *, B, S, D, P):
    st = st_ref[...]                                           # (P, B*S, D) f32

    # per-path mean over seq -> concat along features (matches torch.cat dim=1)
    rows = []
    for b in range(B):
        per_path = [jnp.mean(st[p, b * S:(b + 1) * S, :], axis=0, keepdims=True)
                    for p in range(P)]
        rows.append(jnp.concatenate(per_path, axis=1))         # (1, P*D)
    combined = jnp.concatenate(rows, axis=0)                   # (B, P*D)

    # path-weighting net: Linear -> SiLU -> Linear -> softmax
    hw = jnp.dot(combined.astype(jnp.bfloat16), pw1_ref[...],
                 preferred_element_type=jnp.float32) + pb1_ref[...]
    hw = _silu(hw)
    logits = jnp.dot(hw.astype(jnp.bfloat16), pw2_ref[...],
                     preferred_element_type=jnp.float32) + pb2_ref[...]   # (B, P)
    logits = logits - jnp.max(logits, axis=-1, keepdims=True)
    es = jnp.exp(logits)
    wts = es / jnp.sum(es, axis=-1, keepdims=True)             # (B, P) f32

    # weighted sum over paths (per batch element), then output projection
    outs = []
    for b in range(B):
        acc = wts[b:b + 1, 0:1] * st[0, b * S:(b + 1) * S, :]
        for p in range(1, P):
            acc = acc + wts[b:b + 1, p:p + 1] * st[p, b * S:(b + 1) * S, :]
        outs.append(acc)                                       # (S, D)
    final = jnp.concatenate(outs, axis=0)                      # (B*S, D)

    o_ref[...] = jnp.dot(final.astype(jnp.bfloat16), ow_ref[...],
                         preferred_element_type=jnp.float32) + ob_ref[...]


def run_combine(stacked, pw_w1, pw_b1, pw_w2, pw_b2, out_w, out_b,
                *, B, S, D, num_paths):
    BS = B * S

    def fullspec(arr):
        nd = arr.ndim
        return pl.BlockSpec(arr.shape, lambda i, nd=nd: (0,) * nd)

    kernel = functools.partial(_combine_kernel, B=B, S=S, D=D, P=num_paths)
    args = (stacked, pw_w1, pw_b1, pw_w2, pw_b2, out_w, out_b)
    return pl.pallas_call(
        kernel,
        out_shape=jax.ShapeDtypeStruct((BS, D), jnp.float32),
        grid=(1,),
        in_specs=[fullspec(a) for a in args],
        out_specs=pl.BlockSpec((BS, D), lambda i: (0, 0)),
        compiler_params=pltpu.CompilerParams(dimension_semantics=("arbitrary",)),
    )(*args)


# ----------------------------------------------------------------------------
# Parameter construction (kernel-ready layout: matmul weights bf16, rest f32)
# ----------------------------------------------------------------------------

def create_params(key, d_model, nhead, num_layers, max_seq_len, num_paths):
    D = d_model
    keys = iter(jax.random.split(key, 64))

    def dense(k, fi, fo):
        kw, kb = jax.random.split(k)
        w = jax.random.normal(kw, (fi, fo), jnp.float32) * 0.02
        b = jax.random.normal(kb, (fo,), jnp.float32) * 0.02
        return w, b

    p = {}
    p["pos_emb"] = jax.random.normal(next(keys), (max_seq_len, D), jnp.float32) * 0.02

    tw1, tb1 = dense(next(keys), D, 4 * D)
    tw2, tb2 = dense(next(keys), 4 * D, D)
    p["time_w1"] = tw1.astype(jnp.bfloat16); p["time_b1"] = tb1.reshape(1, -1)
    p["time_w2"] = tw2.astype(jnp.bfloat16); p["time_b2"] = tb2.reshape(1, -1)

    coll = {n: [] for n in _PATH_WEIGHT_NAMES}
    for _ in range(num_paths):
        per = {n: [] for n in _PATH_WEIGHT_NAMES}
        for _ in range(num_layers):
            wqkv, bqkv = dense(next(keys), D, 3 * D)
            wo, bo = dense(next(keys), D, D)
            wff1, bff1 = dense(next(keys), D, 4 * D)
            wff2, bff2 = dense(next(keys), 4 * D, D)
            per["wqkv"].append(wqkv.astype(jnp.bfloat16))
            per["bqkv"].append(bqkv.reshape(1, -1))
            per["wo"].append(wo.astype(jnp.bfloat16))
            per["bo"].append(bo.reshape(1, -1))
            per["ln1w"].append(jnp.ones((1, D), jnp.float32))
            per["ln1b"].append(jnp.zeros((1, D), jnp.float32))
            per["wff1"].append(wff1.astype(jnp.bfloat16))
            per["bff1"].append(bff1.reshape(1, -1))
            per["wff2"].append(wff2.astype(jnp.bfloat16))
            per["bff2"].append(bff2.reshape(1, -1))
            per["ln2w"].append(jnp.ones((1, D), jnp.float32))
            per["ln2b"].append(jnp.zeros((1, D), jnp.float32))
        for n in _PATH_WEIGHT_NAMES:
            coll[n].append(jnp.stack(per[n], axis=0))
    for n in _PATH_WEIGHT_NAMES:
        p[n] = jnp.stack(coll[n], axis=0)          # (P, L, ...) stacked weights

    pw1, pb1 = dense(next(keys), D * num_paths, D)
    pw2, pb2 = dense(next(keys), D, num_paths)
    ow, ob = dense(next(keys), D, D)
    p["pw_w1"] = pw1.astype(jnp.bfloat16); p["pw_b1"] = pb1.reshape(1, -1)
    p["pw_w2"] = pw2.astype(jnp.bfloat16); p["pw_b2"] = pb2.reshape(1, -1)
    p["out_w"] = ow.astype(jnp.bfloat16);  p["out_b"] = ob.reshape(1, -1)
    return p


# ----------------------------------------------------------------------------
# Forward pass (matches QuantumInspiredDiffusionModel.forward, eval mode)
# ----------------------------------------------------------------------------

def forward(params, x_embeds, t, *, nhead, num_paths, num_layers):
    B, S, D = x_embeds.shape

    # sinusoidal time-step features (tiny, plain JAX elementwise math)
    half = D // 2
    emb_scale = math.log(10000.0) / (half - 1)
    freqs = jnp.exp(jnp.arange(half, dtype=jnp.float32) * -emb_scale)
    te = t.astype(jnp.float32)[:, None] * freqs[None, :]
    te = jnp.concatenate([jnp.sin(te), jnp.cos(te)], axis=-1)           # (B, D)

    pos = params["pos_emb"][:S].reshape(1, S, D)

    # kernel 1: time MLP + x = x_embeds + pos_emb + time_emb
    x2d = run_prologue(te, params["time_w1"], params["time_b1"],
                       params["time_w2"], params["time_b2"],
                       x_embeds.astype(jnp.float32), pos)               # (B*S, D)

    # kernel 2: all encoder layers of every path, paths on a parallel grid axis
    stacked = run_paths(x2d, params, num_layers=num_layers, nhead=nhead,
                        B=B, S=S, D=D, num_paths=num_paths)             # (P, B*S, D)

    # kernel 3: path weighting + weighted combine + output projection
    out2d = run_combine(stacked, params["pw_w1"], params["pw_b1"],
                        params["pw_w2"], params["pw_b2"],
                        params["out_w"], params["out_b"],
                        B=B, S=S, D=D, num_paths=num_paths)             # (B*S, D)
    return out2d.reshape(B, S, D)


# TODO(synk): token_embedding / add_noise_to_embeddings helpers (integer gather
# and beta-schedule buffers) are not part of forward(); left to plain JAX.


if __name__ == "__main__":
    d_model = 32
    nhead = 4
    num_layers = 2
    max_seq_len = 16
    num_diffusion_steps = 10
    num_paths = 2
    batch, seq = 2, 8

    key = jax.random.PRNGKey(0)
    kp, kx, kt = jax.random.split(key, 3)
    params = create_params(kp, d_model, nhead, num_layers, max_seq_len, num_paths)

    x_embeds = jax.random.normal(kx, (batch, seq, d_model), jnp.float32)
    t = jax.random.randint(kt, (batch,), 0, num_diffusion_steps)

    fwd = jax.jit(functools.partial(forward, nhead=nhead, num_paths=num_paths,
                                    num_layers=num_layers))
    out = fwd(params, x_embeds, t)
    jax.block_until_ready(out)

    assert out.shape == (batch, seq, d_model)
    assert bool(jnp.all(jnp.isfinite(out)))
    print("KERNEL_OK")
</pallas_src>

<mosaic_0001>
module attributes {stable_mosaic.version = 11 : i64} {
  func.func @_prologue_kernel(%arg0: i32, %arg1: memref<2x32xf32, #tpu.memory_space<vmem>>, %arg2: memref<32x128xbf16, #tpu.memory_space<vmem>>, %arg3: memref<1x128xf32, #tpu.memory_space<vmem>>, %arg4: memref<128x32xbf16, #tpu.memory_space<vmem>>, %arg5: memref<1x32xf32, #tpu.memory_space<vmem>>, %arg6: memref<2x8x32xf32, #tpu.memory_space<vmem>>, %arg7: memref<1x8x32xf32, #tpu.memory_space<vmem>>, %arg8: memref<16x32xf32, #tpu.memory_space<vmem>>) attributes {dimension_semantics = [#tpu.dimension_semantics<arbitrary>], iteration_bounds = array<i64: 1>, scalar_prefetch = 0 : i64, scratch_operands = 0 : i64, tpu.core_type = #tpu.core_type<tc>, window_params = [{pipeline_mode = #tpu.pipeline_mode<synchronous>, transform_indices = @transform_0, window_bounds = array<i64: 2, 32>}, {pipeline_mode = #tpu.pipeline_mode<synchronous>, transform_indices = @transform_1, window_bounds = array<i64: 32, 128>}, {pipeline_mode = #tpu.pipeline_mode<synchronous>, transform_indices = @transform_2, window_bounds = array<i64: 1, 128>}, {pipeline_mode = #tpu.pipeline_mode<synchronous>, transform_indices = @transform_3, window_bounds = array<i64: 128, 32>}, {pipeline_mode = #tpu.pipeline_mode<synchronous>, transform_indices = @transform_4, window_bounds = array<i64: 1, 32>}, {pipeline_mode = #tpu.pipeline_mode<synchronous>, transform_indices = @transform_5, window_bounds = array<i64: 2, 8, 32>}, {pipeline_mode = #tpu.pipeline_mode<synchronous>, transform_indices = @transform_6, window_bounds = array<i64: 1, 8, 32>}, {pipeline_mode = #tpu.pipeline_mode<synchronous>, transform_indices = @transform_7, window_bounds = array<i64: 16, 32>}]} {
    %c0 = arith.constant 0 : index
    %c0_0 = arith.constant 0 : index
    %0 = vector.load %arg1[%c0, %c0_0] : memref<2x32xf32, #tpu.memory_space<vmem>>, vector<2x32xf32>
    %1 = arith.truncf %0 : vector<2x32xf32> to vector<2x32xbf16>
    %c0_1 = arith.constant 0 : index
    %c0_2 = arith.constant 0 : index
    %2 = vector.load %arg2[%c0_1, %c0_2] : memref<32x128xbf16, #tpu.memory_space<vmem>>, vector<32x128xbf16>
    %cst = arith.constant dense<0.000000e+00> : vector<2x128xf32>
    %3 = tpu.matmul %1, %2, %cst {dimension_numbers = #tpu.dot_dimension_numbers<[1], [0], [0], [1], [0, 0, 1, 1], [], []>} : vector<2x32xbf16>, vector<32x128xbf16>, vector<2x128xf32> -> vector<2x128xf32>
    %c0_3 = arith.constant 0 : index
    %c0_4 = arith.constant 0 : index
    %4 = vector.load %arg3[%c0_3, %c0_4] : memref<1x128xf32, #tpu.memory_space<vmem>>, vector<1x128xf32>
    %5 = vector.broadcast %4 : vector<1x128xf32> to vector<2x128xf32>
    %6 = arith.addf %3, %5 : vector<2x128xf32>
    %7 = arith.negf %6 : vector<2x128xf32>
    %8 = math.exp %7 : vector<2x128xf32>
    %cst_5 = arith.constant 1.000000e+00 : f32
    %9 = vector.broadcast %cst_5 : f32 to vector<2x128xf32>
    %10 = arith.addf %9, %8 : vector<2x128xf32>
    %11 = arith.divf %9, %10 : vector<2x128xf32>
    %12 = arith.mulf %6, %11 : vector<2x128xf32>
    %13 = arith.truncf %12 : vector<2x128xf32> to vector<2x128xbf16>
    %c0_6 = arith.constant 0 : index
    %c0_7 = arith.constant 0 : index
    %14 = vector.load %arg4[%c0_6, %c0_7] : memref<128x32xbf16, #tpu.memory_space<vmem>>, vector<128x32xbf16>
    %cst_8 = arith.constant dense<0.000000e+00> : vector<2x32xf32>
    %15 = tpu.matmul %13, %14, %cst_8 {dimension_numbers = #tpu.dot_dimension_numbers<[1], [0], [0], [1], [0, 0, 1, 1], [], []>} : vector<2x128xbf16>, vector<128x32xbf16>, vector<2x32xf32> -> vector<2x32xf32>
    %c0_9 = arith.constant 0 : index
    %c0_10 = arith.constant 0 : index
    %16 = vector.load %arg5[%c0_9, %c0_10] : memref<1x32xf32, #tpu.memory_space<vmem>>, vector<1x32xf32>
    %17 = vector.broadcast %16 : vector<1x32xf32> to vector<2x32xf32>
    %18 = arith.addf %15, %17 : vector<2x32xf32>
    %c0_11 = arith.constant 0 : index
    %c0_12 = arith.constant 0 : index
    %c0_13 = arith.constant 0 : index
    %19 = vector.load %arg6[%c0_11, %c0_12, %c0_13] : memref<2x8x32xf32, #tpu.memory_space<vmem>>, vector<2x8x32xf32>
    %c0_14 = arith.constant 0 : index
    %c0_15 = arith.constant 0 : index
    %c0_16 = arith.constant 0 : index
    %20 = vector.load %arg7[%c0_14, %c0_15, %c0_16] : memref<1x8x32xf32, #tpu.memory_space<vmem>>, vector<1x8x32xf32>
    %21 = vector.broadcast %20 : vector<1x8x32xf32> to vector<2x8x32xf32>
    %22 = arith.addf %19, %21 : vector<2x8x32xf32>
    %23 = vector.shape_cast %18 : vector<2x32xf32> to vector<2x1x32xf32>
    %24 = vector.broadcast %23 : vector<2x1x32xf32> to vector<2x8x32xf32>
    %25 = arith.addf %22, %24 : vector<2x8x32xf32>
    %26 = vector.shape_cast %25 : vector<2x8x32xf32> to vector<16x32xf32>
    %c0_17 = arith.constant 0 : index
    %c0_18 = arith.constant 0 : index
    %27 = vector.load %arg8[%c0_17, %c0_18] : memref<16x32xf32, #tpu.memory_space<vmem>>, vector<16x32xf32>
    tpu.vector_store %arg8[%c0_17, %c0_18], %26 {strides = array<i32>} : memref<16x32xf32, #tpu.memory_space<vmem>>, vector<16x32xf32>,
    return
  }
  func.func @transform_0(%arg0: i32) -> (i32, i32) {
    %c0_i32 = arith.constant 0 : i32
    %c0_i32_0 = arith.constant 0 : i32
    %c0_i32_1 = arith.constant 0 : i32
    return %c0_i32, %c0_i32_0 : i32, i32
  }
  func.func @transform_1(%arg0: i32) -> (i32, i32) {
    %c0_i32 = arith.constant 0 : i32
    %c0_i32_0 = arith.constant 0 : i32
    %c0_i32_1 = arith.constant 0 : i32
    return %c0_i32, %c0_i32_0 : i32, i32
  }
  func.func @transform_2(%arg0: i32) -> (i32, i32) {
    %c0_i32 = arith.constant 0 : i32
    %c0_i32_0 = arith.constant 0 : i32
    %c0_i32_1 = arith.constant 0 : i32
    return %c0_i32, %c0_i32_0 : i32, i32
  }
  func.func @transform_3(%arg0: i32) -> (i32, i32) {
    %c0_i32 = arith.constant 0 : i32
    %c0_i32_0 = arith.constant 0 : i32
    %c0_i32_1 = arith.constant 0 : i32
    return %c0_i32, %c0_i32_0 : i32, i32
  }
  func.func @transform_4(%arg0: i32) -> (i32, i32) {
    %c0_i32 = arith.constant 0 : i32
    %c0_i32_0 = arith.constant 0 : i32
    %c0_i32_1 = arith.constant 0 : i32
    return %c0_i32, %c0_i32_0 : i32, i32
  }
  func.func @transform_5(%arg0: i32) -> (i32, i32, i32) {
    %c0_i32 = arith.constant 0 : i32
    %c0_i32_0 = arith.constant 0 : i32
    %c0_i32_1 = arith.constant 0 : i32
    %c0_i32_2 = arith.constant 0 : i32
    return %c0_i32, %c0_i32_0, %c0_i32_1 : i32, i32, i32
  }
  func.func @transform_6(%arg0: i32) -> (i32, i32, i32) {
    %c0_i32 = arith.constant 0 : i32
    %c0_i32_0 = arith.constant 0 : i32
    %c0_i32_1 = arith.constant 0 : i32
    %c0_i32_2 = arith.constant 0 : i32
    return %c0_i32, %c0_i32_0, %c0_i32_1 : i32, i32, i32
  }
  func.func @transform_7(%arg0: i32) -> (i32, i32) {
    %c0_i32 = arith.constant 0 : i32
    %c0_i32_0 = arith.constant 0 : i32
    %c0_i32_1 = arith.constant 0 : i32
    return %c0_i32, %c0_i32_0 : i32, i32
  }
}

module attributes {stable_mosaic.version = 11 : i64} {
  func.func @_combine_kernel(%arg0: i32, %arg1: memref<2x16x32xf32, #tpu.memory_space<vmem>>, %arg2: memref<64x32xbf16, #tpu.memory_space<vmem>>, %arg3: memref<1x32xf32, #tpu.memory_space<vmem>>, %arg4: memref<32x2xbf16, #tpu.memory_space<vmem>>, %arg5: memref<1x2xf32, #tpu.memory_space<vmem>>, %arg6: memref<32x32xbf16, #tpu.memory_space<vmem>>, %arg7: memref<1x32xf32, #tpu.memory_space<vmem>>, %arg8: memref<16x32xf32, #tpu.memory_space<vmem>>) attributes {dimension_semantics = [#tpu.dimension_semantics<arbitrary>], iteration_bounds = array<i64: 1>, scalar_prefetch = 0 : i64, scratch_operands = 0 : i64, tpu.core_type = #tpu.core_type<tc>, window_params = [{pipeline_mode = #tpu.pipeline_mode<synchronous>, transform_indices = @transform_0, window_bounds = array<i64: 2, 16, 32>}, {pipeline_mode = #tpu.pipeline_mode<synchronous>, transform_indices = @transform_1, window_bounds = array<i64: 64, 32>}, {pipeline_mode = #tpu.pipeline_mode<synchronous>, transform_indices = @transform_2, window_bounds = array<i64: 1, 32>}, {pipeline_mode = #tpu.pipeline_mode<synchronous>, transform_indices = @transform_3, window_bounds = array<i64: 32, 2>}, {pipeline_mode = #tpu.pipeline_mode<synchronous>, transform_indices = @transform_4, window_bounds = array<i64: 1, 2>}, {pipeline_mode = #tpu.pipeline_mode<synchronous>, transform_indices = @transform_5, window_bounds = array<i64: 32, 32>}, {pipeline_mode = #tpu.pipeline_mode<synchronous>, transform_indices = @transform_6, window_bounds = array<i64: 1, 32>}, {pipeline_mode = #tpu.pipeline_mode<synchronous>, transform_indices = @transform_7, window_bounds = array<i64: 16, 32>}]} {
    %c0 = arith.constant 0 : index
    %c0_0 = arith.constant 0 : index
    %c0_1 = arith.constant 0 : index
    %0 = vector.load %arg1[%c0, %c0_0, %c0_1] : memref<2x16x32xf32, #tpu.memory_space<vmem>>, vector<2x16x32xf32>
    %1 = vector.extract_strided_slice %0 {offsets = [0, 0, 0], sizes = [1, 8, 32], strides = [1, 1, 1]} : vector<2x16x32xf32> to vector<1x8x32xf32>
    %2 = vector.shape_cast %1 : vector<1x8x32xf32> to vector<8x32xf32>
    %cst = arith.constant dense<0.000000e+00> : vector<32xf32>
    %3 = vector.multi_reduction <add>, %2, %cst [0] : vector<8x32xf32> to vector<32xf32>
    %4 = vector.shape_cast %3 : vector<32xf32> to vector<1x32xf32>
    %cst_2 = arith.constant 8.000000e+00 : f32
    %5 = vector.broadcast %cst_2 : f32 to vector<1x32xf32>
    %6 = arith.divf %4, %5 : vector<1x32xf32>
    %7 = vector.extract_strided_slice %0 {offsets = [1, 0, 0], sizes = [1, 8, 32], strides = [1, 1, 1]} : vector<2x16x32xf32> to vector<1x8x32xf32>
    %8 = vector.shape_cast %7 : vector<1x8x32xf32> to vector<8x32xf32>
    %cst_3 = arith.constant dense<0.000000e+00> : vector<32xf32>
    %9 = vector.multi_reduction <add>, %8, %cst_3 [0] : vector<8x32xf32> to vector<32xf32>
    %10 = vector.shape_cast %9 : vector<32xf32> to vector<1x32xf32>
    %cst_4 = arith.constant 8.000000e+00 : f32
    %11 = vector.broadcast %cst_4 : f32 to vector<1x32xf32>
    %12 = arith.divf %10, %11 : vector<1x32xf32>
    %13 = tpu.concatenate %6, %12 in 1 : vector<1x32xf32>, vector<1x32xf32> -> vector<1x64xf32>
    %14 = vector.extract_strided_slice %0 {offsets = [0, 8, 0], sizes = [1, 8, 32], strides = [1, 1, 1]} : vector<2x16x32xf32> to vector<1x8x32xf32>
    %15 = vector.shape_cast %14 : vector<1x8x32xf32> to vector<8x32xf32>
    %cst_5 = arith.constant dense<0.000000e+00> : vector<32xf32>
    %16 = vector.multi_reduction <add>, %15, %cst_5 [0] : vector<8x32xf32> to vector<32xf32>
    %17 = vector.shape_cast %16 : vector<32xf32> to vector<1x32xf32>
    %cst_6 = arith.constant 8.000000e+00 : f32
    %18 = vector.broadcast %cst_6 : f32 to vector<1x32xf32>
    %19 = arith.divf %17, %18 : vector<1x32xf32>
    %20 = vector.extract_strided_slice %0 {offsets = [1, 8, 0], sizes = [1, 8, 32], strides = [1, 1, 1]} : vector<2x16x32xf32> to vector<1x8x32xf32>
    %21 = vector.shape_cast %20 : vector<1x8x32xf32> to vector<8x32xf32>
    %cst_7 = arith.constant dense<0.000000e+00> : vector<32xf32>
    %22 = vector.multi_reduction <add>, %21, %cst_7 [0] : vector<8x32xf32> to vector<32xf32>
    %23 = vector.shape_cast %22 : vector<32xf32> to vector<1x32xf32>
    %cst_8 = arith.constant 8.000000e+00 : f32
    %24 = vector.broadcast %cst_8 : f32 to vector<1x32xf32>
    %25 = arith.divf %23, %24 : vector<1x32xf32>
    %26 = tpu.concatenate %19, %25 in 1 : vector<1x32xf32>, vector<1x32xf32> -> vector<1x64xf32>
    %27 = tpu.concatenate %13, %26 in 0 : vector<1x64xf32>, vector<1x64xf32> -> vector<2x64xf32>
    %28 = arith.truncf %27 : vector<2x64xf32> to vector<2x64xbf16>
    %c0_9 = arith.constant 0 : index
    %c0_10 = arith.constant 0 : index
    %29 = vector.load %arg2[%c0_9, %c0_10] : memref<64x32xbf16, #tpu.memory_space<vmem>>, vector<64x32xbf16>
    %cst_11 = arith.constant dense<0.000000e+00> : vector<2x32xf32>
    %30 = tpu.matmul %28, %29, %cst_11 {dimension_numbers = #tpu.dot_dimension_numbers<[1], [0], [0], [1], [0, 0, 1, 1], [], []>} : vector<2x64xbf16>, vector<64x32xbf16>, vector<2x32xf32> -> vector<2x32xf32>
    %c0_12 = arith.constant 0 : index
    %c0_13 = arith.constant 0 : index
    %31 = vector.load %arg3[%c0_12, %c0_13] : memref<1x32xf32, #tpu.memory_space<vmem>>, vector<1x32xf32>
    %32 = vector.broadcast %31 : vector<1x32xf32> to vector<2x32xf32>
    %33 = arith.addf %30, %32 : vector<2x32xf32>
    %34 = arith.negf %33 : vector<2x32xf32>
    %35 = math.exp %34 : vector<2x32xf32>
    %cst_14 = arith.constant 1.000000e+00 : f32
    %36 = vector.broadcast %cst_14 : f32 to vector<2x32xf32>
    %37 = arith.addf %36, %35 : vector<2x32xf32>
    %38 = arith.divf %36, %37 : vector<2x32xf32>
    %39 = arith.mulf %33, %38 : vector<2x32xf32>
    %40 = arith.truncf %39 : vector<2x32xf32> to vector<2x32xbf16>
    %c0_15 = arith.constant 0 : index
    %c0_16 = arith.constant 0 : index
    %41 = vector.load %arg4[%c0_15, %c0_16] : memref<32x2xbf16, #tpu.memory_space<vmem>>, vector<32x2xbf16>
    %cst_17 = arith.constant dense<0.000000e+00> : vector<2x2xf32>
    %42 = tpu.matmul %40, %41, %cst_17 {dimension_numbers = #tpu.dot_dimension_numbers<[1], [0], [0], [1], [0, 0, 1, 1], [], []>} : vector<2x32xbf16>, vector<32x2xbf16>, vector<2x2xf32> -> vector<2x2xf32>
    %c0_18 = arith.constant 0 : index
    %c0_19 = arith.constant 0 : index
    %43 = vector.load %arg5[%c0_18, %c0_19] : memref<1x2xf32, #tpu.memory_space<vmem>>, vector<1x2xf32>
    %44 = vector.broadcast %43 : vector<1x2xf32> to vector<2x2xf32>
    %45 = arith.addf %42, %44 : vector<2x2xf32>
    %cst_20 = arith.constant dense<0xFF800000> : vector<2xf32>
    %46 = vector.multi_reduction <maximumf>, %45, %cst_20 [1] : vector<2x2xf32> to vector<2xf32>
    %47 = vector.shape_cast %46 : vector<2xf32> to vector<2x1xf32>
    %48 = vector.broadcast %47 : vector<2x1xf32> to vector<2x2xf32>
    %49 = arith.subf %45, %48 : vector<2x2xf32>
    %50 = math.exp %49 : vector<2x2xf32>
    %cst_21 = arith.constant dense<0.000000e+00> : vector<2xf32>
    %51 = vector.multi_reduction <add>, %50, %cst_21 [1] : vector<2x2xf32> to vector<2xf32>
    %52 = vector.shape_cast %51 : vector<2xf32> to vector<2x1xf32>
    %53 = vector.broadcast %52 : vector<2x1xf32> to vector<2x2xf32>
    %54 = arith.divf %50, %53 : vector<2x2xf32>
    %55 = vector.extract_strided_slice %54 {offsets = [0, 0], sizes = [1, 1], strides = [1, 1]} : vector<2x2xf32> to vector<1x1xf32>
    %56 = vector.extract_strided_slice %0 {offsets = [0, 0, 0], sizes = [1, 8, 32], strides = [1, 1, 1]} : vector<2x16x32xf32> to vector<1x8x32xf32>
    %57 = vector.shape_cast %56 : vector<1x8x32xf32> to vector<8x32xf32>
    %58 = vector.broadcast %55 : vector<1x1xf32> to vector<8x32xf32>
    %59 = arith.mulf %58, %57 : vector<8x32xf32>
    %60 = vector.extract_strided_slice %54 {offsets = [0, 1], sizes = [1, 1], strides = [1, 1]} : vector<2x2xf32> to vector<1x1xf32>
    %61 = vector.extract_strided_slice %0 {offsets = [1, 0, 0], sizes = [1, 8, 32], strides = [1, 1, 1]} : vector<2x16x32xf32> to vector<1x8x32xf32>
    %62 = vector.shape_cast %61 : vector<1x8x32xf32> to vector<8x32xf32>
    %63 = vector.broadcast %60 : vector<1x1xf32> to vector<8x32xf32>
    %64 = arith.mulf %63, %62 : vector<8x32xf32>
    %65 = arith.addf %59, %64 : vector<8x32xf32>
    %66 = vector.extract_strided_slice %54 {offsets = [1, 0], sizes = [1, 1], strides = [1, 1]} : vector<2x2xf32> to vector<1x1xf32>
    %67 = vector.extract_strided_slice %0 {offsets = [0, 8, 0], sizes = [1, 8, 32], strides = [1, 1, 1]} : vector<2x16x32xf32> to vector<1x8x32xf32>
    %68 = vector.shape_cast %67 : vector<1x8x32xf32> to vector<8x32xf32>
    %69 = vector.broadcast %66 : vector<1x1xf32> to vector<8x32xf32>
    %70 = arith.mulf %69, %68 : vector<8x32xf32>
    %71 = vector.extract_strided_slice %54 {offsets = [1, 1], sizes = [1, 1], strides = [1, 1]} : vector<2x2xf32> to vector<1x1xf32>
    %72 = vector.extract_strided_slice %0 {offsets = [1, 8, 0], sizes = [1, 8, 32], strides = [1, 1, 1]} : vector<2x16x32xf32> to vector<1x8x32xf32>
    %73 = vector.shape_cast %72 : vector<1x8x32xf32> to vector<8x32xf32>
    %74 = vector.broadcast %71 : vector<1x1xf32> to vector<8x32xf32>
    %75 = arith.mulf %74, %73 : vector<8x32xf32>
    %76 = arith.addf %70, %75 : vector<8x32xf32>
    %77 = tpu.concatenate %65, %76 in 0 : vector<8x32xf32>, vector<8x32xf32> -> vector<16x32xf32>
    %78 = arith.truncf %77 : vector<16x32xf32> to vector<16x32xbf16>
    %c0_22 = arith.constant 0 : index
    %c0_23 = arith.constant 0 : index
    %79 = vector.load %arg6[%c0_22, %c0_23] : memref<32x32xbf16, #tpu.memory_space<vmem>>, vector<32x32xbf16>
    %cst_24 = arith.constant dense<0.000000e+00> : vector<16x32xf32>
    %80 = tpu.matmul %78, %79, %cst_24 {dimension_numbers = #tpu.dot_dimension_numbers<[1], [0], [0], [1], [0, 0, 1, 1], [], []>} : vector<16x32xbf16>, vector<32x32xbf16>, vector<16x32xf32> -> vector<16x32xf32>
    %c0_25 = arith.constant 0 : index
    %c0_26 = arith.constant 0 : index
    %81 = vector.load %arg7[%c0_25, %c0_26] : memref<1x32xf32, #tpu.memory_space<vmem>>, vector<1x32xf32>
    %82 = vector.broadcast %81 : vector<1x32xf32> to vector<16x32xf32>
    %83 = arith.addf %80, %82 : vector<16x32xf32>
    %c0_27 = arith.constant 0 : index
    %c0_28 = arith.constant 0 : index
    %84 = vector.load %arg8[%c0_27, %c0_28] : memref<16x32xf32, #tpu.memory_space<vmem>>, vector<16x32xf32>
    tpu.vector_store %arg8[%c0_27, %c0_28], %83 {strides = array<i32>} : memref<16x32xf32, #tpu.memory_space<vmem>>, vector<16x32xf32>,
    return
  }
  func.func @transform_0(%arg0: i32) -> (i32, i32, i32) {
    %c0_i32 = arith.constant 0 : i32
    %c0_i32_0 = arith.constant 0 : i32
    %c0_i32_1 = arith.constant 0 : i32
    %c0_i32_2 = arith.constant 0 : i32
    return %c0_i32, %c0_i32_0, %c0_i32_1 : i32, i32, i32
  }
  func.func @transform_1(%arg0: i32) -> (i32, i32) {
    %c0_i32 = arith.constant 0 : i32
    %c0_i32_0 = arith.constant 0 : i32
    %c0_i32_1 = arith.constant 0 : i32
    return %c0_i32, %c0_i32_0 : i32, i32
  }
  func.func @transform_2(%arg0: i32) -> (i32, i32) {
    %c0_i32 = arith.constant 0 : i32
    %c0_i32_0 = arith.constant 0 : i32
    %c0_i32_1 = arith.constant 0 : i32
    return %c0_i32, %c0_i32_0 : i32, i32
  }
  func.func @transform_3(%arg0: i32) -> (i32, i32) {
    %c0_i32 = arith.constant 0 : i32
    %c0_i32_0 = arith.constant 0 : i32
    %c0_i32_1 = arith.constant 0 : i32
    return %c0_i32, %c0_i32_0 : i32, i32
  }
  func.func @transform_4(%arg0: i32) -> (i32, i32) {
    %c0_i32 = arith.constant 0 : i32
    %c0_i32_0 = arith.constant 0 : i32
    %c0_i32_1 = arith.constant 0 : i32
    return %c0_i32, %c0_i32_0 : i32, i32
  }
  func.func @transform_5(%arg0: i32) -> (i32, i32) {
    %c0_i32 = arith.constant 0 : i32
    %c0_i32_0 = arith.constant 0 : i32
    %c0_i32_1 = arith.constant 0 : i32
    return %c0_i32, %c0_i32_0 : i32, i32
  }
  func.func @transform_6(%arg0: i32) -> (i32, i32) {
    %c0_i32 = arith.constant 0 : i32
    %c0_i32_0 = arith.constant 0 : i32
    %c0_i32_1 = arith.constant 0 : i32
    return %c0_i32, %c0_i32_0 : i32, i32
  }
  func.func @transform_7(%arg0: i32) -> (i32, i32) {
    %c0_i32 = arith.constant 0 : i32
    %c0_i32_0 = arith.constant 0 : i32
    %c0_i32_1 = arith.constant 0 : i32
    return %c0_i32, %c0_i32_0 : i32, i32
  }
}

module attributes {stable_mosaic.version = 11 : i64} {
  func.func @_paths_kernel(%arg0: i32, %arg1: memref<16x32xf32, #tpu.memory_space<vmem>>, %arg2: memref<1x2x32x96xbf16, #tpu.memory_space<vmem>>, %arg3: memref<1x2x1x96xf32, #tpu.memory_space<vmem>>, %arg4: memref<1x2x32x32xbf16, #tpu.memory_space<vmem>>, %arg5: memref<1x2x1x32xf32, #tpu.memory_space<vmem>>, %arg6: memref<1x2x1x32xf32, #tpu.memory_space<vmem>>, %arg7: memref<1x2x1x32xf32, #tpu.memory_space<vmem>>, %arg8: memref<1x2x32x128xbf16, #tpu.memory_space<vmem>>, %arg9: memref<1x2x1x128xf32, #tpu.memory_space<vmem>>, %arg10: memref<1x2x128x32xbf16, #tpu.memory_space<vmem>>, %arg11: memref<1x2x1x32xf32, #tpu.memory_space<vmem>>, %arg12: memref<1x2x1x32xf32, #tpu.memory_space<vmem>>, %arg13: memref<1x2x1x32xf32, #tpu.memory_space<vmem>>, %arg14: memref<1x16x32xf32, #tpu.memory_space<vmem>>) attributes {dimension_semantics = [#tpu.dimension_semantics<parallel>], iteration_bounds = array<i64: 2>, scalar_prefetch = 0 : i64, scratch_operands = 0 : i64, tpu.core_type = #tpu.core_type<tc>, window_params = [{pipeline_mode = #tpu.pipeline_mode<synchronous>, transform_indices = @transform_0, window_bounds = array<i64: 16, 32>}, {transform_indices = @transform_1, window_bounds = array<i64: 1, 2, 32, 96>}, {transform_indices = @transform_2, window_bounds = array<i64: 1, 2, 1, 96>}, {transform_indices = @transform_3, window_bounds = array<i64: 1, 2, 32, 32>}, {transform_indices = @transform_4, window_bounds = array<i64: 1, 2, 1, 32>}, {transform_indices = @transform_5, window_bounds = array<i64: 1, 2, 1, 32>}, {transform_indices = @transform_6, window_bounds = array<i64: 1, 2, 1, 32>}, {transform_indices = @transform_7, window_bounds = array<i64: 1, 2, 32, 128>}, {transform_indices = @transform_8, window_bounds = array<i64: 1, 2, 1, 128>}, {transform_indices = @transform_9, window_bounds = array<i64: 1, 2, 128, 32>}, {transform_indices = @transform_10, window_bounds = array<i64: 1, 2, 1, 32>}, {transform_indices = @transform_11, window_bounds = array<i64: 1, 2, 1, 32>}, {transform_indices = @transform_12, window_bounds = array<i64: 1, 2, 1, 32>}, {transform_indices = @transform_13, window_bounds = array<i64: 1, 16, 32>}]} {
    %c0 = arith.constant 0 : index
    %c0_0 = arith.constant 0 : index
    %0 = vector.load %arg1[%c0, %c0_0] : memref<16x32xf32, #tpu.memory_space<vmem>>, vector<16x32xf32>
    %1 = arith.truncf %0 : vector<16x32xf32> to vector<16x32xbf16>
    %c0_1 = arith.constant 0 : index
    %c0_2 = arith.constant 0 : index
    %c0_3 = arith.constant 0 : index
    %c0_4 = arith.constant 0 : index
    %2 = vector.load %arg2[%c0_1, %c0_2, %c0_3, %c0_4] : memref<1x2x32x96xbf16, #tpu.memory_space<vmem>>, vector<1x1x32x96xbf16>
    %3 = vector.shape_cast %2 : vector<1x1x32x96xbf16> to vector<32x96xbf16>
    %cst = arith.constant dense<0.000000e+00> : vector<16x96xf32>
    %4 = tpu.matmul %1, %3, %cst {dimension_numbers = #tpu.dot_dimension_numbers<[1], [0], [0], [1], [0, 0, 1, 1], [], []>} : vector<16x32xbf16>, vector<32x96xbf16>, vector<16x96xf32> -> vector<16x96xf32>
    %c0_5 = arith.constant 0 : index
    %c0_6 = arith.constant 0 : index
    %c0_7 = arith.constant 0 : index
    %c0_8 = arith.constant 0 : index
    %5 = vector.load %arg3[%c0_5, %c0_6, %c0_7, %c0_8] : memref<1x2x1x96xf32, #tpu.memory_space<vmem>>, vector<1x1x1x96xf32>
    %6 = vector.shape_cast %5 : vector<1x1x1x96xf32> to vector<1x96xf32>
    %7 = vector.broadcast %6 : vector<1x96xf32> to vector<16x96xf32>
    %8 = arith.addf %4, %7 : vector<16x96xf32>
    %9 = vector.extract_strided_slice %8 {offsets = [0, 0], sizes = [8, 96], strides = [1, 1]} : vector<16x96xf32> to vector<8x96xf32>
    %10 = vector.extract_strided_slice %9 {offsets = [0, 0], sizes = [8, 8], strides = [1, 1]} : vector<8x96xf32> to vector<8x8xf32>
    %11 = vector.extract_strided_slice %9 {offsets = [0, 32], sizes = [8, 8], strides = [1, 1]} : vector<8x96xf32> to vector<8x8xf32>
    %12 = vector.extract_strided_slice %9 {offsets = [0, 64], sizes = [8, 8], strides = [1, 1]} : vector<8x96xf32> to vector<8x8xf32>
    "tpu.trace_start"() <{level = 10 : i32, message = "qd,kd->qk"}> : () -> ()
    %cst_9 = arith.constant dense<0.000000e+00> : vector<8x8xf32>
    %13 = tpu.matmul %10, %11, %cst_9 {dimension_numbers = #tpu.dot_dimension_numbers<[1], [1], [0], [0], [0, 0, 1, 0], [], []>} : vector<8x8xf32>, vector<8x8xf32>, vector<8x8xf32> -> vector<8x8xf32>
    "tpu.trace_stop"() : () -> ()
    %cst_10 = arith.constant 0.353553385 : f32
    %14 = vector.broadcast %cst_10 : f32 to vector<8x8xf32>
    %15 = arith.mulf %13, %14 : vector<8x8xf32>
    %cst_11 = arith.constant dense<0xFF800000> : vector<8xf32>
    %16 = vector.multi_reduction <maximumf>, %15, %cst_11 [1] : vector<8x8xf32> to vector<8xf32>
    %17 = vector.shape_cast %16 : vector<8xf32> to vector<8x1xf32>
    %18 = vector.broadcast %17 : vector<8x1xf32> to vector<8x8xf32>
    %19 = arith.subf %15, %18 : vector<8x8xf32>
    %20 = math.exp %19 : vector<8x8xf32>
    %cst_12 = arith.constant dense<0.000000e+00> : vector<8xf32>
    %21 = vector.multi_reduction <add>, %20, %cst_12 [1] : vector<8x8xf32> to vector<8xf32>
    %22 = vector.shape_cast %21 : vector<8xf32> to vector<8x1xf32>
    %23 = vector.broadcast %22 : vector<8x1xf32> to vector<8x8xf32>
    %24 = arith.divf %20, %23 : vector<8x8xf32>
    %cst_13 = arith.constant dense<0.000000e+00> : vector<8x8xf32>
    %25 = tpu.matmul %24, %12, %cst_13 {dimension_numbers = #tpu.dot_dimension_numbers<[1], [0], [0], [1], [0, 0, 1, 1], [], []>} : vector<8x8xf32>, vector<8x8xf32>, vector<8x8xf32> -> vector<8x8xf32>
    %26 = vector.extract_strided_slice %9 {offsets = [0, 8], sizes = [8, 8], strides = [1, 1]} : vector<8x96xf32> to vector<8x8xf32>
    %27 = vector.extract_strided_slice %9 {offsets = [0, 40], sizes = [8, 8], strides = [1, 1]} : vector<8x96xf32> to vector<8x8xf32>
    %28 = vector.extract_strided_slice %9 {offsets = [0, 72], sizes = [8, 8], strides = [1, 1]} : vector<8x96xf32> to vector<8x8xf32>
    "tpu.trace_start"() <{level = 10 : i32, message = "qd,kd->qk"}> : () -> ()
    %cst_14 = arith.constant dense<0.000000e+00> : vector<8x8xf32>
    %29 = tpu.matmul %26, %27, %cst_14 {dimension_numbers = #tpu.dot_dimension_numbers<[1], [1], [0], [0], [0, 0, 1, 0], [], []>} : vector<8x8xf32>, vector<8x8xf32>, vector<8x8xf32> -> vector<8x8xf32>
    "tpu.trace_stop"() : () -> ()
    %cst_15 = arith.constant 0.353553385 : f32
    %30 = vector.broadcast %cst_15 : f32 to vector<8x8xf32>
    %31 = arith.mulf %29, %30 : vector<8x8xf32>
    %cst_16 = arith.constant dense<0xFF800000> : vector<8xf32>
    %32 = vector.multi_reduction <maximumf>, %31, %cst_16 [1] : vector<8x8xf32> to vector<8xf32>
    %33 = vector.shape_cast %32 : vector<8xf32> to vector<8x1xf32>
    %34 = vector.broadcast %33 : vector<8x1xf32> to vector<8x8xf32>
    %35 = arith.subf %31, %34 : vector<8x8xf32>
    %36 = math.exp %35 : vector<8x8xf32>
    %cst_17 = arith.constant dense<0.000000e+00> : vector<8xf32>
    %37 = vector.multi_reduction <add>, %36, %cst_17 [1] : vector<8x8xf32> to vector<8xf32>
    %38 = vector.shape_cast %37 : vector<8xf32> to vector<8x1xf32>
    %39 = vector.broadcast %38 : vector<8x1xf32> to vector<8x8xf32>
    %40 = arith.divf %36, %39 : vector<8x8xf32>
    %cst_18 = arith.constant dense<0.000000e+00> : vector<8x8xf32>
    %41 = tpu.matmul %40, %28, %cst_18 {dimension_numbers = #tpu.dot_dimension_numbers<[1], [0], [0], [1], [0, 0, 1, 1], [], []>} : vector<8x8xf32>, vector<8x8xf32>, vector<8x8xf32> -> vector<8x8xf32>
    %42 = vector.extract_strided_slice %9 {offsets = [0, 16], sizes = [8, 8], strides = [1, 1]} : vector<8x96xf32> to vector<8x8xf32>
    %43 = vector.extract_strided_slice %9 {offsets = [0, 48], sizes = [8, 8], strides = [1, 1]} : vector<8x96xf32> to vector<8x8xf32>
    %44 = vector.extract_strided_slice %9 {offsets = [0, 80], sizes = [8, 8], strides = [1, 1]} : vector<8x96xf32> to vector<8x8xf32>
    "tpu.trace_start"() <{level = 10 : i32, message = "qd,kd->qk"}> : () -> ()
    %cst_19 = arith.constant dense<0.000000e+00> : vector<8x8xf32>
    %45 = tpu.matmul %42, %43, %cst_19 {dimension_numbers = #tpu.dot_dimension_numbers<[1], [1], [0], [0], [0, 0, 1, 0], [], []>} : vector<8x8xf32>, vector<8x8xf32>, vector<8x8xf32> -> vector<8x8xf32>
    "tpu.trace_stop"() : () -> ()
    %cst_20 = arith.constant 0.353553385 : f32
    %46 = vector.broadcast %cst_20 : f32 to vector<8x8xf32>
    %47 = arith.mulf %45, %46 : vector<8x8xf32>
    %cst_21 = arith.constant dense<0xFF800000> : vector<8xf32>
    %48 = vector.multi_reduction <maximumf>, %47, %cst_21 [1] : vector<8x8xf32> to vector<8xf32>
    %49 = vector.shape_cast %48 : vector<8xf32> to vector<8x1xf32>
    %50 = vector.broadcast %49 : vector<8x1xf32> to vector<8x8xf32>
    %51 = arith.subf %47, %50 : vector<8x8xf32>
    %52 = math.exp %51 : vector<8x8xf32>
    %cst_22 = arith.constant dense<0.000000e+00> : vector<8xf32>
    %53 = vector.multi_reduction <add>, %52, %cst_22 [1] : vector<8x8xf32> to vector<8xf32>
    %54 = vector.shape_cast %53 : vector<8xf32> to vector<8x1xf32>
    %55 = vector.broadcast %54 : vector<8x1xf32> to vector<8x8xf32>
    %56 = arith.divf %52, %55 : vector<8x8xf32>
    %cst_23 = arith.constant dense<0.000000e+00> : vector<8x8xf32>
    %57 = tpu.matmul %56, %44, %cst_23 {dimension_numbers = #tpu.dot_dimension_numbers<[1], [0], [0], [1], [0, 0, 1, 1], [], []>} : vector<8x8xf32>, vector<8x8xf32>, vector<8x8xf32> -> vector<8x8xf32>
    %58 = vector.extract_strided_slice %9 {offsets = [0, 24], sizes = [8, 8], strides = [1, 1]} : vector<8x96xf32> to vector<8x8xf32>
    %59 = vector.extract_strided_slice %9 {offsets = [0, 56], sizes = [8, 8], strides = [1, 1]} : vector<8x96xf32> to vector<8x8xf32>
    %60 = vector.extract_strided_slice %9 {offsets = [0, 88], sizes = [8, 8], strides = [1, 1]} : vector<8x96xf32> to vector<8x8xf32>
    "tpu.trace_start"() <{level = 10 : i32, message = "qd,kd->qk"}> : () -> ()
    %cst_24 = arith.constant dense<0.000000e+00> : vector<8x8xf32>
    %61 = tpu.matmul %58, %59, %cst_24 {dimension_numbers = #tpu.dot_dimension_numbers<[1], [1], [0], [0], [0, 0, 1, 0], [], []>} : vector<8x8xf32>, vector<8x8xf32>, vector<8x8xf32> -> vector<8x8xf32>
    "tpu.trace_stop"() : () -> ()
    %cst_25 = arith.constant 0.353553385 : f32
    %62 = vector.broadcast %cst_25 : f32 to vector<8x8xf32>
    %63 = arith.mulf %61, %62 : vector<8x8xf32>
    %cst_26 = arith.constant dense<0xFF800000> : vector<8xf32>
    %64 = vector.multi_reduction <maximumf>, %63, %cst_26 [1] : vector<8x8xf32> to vector<8xf32>
    %65 = vector.shape_cast %64 : vector<8xf32> to vector<8x1xf32>
    %66 = vector.broadcast %65 : vector<8x1xf32> to vector<8x8xf32>
    %67 = arith.subf %63, %66 : vector<8x8xf32>
    %68 = math.exp %67 : vector<8x8xf32>
    %cst_27 = arith.constant dense<0.000000e+00> : vector<8xf32>
    %69 = vector.multi_reduction <add>, %68, %cst_27 [1] : vector<8x8xf32> to vector<8xf32>
    %70 = vector.shape_cast %69 : vector<8xf32> to vector<8x1xf32>
    %71 = vector.broadcast %70 : vector<8x1xf32> to vector<8x8xf32>
    %72 = arith.divf %68, %71 : vector<8x8xf32>
    %cst_28 = arith.constant dense<0.000000e+00> : vector<8x8xf32>
    %73 = tpu.matmul %72, %60, %cst_28 {dimension_numbers = #tpu.dot_dimension_numbers<[1], [0], [0], [1], [0, 0, 1, 1], [], []>} : vector<8x8xf32>, vector<8x8xf32>, vector<8x8xf32> -> vector<8x8xf32>
    %74 = tpu.concatenate %25, %41, %57, %73 in 1 : vector<8x8xf32>, vector<8x8xf32>, vector<8x8xf32>, vector<8x8xf32> -> vector<8x32xf32>
    %75 = vector.extract_strided_slice %8 {offsets = [8, 0], sizes = [8, 96], strides = [1, 1]} : vector<16x96xf32> to vector<8x96xf32>
    %76 = vector.extract_strided_slice %75 {offsets = [0, 0], sizes = [8, 8], strides = [1, 1]} : vector<8x96xf32> to vector<8x8xf32>
    %77 = vector.extract_strided_slice %75 {offsets = [0, 32], sizes = [8, 8], strides = [1, 1]} : vector<8x96xf32> to vector<8x8xf32>
    %78 = vector.extract_strided_slice %75 {offsets = [0, 64], sizes = [8, 8], strides = [1, 1]} : vector<8x96xf32> to vector<8x8xf32>
    "tpu.trace_start"() <{level = 10 : i32, message = "qd,kd->qk"}> : () -> ()
    %cst_29 = arith.constant dense<0.000000e+00> : vector<8x8xf32>
    %79 = tpu.matmul %76, %77, %cst_29 {dimension_numbers = #tpu.dot_dimension_numbers<[1], [1], [0], [0], [0, 0, 1, 0], [], []>} : vector<8x8xf32>, vector<8x8xf32>, vector<8x8xf32> -> vector<8x8xf32>
    "tpu.trace_stop"() : () -> ()
    %cst_30 = arith.constant 0.353553385 : f32
    %80 = vector.broadcast %cst_30 : f32 to vector<8x8xf32>
    %81 = arith.mulf %79, %80 : vector<8x8xf32>
    %cst_31 = arith.constant dense<0xFF800000> : vector<8xf32>
    %82 = vector.multi_reduction <maximumf>, %81, %cst_31 [1] : vector<8x8xf32> to vector<8xf32>
    %83 = vector.shape_cast %82 : vector<8xf32> to vector<8x1xf32>
    %84 = vector.broadcast %83 : vector<8x1xf32> to vector<8x8xf32>
    %85 = arith.subf %81, %84 : vector<8x8xf32>
    %86 = math.exp %85 : vector<8x8xf32>
    %cst_32 = arith.constant dense<0.000000e+00> : vector<8xf32>
    %87 = vector.multi_reduction <add>, %86, %cst_32 [1] : vector<8x8xf32> to vector<8xf32>
    %88 = vector.shape_cast %87 : vector<8xf32> to vector<8x1xf32>
    %89 = vector.broadcast %88 : vector<8x1xf32> to vector<8x8xf32>
    %90 = arith.divf %86, %89 : vector<8x8xf32>
    %cst_33 = arith.constant dense<0.000000e+00> : vector<8x8xf32>
    %91 = tpu.matmul %90, %78, %cst_33 {dimension_numbers = #tpu.dot_dimension_numbers<[1], [0], [0], [1], [0, 0, 1, 1], [], []>} : vector<8x8xf32>, vector<8x8xf32>, vector<8x8xf32> -> vector<8x8xf32>
    %92 = vector.extract_strided_slice %75 {offsets = [0, 8], sizes = [8, 8], strides = [1, 1]} : vector<8x96xf32> to vector<8x8xf32>
    %93 = vector.extract_strided_slice %75 {offsets = [0, 40], sizes = [8, 8], strides = [1, 1]} : vector<8x96xf32> to vector<8x8xf32>
    %94 = vector.extract_strided_slice %75 {offsets = [0, 72], sizes = [8, 8], strides = [1, 1]} : vector<8x96xf32> to vector<8x8xf32>
    "tpu.trace_start"() <{level = 10 : i32, message = "qd,kd->qk"}> : () -> ()
    %cst_34 = arith.constant dense<0.000000e+00> : vector<8x8xf32>
    %95 = tpu.matmul %92, %93, %cst_34 {dimension_numbers = #tpu.dot_dimension_numbers<[1], [1], [0], [0], [0, 0, 1, 0], [], []>} : vector<8x8xf32>, vector<8x8xf32>, vector<8x8xf32> -> vector<8x8xf32>
    "tpu.trace_stop"() : () -> ()
    %cst_35 = arith.constant 0.353553385 : f32
    %96 = vector.broadcast %cst_35 : f32 to vector<8x8xf32>
    %97 = arith.mulf %95, %96 : vector<8x8xf32>
    %cst_36 = arith.constant dense<0xFF800000> : vector<8xf32>
    %98 = vector.multi_reduction <maximumf>, %97, %cst_36 [1] : vector<8x8xf32> to vector<8xf32>
    %99 = vector.shape_cast %98 : vector<8xf32> to vector<8x1xf32>
    %100 = vector.broadcast %99 : vector<8x1xf32> to vector<8x8xf32>
    %101 = arith.subf %97, %100 : vector<8x8xf32>
    %102 = math.exp %101 : vector<8x8xf32>
    %cst_37 = arith.constant dense<0.000000e+00> : vector<8xf32>
    %103 = vector.multi_reduction <add>, %102, %cst_37 [1] : vector<8x8xf32> to vector<8xf32>
    %104 = vector.shape_cast %103 : vector<8xf32> to vector<8x1xf32>
    %105 = vector.broadcast %104 : vector<8x1xf32> to vector<8x8xf32>
    %106 = arith.divf %102, %105 : vector<8x8xf32>
    %cst_38 = arith.constant dense<0.000000e+00> : vector<8x8xf32>
    %107 = tpu.matmul %106, %94, %cst_38 {dimension_numbers = #tpu.dot_dimension_numbers<[1], [0], [0], [1], [0, 0, 1, 1], [], []>} : vector<8x8xf32>, vector<8x8xf32>, vector<8x8xf32> -> vector<8x8xf32>
    %108 = vector.extract_strided_slice %75 {offsets = [0, 16], sizes = [8, 8], strides = [1, 1]} : vector<8x96xf32> to vector<8x8xf32>
    %109 = vector.extract_strided_slice %75 {offsets = [0, 48], sizes = [8, 8], strides = [1, 1]} : vector<8x96xf32> to vector<8x8xf32>
    %110 = vector.extract_strided_slice %75 {offsets = [0, 80], sizes = [8, 8], strides = [1, 1]} : vector<8x96xf32> to vector<8x8xf32>
    "tpu.trace_start"() <{level = 10 : i32, message = "qd,kd->qk"}> : () -> ()
    %cst_39 = arith.constant dense<0.000000e+00> : vector<8x8xf32>
    %111 = tpu.matmul %108, %109, %cst_39 {dimension_numbers = #tpu.dot_dimension_numbers<[1], [1], [0], [0], [0, 0, 1, 0], [], []>} : vector<8x8xf32>, vector<8x8xf32>, vector<8x8xf32> -> vector<8x8xf32>
    "tpu.trace_stop"() : () -> ()
    %cst_40 = arith.constant 0.353553385 : f32
    %112 = vector.broadcast %cst_40 : f32 to vector<8x8xf32>
    %113 = arith.mulf %111, %112 : vector<8x8xf32>
    %cst_41 = arith.constant dense<0xFF800000> : vector<8xf32>
    %114 = vector.multi_reduction <maximumf>, %113, %cst_41 [1] : vector<8x8xf32> to vector<8xf32>
    %115 = vector.shape_cast %114 : vector<8xf32> to vector<8x1xf32>
    %116 = vector.broadcast %115 : vector<8x1xf32> to vector<8x8xf32>
    %117 = arith.subf %113, %116 : vector<8x8xf32>
    %118 = math.exp %117 : vector<8x8xf32>
    %cst_42 = arith.constant dense<0.000000e+00> : vector<8xf32>
    %119 = vector.multi_reduction <add>, %118, %cst_42 [1] : vector<8x8xf32> to vector<8xf32>
    %120 = vector.shape_cast %119 : vector<8xf32> to vector<8x1xf32>
    %121 = vector.broadcast %120 : vector<8x1xf32> to vector<8x8xf32>
    %122 = arith.divf %118, %121 : vector<8x8xf32>
    %cst_43 = arith.constant dense<0.000000e+00> : vector<8x8xf32>
    %123 = tpu.matmul %122, %110, %cst_43 {dimension_numbers = #tpu.dot_dimension_numbers<[1], [0], [0], [1], [0, 0, 1, 1], [], []>} : vector<8x8xf32>, vector<8x8xf32>, vector<8x8xf32> -> vector<8x8xf32>
    %124 = vector.extract_strided_slice %75 {offsets = [0, 24], sizes = [8, 8], strides = [1, 1]} : vector<8x96xf32> to vector<8x8xf32>
    %125 = vector.extract_strided_slice %75 {offsets = [0, 56], sizes = [8, 8], strides = [1, 1]} : vector<8x96xf32> to vector<8x8xf32>
    %126 = vector.extract_strided_slice %75 {offsets = [0, 88], sizes = [8, 8], strides = [1, 1]} : vector<8x96xf32> to vector<8x8xf32>
    "tpu.trace_start"() <{level = 10 : i32, message = "qd,kd->qk"}> : () -> ()
    %cst_44 = arith.constant dense<0.000000e+00> : vector<8x8xf32>
    %127 = tpu.matmul %124, %125, %cst_44 {dimension_numbers = #tpu.dot_dimension_numbers<[1], [1], [0], [0], [0, 0, 1, 0], [], []>} : vector<8x8xf32>, vector<8x8xf32>, vector<8x8xf32> -> vector<8x8xf32>
    "tpu.trace_stop"() : () -> ()
    %cst_45 = arith.constant 0.353553385 : f32
    %128 = vector.broadcast %cst_45 : f32 to vector<8x8xf32>
    %129 = arith.mulf %127, %128 : vector<8x8xf32>
    %cst_46 = arith.constant dense<0xFF800000> : vector<8xf32>
    %130 = vector.multi_reduction <maximumf>, %129, %cst_46 [1] : vector<8x8xf32> to vector<8xf32>
    %131 = vector.shape_cast %130 : vector<8xf32> to vector<8x1xf32>
    %132 = vector.broadcast %131 : vector<8x1xf32> to vector<8x8xf32>
    %133 = arith.subf %129, %132 : vector<8x8xf32>
    %134 = math.exp %133 : vector<8x8xf32>
    %cst_47 = arith.constant dense<0.000000e+00> : vector<8xf32>
    %135 = vector.multi_reduction <add>, %134, %cst_47 [1] : vector<8x8xf32> to vector<8xf32>
    %136 = vector.shape_cast %135 : vector<8xf32> to vector<8x1xf32>
    %137 = vector.broadcast %136 : vector<8x1xf32> to vector<8x8xf32>
    %138 = arith.divf %134, %137 : vector<8x8xf32>
    %cst_48 = arith.constant dense<0.000000e+00> : vector<8x8xf32>
    %139 = tpu.matmul %138, %126, %cst_48 {dimension_numbers = #tpu.dot_dimension_numbers<[1], [0], [0], [1], [0, 0, 1, 1], [], []>} : vector<8x8xf32>, vector<8x8xf32>, vector<8x8xf32> -> vector<8x8xf32>
    %140 = tpu.concatenate %91, %107, %123, %139 in 1 : vector<8x8xf32>, vector<8x8xf32>, vector<8x8xf32>, vector<8x8xf32> -> vector<8x32xf32>
    %141 = tpu.concatenate %74, %140 in 0 : vector<8x32xf32>, vector<8x32xf32> -> vector<16x32xf32>
    %142 = arith.truncf %141 : vector<16x32xf32> to vector<16x32xbf16>
    %c0_49 = arith.constant 0 : index
    %c0_50 = arith.constant 0 : index
    %c0_51 = arith.constant 0 : index
    %c0_52 = arith.constant 0 : index
    %143 = vector.load %arg4[%c0_49, %c0_50, %c0_51, %c0_52] : memref<1x2x32x32xbf16, #tpu.memory_space<vmem>>, vector<1x1x32x32xbf16>
    %144 = vector.shape_cast %143 : vector<1x1x32x32xbf16> to vector<32x32xbf16>
    %cst_53 = arith.constant dense<0.000000e+00> : vector<16x32xf32>
    %145 = tpu.matmul %142, %144, %cst_53 {dimension_numbers = #tpu.dot_dimension_numbers<[1], [0], [0], [1], [0, 0, 1, 1], [], []>} : vector<16x32xbf16>, vector<32x32xbf16>, vector<16x32xf32> -> vector<16x32xf32>
    %c0_54 = arith.constant 0 : index
    %c0_55 = arith.constant 0 : index
    %c0_56 = arith.constant 0 : index
    %c0_57 = arith.constant 0 : index
    %146 = vector.load %arg5[%c0_54, %c0_55, %c0_56, %c0_57] : memref<1x2x1x32xf32, #tpu.memory_space<vmem>>, vector<1x1x1x32xf32>
    %147 = vector.shape_cast %146 : vector<1x1x1x32xf32> to vector<1x32xf32>
    %148 = vector.broadcast %147 : vector<1x32xf32> to vector<16x32xf32>
    %149 = arith.addf %145, %148 : vector<16x32xf32>
    %150 = arith.addf %149, %0 : vector<16x32xf32>
    %c0_58 = arith.constant 0 : index
    %c0_59 = arith.constant 0 : index
    %c0_60 = arith.constant 0 : index
    %c0_61 = arith.constant 0 : index
    %151 = vector.load %arg6[%c0_58, %c0_59, %c0_60, %c0_61] : memref<1x2x1x32xf32, #tpu.memory_space<vmem>>, vector<1x1x1x32xf32>
    %152 = vector.shape_cast %151 : vector<1x1x1x32xf32> to vector<1x32xf32>
    %c0_62 = arith.constant 0 : index
    %c0_63 = arith.constant 0 : index
    %c0_64 = arith.constant 0 : index
    %c0_65 = arith.constant 0 : index
    %153 = vector.load %arg7[%c0_62, %c0_63, %c0_64, %c0_65] : memref<1x2x1x32xf32, #tpu.memory_space<vmem>>, vector<1x1x1x32xf32>
    %154 = vector.shape_cast %153 : vector<1x1x1x32xf32> to vector<1x32xf32>
    %cst_66 = arith.constant dense<0.000000e+00> : vector<16xf32>
    %155 = vector.multi_reduction <add>, %150, %cst_66 [1] : vector<16x32xf32> to vector<16xf32>
    %156 = vector.shape_cast %155 : vector<16xf32> to vector<16x1xf32>
    %cst_67 = arith.constant 3.200000e+01 : f32
    %157 = vector.broadcast %cst_67 : f32 to vector<16x1xf32>
    %158 = arith.divf %156, %157 : vector<16x1xf32>
    %159 = vector.broadcast %158 : vector<16x1xf32> to vector<16x32xf32>
    %160 = arith.subf %150, %159 : vector<16x32xf32>
    %161 = arith.mulf %160, %160 : vector<16x32xf32>
    %cst_68 = arith.constant dense<0.000000e+00> : vector<16xf32>
    %162 = vector.multi_reduction <add>, %161, %cst_68 [1] : vector<16x32xf32> to vector<16xf32>
    %163 = vector.shape_cast %162 : vector<16xf32> to vector<16x1xf32>
    %cst_69 = arith.constant 3.200000e+01 : f32
    %164 = vector.broadcast %cst_69 : f32 to vector<16x1xf32>
    %165 = arith.divf %163, %164 : vector<16x1xf32>
    %166 = vector.broadcast %158 : vector<16x1xf32> to vector<16x32xf32>
    %167 = arith.subf %150, %166 : vector<16x32xf32>
    %cst_70 = arith.constant 9.99999974E-6 : f32
    %168 = vector.broadcast %cst_70 : f32 to vector<16x1xf32>
    %169 = arith.addf %165, %168 : vector<16x1xf32>
    %170 = math.rsqrt %169 : vector<16x1xf32>
    %171 = vector.broadcast %170 : vector<16x1xf32> to vector<16x32xf32>
    %172 = arith.mulf %167, %171 : vector<16x32xf32>
    %173 = vector.broadcast %152 : vector<1x32xf32> to vector<16x32xf32>
    %174 = arith.mulf %172, %173 : vector<16x32xf32>
    %175 = vector.broadcast %154 : vector<1x32xf32> to vector<16x32xf32>
    %176 = arith.addf %174, %175 : vector<16x32xf32>
    %177 = arith.truncf %176 : vector<16x32xf32> to vector<16x32xbf16>
    %c0_71 = arith.constant 0 : index
    %c0_72 = arith.constant 0 : index
    %c0_73 = arith.constant 0 : index
    %c0_74 = arith.constant 0 : index
    %178 = vector.load %arg8[%c0_71, %c0_72, %c0_73, %c0_74] : memref<1x2x32x128xbf16, #tpu.memory_space<vmem>>, vector<1x1x32x128xbf16>
    %179 = vector.shape_cast %178 : vector<1x1x32x128xbf16> to vector<32x128xbf16>
    %cst_75 = arith.constant dense<0.000000e+00> : vector<16x128xf32>
    %180 = tpu.matmul %177, %179, %cst_75 {dimension_numbers = #tpu.dot_dimension_numbers<[1], [0], [0], [1], [0, 0, 1, 1], [], []>} : vector<16x32xbf16>, vector<32x128xbf16>, vector<16x128xf32> -> vector<16x128xf32>
    %c0_76 = arith.constant 0 : index
    %c0_77 = arith.constant 0 : index
    %c0_78 = arith.constant 0 : index
    %c0_79 = arith.constant 0 : index
    %181 = vector.load %arg9[%c0_76, %c0_77, %c0_78, %c0_79] : memref<1x2x1x128xf32, #tpu.memory_space<vmem>>, vector<1x1x1x128xf32>
    %182 = vector.shape_cast %181 : vector<1x1x1x128xf32> to vector<1x128xf32>
    %183 = vector.broadcast %182 : vector<1x128xf32> to vector<16x128xf32>
    %184 = arith.addf %180, %183 : vector<16x128xf32>
    %cst_80 = arith.constant 5.000000e-01 : f32
    %185 = vector.broadcast %cst_80 : f32 to vector<16x128xf32>
    %186 = arith.mulf %185, %184 : vector<16x128xf32>
    %cst_81 = arith.constant 0.707106769 : f32
    %187 = vector.broadcast %cst_81 : f32 to vector<16x128xf32>
    %188 = arith.mulf %184, %187 : vector<16x128xf32>
    %189 = math.erf %188 : vector<16x128xf32>
    %cst_82 = arith.constant 1.000000e+00 : f32
    %190 = vector.broadcast %cst_82 : f32 to vector<16x128xf32>
    %191 = arith.addf %190, %189 : vector<16x128xf32>
    %192 = arith.mulf %186, %191 : vector<16x128xf32>
    %193 = arith.truncf %192 : vector<16x128xf32> to vector<16x128xbf16>
    %c0_83 = arith.constant 0 : index
    %c0_84 = arith.constant 0 : index
    %c0_85 = arith.constant 0 : index
    %c0_86 = arith.constant 0 : index
    %194 = vector.load %arg10[%c0_83, %c0_84, %c0_85, %c0_86] : memref<1x2x128x32xbf16, #tpu.memory_space<vmem>>, vector<1x1x128x32xbf16>
    %195 = vector.shape_cast %194 : vector<1x1x128x32xbf16> to vector<128x32xbf16>
    %cst_87 = arith.constant dense<0.000000e+00> : vector<16x32xf32>
    %196 = tpu.matmul %193, %195, %cst_87 {dimension_numbers = #tpu.dot_dimension_numbers<[1], [0], [0], [1], [0, 0, 1, 1], [], []>} : vector<16x128xbf16>, vector<128x32xbf16>, vector<16x32xf32> -> vector<16x32xf32>
    %c0_88 = arith.constant 0 : index
    %c0_89 = arith.constant 0 : index
    %c0_90 = arith.constant 0 : index
    %c0_91 = arith.constant 0 : index
    %197 = vector.load %arg11[%c0_88, %c0_89, %c0_90, %c0_91] : memref<1x2x1x32xf32, #tpu.memory_space<vmem>>, vector<1x1x1x32xf32>
    %198 = vector.shape_cast %197 : vector<1x1x1x32xf32> to vector<1x32xf32>
    %199 = vector.broadcast %198 : vector<1x32xf32> to vector<16x32xf32>
    %200 = arith.addf %196, %199 : vector<16x32xf32>
    %201 = arith.addf %200, %176 : vector<16x32xf32>
    %c0_92 = arith.constant 0 : index
    %c0_93 = arith.constant 0 : index
    %c0_94 = arith.constant 0 : index
    %c0_95 = arith.constant 0 : index
    %202 = vector.load %arg12[%c0_92, %c0_93, %c0_94, %c0_95] : memref<1x2x1x32xf32, #tpu.memory_space<vmem>>, vector<1x1x1x32xf32>
    %203 = vector.shape_cast %202 : vector<1x1x1x32xf32> to vector<1x32xf32>
    %c0_96 = arith.constant 0 : index
    %c0_97 = arith.constant 0 : index
    %c0_98 = arith.constant 0 : index
    %c0_99 = arith.constant 0 : index
    %204 = vector.load %arg13[%c0_96, %c0_97, %c0_98, %c0_99] : memref<1x2x1x32xf32, #tpu.memory_space<vmem>>, vector<1x1x1x32xf32>
    %205 = vector.shape_cast %204 : vector<1x1x1x32xf32> to vector<1x32xf32>
    %cst_100 = arith.constant dense<0.000000e+00> : vector<16xf32>
    %206 = vector.multi_reduction <add>, %201, %cst_100 [1] : vector<16x32xf32> to vector<16xf32>
    %207 = vector.shape_cast %206 : vector<16xf32> to vector<16x1xf32>
    %cst_101 = arith.constant 3.200000e+01 : f32
    %208 = vector.broadcast %cst_101 : f32 to vector<16x1xf32>
    %209 = arith.divf %207, %208 : vector<16x1xf32>
    %210 = vector.broadcast %209 : vector<16x1xf32> to vector<16x32xf32>
    %211 = arith.subf %201, %210 : vector<16x32xf32>
    %212 = arith.mulf %211, %211 : vector<16x32xf32>
    %cst_102 = arith.constant dense<0.000000e+00> : vector<16xf32>
    %213 = vector.multi_reduction <add>, %212, %cst_102 [1] : vector<16x32xf32> to vector<16xf32>
    %214 = vector.shape_cast %213 : vector<16xf32> to vector<16x1xf32>
    %cst_103 = arith.constant 3.200000e+01 : f32
    %215 = vector.broadcast %cst_103 : f32 to vector<16x1xf32>
    %216 = arith.divf %214, %215 : vector<16x1xf32>
    %217 = vector.broadcast %209 : vector<16x1xf32> to vector<16x32xf32>
    %218 = arith.subf %201, %217 : vector<16x32xf32>
    %cst_104 = arith.constant 9.99999974E-6 : f32
    %219 = vector.broadcast %cst_104 : f32 to vector<16x1xf32>
    %220 = arith.addf %216, %219 : vector<16x1xf32>
    %221 = math.rsqrt %220 : vector<16x1xf32>
    %222 = vector.broadcast %221 : vector<16x1xf32> to vector<16x32xf32>
    %223 = arith.mulf %218, %222 : vector<16x32xf32>
    %224 = vector.broadcast %203 : vector<1x32xf32> to vector<16x32xf32>
    %225 = arith.mulf %223, %224 : vector<16x32xf32>
    %226 = vector.broadcast %205 : vector<1x32xf32> to vector<16x32xf32>
    %227 = arith.addf %225, %226 : vector<16x32xf32>
    %228 = arith.truncf %227 : vector<16x32xf32> to vector<16x32xbf16>
    %c0_105 = arith.constant 0 : index
    %c1 = arith.constant 1 : index
    %c0_106 = arith.constant 0 : index
    %c0_107 = arith.constant 0 : index
    %229 = vector.load %arg2[%c0_105, %c1, %c0_106, %c0_107] : memref<1x2x32x96xbf16, #tpu.memory_space<vmem>>, vector<1x1x32x96xbf16>
    %230 = vector.shape_cast %229 : vector<1x1x32x96xbf16> to vector<32x96xbf16>
    %cst_108 = arith.constant dense<0.000000e+00> : vector<16x96xf32>
    %231 = tpu.matmul %228, %230, %cst_108 {dimension_numbers = #tpu.dot_dimension_numbers<[1], [0], [0], [1], [0, 0, 1, 1], [], []>} : vector<16x32xbf16>, vector<32x96xbf16>, vector<16x96xf32> -> vector<16x96xf32>
    %c0_109 = arith.constant 0 : index
    %c1_110 = arith.constant 1 : index
    %c0_111 = arith.constant 0 : index
    %c0_112 = arith.constant 0 : index
    %232 = vector.load %arg3[%c0_109, %c1_110, %c0_111, %c0_112] : memref<1x2x1x96xf32, #tpu.memory_space<vmem>>, vector<1x1x1x96xf32>
    %233 = vector.shape_cast %232 : vector<1x1x1x96xf32> to vector<1x96xf32>
    %234 = vector.broadcast %233 : vector<1x96xf32> to vector<16x96xf32>
    %235 = arith.addf %231, %234 : vector<16x96xf32>
    %236 = vector.extract_strided_slice %235 {offsets = [0, 0], sizes = [8, 96], strides = [1, 1]} : vector<16x96xf32> to vector<8x96xf32>
    %237 = vector.extract_strided_slice %236 {offsets = [0, 0], sizes = [8, 8], strides = [1, 1]} : vector<8x96xf32> to vector<8x8xf32>
    %238 = vector.extract_strided_slice %236 {offsets = [0, 32], sizes = [8, 8], strides = [1, 1]} : vector<8x96xf32> to vector<8x8xf32>
    %239 = vector.extract_strided_slice %236 {offsets = [0, 64], sizes = [8, 8], strides = [1, 1]} : vector<8x96xf32> to vector<8x8xf32>
    "tpu.trace_start"() <{level = 10 : i32, message = "qd,kd->qk"}> : () -> ()
    %cst_113 = arith.constant dense<0.000000e+00> : vector<8x8xf32>
    %240 = tpu.matmul %237, %238, %cst_113 {dimension_numbers = #tpu.dot_dimension_numbers<[1], [1], [0], [0], [0, 0, 1, 0], [], []>} : vector<8x8xf32>, vector<8x8xf32>, vector<8x8xf32> -> vector<8x8xf32>
    "tpu.trace_stop"() : () -> ()
    %cst_114 = arith.constant 0.353553385 : f32
    %241 = vector.broadcast %cst_114 : f32 to vector<8x8xf32>
    %242 = arith.mulf %240, %241 : vector<8x8xf32>
    %cst_115 = arith.constant dense<0xFF800000> : vector<8xf32>
    %243 = vector.multi_reduction <maximumf>, %242, %cst_115 [1] : vector<8x8xf32> to vector<8xf32>
    %244 = vector.shape_cast %243 : vector<8xf32> to vector<8x1xf32>
    %245 = vector.broadcast %244 : vector<8x1xf32> to vector<8x8xf32>
    %246 = arith.subf %242, %245 : vector<8x8xf32>
    %247 = math.exp %246 : vector<8x8xf32>
    %cst_116 = arith.constant dense<0.000000e+00> : vector<8xf32>
    %248 = vector.multi_reduction <add>, %247, %cst_116 [1] : vector<8x8xf32> to vector<8xf32>
    %249 = vector.shape_cast %248 : vector<8xf32> to vector<8x1xf32>
    %250 = vector.broadcast %249 : vector<8x1xf32> to vector<8x8xf32>
    %251 = arith.divf %247, %250 : vector<8x8xf32>
    %cst_117 = arith.constant dense<0.000000e+00> : vector<8x8xf32>
    %252 = tpu.matmul %251, %239, %cst_117 {dimension_numbers = #tpu.dot_dimension_numbers<[1], [0], [0], [1], [0, 0, 1, 1], [], []>} : vector<8x8xf32>, vector<8x8xf32>, vector<8x8xf32> -> vector<8x8xf32>
    %253 = vector.extract_strided_slice %236 {offsets = [0, 8], sizes = [8, 8], strides = [1, 1]} : vector<8x96xf32> to vector<8x8xf32>
    %254 = vector.extract_strided_slice %236 {offsets = [0, 40], sizes = [8, 8], strides = [1, 1]} : vector<8x96xf32> to vector<8x8xf32>
    %255 = vector.extract_strided_slice %236 {offsets = [0, 72], sizes = [8, 8], strides = [1, 1]} : vector<8x96xf32> to vector<8x8xf32>
    "tpu.trace_start"() <{level = 10 : i32, message = "qd,kd->qk"}> : () -> ()
    %cst_118 = arith.constant dense<0.000000e+00> : vector<8x8xf32>
    %256 = tpu.matmul %253, %254, %cst_118 {dimension_numbers = #tpu.dot_dimension_numbers<[1], [1], [0], [0], [0, 0, 1, 0], [], []>} : vector<8x8xf32>, vector<8x8xf32>, vector<8x8xf32> -> vector<8x8xf32>
    "tpu.trace_stop"() : () -> ()
    %cst_119 = arith.constant 0.353553385 : f32
    %257 = vector.broadcast %cst_119 : f32 to vector<8x8xf32>
    %258 = arith.mulf %256, %257 : vector<8x8xf32>
    %cst_120 = arith.constant dense<0xFF800000> : vector<8xf32>
    %259 = vector.multi_reduction <maximumf>, %258, %cst_120 [1] : vector<8x8xf32> to vector<8xf32>
    %260 = vector.shape_cast %259 : vector<8xf32> to vector<8x1xf32>
    %261 = vector.broadcast %260 : vector<8x1xf32> to vector<8x8xf32>
    %262 = arith.subf %258, %261 : vector<8x8xf32>
    %263 = math.exp %262 : vector<8x8xf32>
    %cst_121 = arith.constant dense<0.000000e+00> : vector<8xf32>
    %264 = vector.multi_reduction <add>, %263, %cst_121 [1] : vector<8x8xf32> to vector<8xf32>
    %265 = vector.shape_cast %264 : vector<8xf32> to vector<8x1xf32>
    %266 = vector.broadcast %265 : vector<8x1xf32> to vector<8x8xf32>
    %267 = arith.divf %263, %266 : vector<8x8xf32>
    %cst_122 = arith.constant dense<0.000000e+00> : vector<8x8xf32>
    %268 = tpu.matmul %267, %255, %cst_122 {dimension_numbers = #tpu.dot_dimension_numbers<[1], [0], [0], [1], [0, 0, 1, 1], [], []>} : vector<8x8xf32>, vector<8x8xf32>, vector<8x8xf32> -> vector<8x8xf32>
    %269 = vector.extract_strided_slice %236 {offsets = [0, 16], sizes = [8, 8], strides = [1, 1]} : vector<8x96xf32> to vector<8x8xf32>
    %270 = vector.extract_strided_slice %236 {offsets = [0, 48], sizes = [8, 8], strides = [1, 1]} : vector<8x96xf32> to vector<8x8xf32>
    %271 = vector.extract_strided_slice %236 {offsets = [0, 80], sizes = [8, 8], strides = [1, 1]} : vector<8x96xf32> to vector<8x8xf32>
    "tpu.trace_start"() <{level = 10 : i32, message = "qd,kd->qk"}> : () -> ()
    %cst_123 = arith.constant dense<0.000000e+00> : vector<8x8xf32>
    %272 = tpu.matmul %269, %270, %cst_123 {dimension_numbers = #tpu.dot_dimension_numbers<[1], [1], [0], [0], [0, 0, 1, 0], [], []>} : vector<8x8xf32>, vector<8x8xf32>, vector<8x8xf32> -> vector<8x8xf32>
    "tpu.trace_stop"() : () -> ()
    %cst_124 = arith.constant 0.353553385 : f32
    %273 = vector.broadcast %cst_124 : f32 to vector<8x8xf32>
    %274 = arith.mulf %272, %273 : vector<8x8xf32>
    %cst_125 = arith.constant dense<0xFF800000> : vector<8xf32>
    %275 = vector.multi_reduction <maximumf>, %274, %cst_125 [1] : vector<8x8xf32> to vector<8xf32>
    %276 = vector.shape_cast %275 : vector<8xf32> to vector<8x1xf32>
    %277 = vector.broadcast %276 : vector<8x1xf32> to vector<8x8xf32>
    %278 = arith.subf %274, %277 : vector<8x8xf32>
    %279 = math.exp %278 : vector<8x8xf32>
    %cst_126 = arith.constant dense<0.000000e+00> : vector<8xf32>
    %280 = vector.multi_reduction <add>, %279, %cst_126 [1] : vector<8x8xf32> to vector<8xf32>
    %281 = vector.shape_cast %280 : vector<8xf32> to vector<8x1xf32>
    %282 = vector.broadcast %281 : vector<8x1xf32> to vector<8x8xf32>
    %283 = arith.divf %279, %282 : vector<8x8xf32>
    %cst_127 = arith.constant dense<0.000000e+00> : vector<8x8xf32>
    %284 = tpu.matmul %283, %271, %cst_127 {dimension_numbers = #tpu.dot_dimension_numbers<[1], [0], [0], [1], [0, 0, 1, 1], [], []>} : vector<8x8xf32>, vector<8x8xf32>, vector<8x8xf32> -> vector<8x8xf32>
    %285 = vector.extract_strided_slice %236 {offsets = [0, 24], sizes = [8, 8], strides = [1, 1]} : vector<8x96xf32> to vector<8x8xf32>
    %286 = vector.extract_strided_slice %236 {offsets = [0, 56], sizes = [8, 8], strides = [1, 1]} : vector<8x96xf32> to vector<8x8xf32>
    %287 = vector.extract_strided_slice %236 {offsets = [0, 88], sizes = [8, 8], strides = [1, 1]} : vector<8x96xf32> to vector<8x8xf32>
    "tpu.trace_start"() <{level = 10 : i32, message = "qd,kd->qk"}> : () -> ()
    %cst_128 = arith.constant dense<0.000000e+00> : vector<8x8xf32>
    %288 = tpu.matmul %285, %286, %cst_128 {dimension_numbers = #tpu.dot_dimension_numbers<[1], [1], [0], [0], [0, 0, 1, 0], [], []>} : vector<8x8xf32>, vector<8x8xf32>, vector<8x8xf32> -> vector<8x8xf32>
    "tpu.trace_stop"() : () -> ()
    %cst_129 = arith.constant 0.353553385 : f32
    %289 = vector.broadcast %cst_129 : f32 to vector<8x8xf32>
    %290 = arith.mulf %288, %289 : vector<8x8xf32>
    %cst_130 = arith.constant dense<0xFF800000> : vector<8xf32>
    %291 = vector.multi_reduction <maximumf>, %290, %cst_130 [1] : vector<8x8xf32> to vector<8xf32>
    %292 = vector.shape_cast %291 : vector<8xf32> to vector<8x1xf32>
    %293 = vector.broadcast %292 : vector<8x1xf32> to vector<8x8xf32>
    %294 = arith.subf %290, %293 : vector<8x8xf32>
    %295 = math.exp %294 : vector<8x8xf32>
    %cst_131 = arith.constant dense<0.000000e+00> : vector<8xf32>
    %296 = vector.multi_reduction <add>, %295, %cst_131 [1] : vector<8x8xf32> to vector<8xf32>
    %297 = vector.shape_cast %296 : vector<8xf32> to vector<8x1xf32>
    %298 = vector.broadcast %297 : vector<8x1xf32> to vector<8x8xf32>
    %299 = arith.divf %295, %298 : vector<8x8xf32>
    %cst_132 = arith.constant dense<0.000000e+00> : vector<8x8xf32>
    %300 = tpu.matmul %299, %287, %cst_132 {dimension_numbers = #tpu.dot_dimension_numbers<[1], [0], [0], [1], [0, 0, 1, 1], [], []>} : vector<8x8xf32>, vector<8x8xf32>, vector<8x8xf32> -> vector<8x8xf32>
    %301 = tpu.concatenate %252, %268, %284, %300 in 1 : vector<8x8xf32>, vector<8x8xf32>, vector<8x8xf32>, vector<8x8xf32> -> vector<8x32xf32>
    %302 = vector.extract_strided_slice %235 {offsets = [8, 0], sizes = [8, 96], strides = [1, 1]} : vector<16x96xf32> to vector<8x96xf32>
    %303 = vector.extract_strided_slice %302 {offsets = [0, 0], sizes = [8, 8], strides = [1, 1]} : vector<8x96xf32> to vector<8x8xf32>
    %304 = vector.extract_strided_slice %302 {offsets = [0, 32], sizes = [8, 8], strides = [1, 1]} : vector<8x96xf32> to vector<8x8xf32>
    %305 = vector.extract_strided_slice %302 {offsets = [0, 64], sizes = [8, 8], strides = [1, 1]} : vector<8x96xf32> to vector<8x8xf32>
    "tpu.trace_start"() <{level = 10 : i32, message = "qd,kd->qk"}> : () -> ()
    %cst_133 = arith.constant dense<0.000000e+00> : vector<8x8xf32>
    %306 = tpu.matmul %303, %304, %cst_133 {dimension_numbers = #tpu.dot_dimension_numbers<[1], [1], [0], [0], [0, 0, 1, 0], [], []>} : vector<8x8xf32>, vector<8x8xf32>, vector<8x8xf32> -> vector<8x8xf32>
    "tpu.trace_stop"() : () -> ()
    %cst_134 = arith.constant 0.353553385 : f32
    %307 = vector.broadcast %cst_134 : f32 to vector<8x8xf32>
    %308 = arith.mulf %306, %307 : vector<8x8xf32>
    %cst_135 = arith.constant dense<0xFF800000> : vector<8xf32>
    %309 = vector.multi_reduction <maximumf>, %308, %cst_135 [1] : vector<8x8xf32> to vector<8xf32>
    %310 = vector.shape_cast %309 : vector<8xf32> to vector<8x1xf32>
    %311 = vector.broadcast %310 : vector<8x1xf32> to vector<8x8xf32>
    %312 = arith.subf %308, %311 : vector<8x8xf32>
    %313 = math.exp %312 : vector<8x8xf32>
    %cst_136 = arith.constant dense<0.000000e+00> : vector<8xf32>
    %314 = vector.multi_reduction <add>, %313, %cst_136 [1] : vector<8x8xf32> to vector<8xf32>
    %315 = vector.shape_cast %314 : vector<8xf32> to vector<8x1xf32>
    %316 = vector.broadcast %315 : vector<8x1xf32> to vector<8x8xf32>
    %317 = arith.divf %313, %316 : vector<8x8xf32>
    %cst_137 = arith.constant dense<0.000000e+00> : vector<8x8xf32>
    %318 = tpu.matmul %317, %305, %cst_137 {dimension_numbers = #tpu.dot_dimension_numbers<[1], [0], [0], [1], [0, 0, 1, 1], [], []>} : vector<8x8xf32>, vector<8x8xf32>, vector<8x8xf32> -> vector<8x8xf32>
    %319 = vector.extract_strided_slice %302 {offsets = [0, 8], sizes = [8, 8], strides = [1, 1]} : vector<8x96xf32> to vector<8x8xf32>
    %320 = vector.extract_strided_slice %302 {offsets = [0, 40], sizes = [8, 8], strides = [1, 1]} : vector<8x96xf32> to vector<8x8xf32>
    %321 = vector.extract_strided_slice %302 {offsets = [0, 72], sizes = [8, 8], strides = [1, 1]} : vector<8x96xf32> to vector<8x8xf32>
    "tpu.trace_start"() <{level = 10 : i32, message = "qd,kd->qk"}> : () -> ()
    %cst_138 = arith.constant dense<0.000000e+00> : vector<8x8xf32>
    %322 = tpu.matmul %319, %320, %cst_138 {dimension_numbers = #tpu.dot_dimension_numbers<[1], [1], [0], [0], [0, 0, 1, 0], [], []>} : vector<8x8xf32>, vector<8x8xf32>, vector<8x8xf32> -> vector<8x8xf32>
    "tpu.trace_stop"() : () -> ()
    %cst_139 = arith.constant 0.353553385 : f32
    %323 = vector.broadcast %cst_139 : f32 to vector<8x8xf32>
    %324 = arith.mulf %322, %323 : vector<8x8xf32>
    %cst_140 = arith.constant dense<0xFF800000> : vector<8xf32>
    %325 = vector.multi_reduction <maximumf>, %324, %cst_140 [1] : vector<8x8xf32> to vector<8xf32>
    %326 = vector.shape_cast %325 : vector<8xf32> to vector<8x1xf32>
    %327 = vector.broadcast %326 : vector<8x1xf32> to vector<8x8xf32>
    %328 = arith.subf %324, %327 : vector<8x8xf32>
    %329 = math.exp %328 : vector<8x8xf32>
    %cst_141 = arith.constant dense<0.000000e+00> : vector<8xf32>
    %330 = vector.multi_reduction <add>, %329, %cst_141 [1] : vector<8x8xf32> to vector<8xf32>
    %331 = vector.shape_cast %330 : vector<8xf32> to vector<8x1xf32>
    %332 = vector.broadcast %331 : vector<8x1xf32> to vector<8x8xf32>
    %333 = arith.divf %329, %332 : vector<8x8xf32>
    %cst_142 = arith.constant dense<0.000000e+00> : vector<8x8xf32>
    %334 = tpu.matmul %333, %321, %cst_142 {dimension_numbers = #tpu.dot_dimension_numbers<[1], [0], [0], [1], [0, 0, 1, 1], [], []>} : vector<8x8xf32>, vector<8x8xf32>, vector<8x8xf32> -> vector<8x8xf32>
    %335 = vector.extract_strided_slice %302 {offsets = [0, 16], sizes = [8, 8], strides = [1, 1]} : vector<8x96xf32> to vector<8x8xf32>
    %336 = vector.extract_strided_slice %302 {offsets = [0, 48], sizes = [8, 8], strides = [1, 1]} : vector<8x96xf32> to vector<8x8xf32>
    %337 = vector.extract_strided_slice %302 {offsets = [0, 80], sizes = [8, 8], strides = [1, 1]} : vector<8x96xf32> to vector<8x8xf32>
    "tpu.trace_start"() <{level = 10 : i32, message = "qd,kd->qk"}> : () -> ()
    %cst_143 = arith.constant dense<0.000000e+00> : vector<8x8xf32>
    %338 = tpu.matmul %335, %336, %cst_143 {dimension_numbers = #tpu.dot_dimension_numbers<[1], [1], [0], [0], [0, 0, 1, 0], [], []>} : vector<8x8xf32>, vector<8x8xf32>, vector<8x8xf32> -> vector<8x8xf32>
    "tpu.trace_stop"() : () -> ()
    %cst_144 = arith.constant 0.353553385 : f32
    %339 = vector.broadcast %cst_144 : f32 to vector<8x8xf32>
    %340 = arith.mulf %338, %339 : vector<8x8xf32>
    %cst_145 = arith.constant dense<0xFF800000> : vector<8xf32>
    %341 = vector.multi_reduction <maximumf>, %340, %cst_145 [1] : vector<8x8xf32> to vector<8xf32>
    %342 = vector.shape_cast %341 : vector<8xf32> to vector<8x1xf32>
    %343 = vector.broadcast %342 : vector<8x1xf32> to vector<8x8xf32>
    %344 = arith.subf %340, %343 : vector<8x8xf32>
    %345 = math.exp %344 : vector<8x8xf32>
    %cst_146 = arith.constant dense<0.000000e+00> : vector<8xf32>
    %346 = vector.multi_reduction <add>, %345, %cst_146 [1] : vector<8x8xf32> to vector<8xf32>
    %347 = vector.shape_cast %346 : vector<8xf32> to vector<8x1xf32>
    %348 = vector.broadcast %347 : vector<8x1xf32> to vector<8x8xf32>
    %349 = arith.divf %345, %348 : vector<8x8xf32>
    %cst_147 = arith.constant dense<0.000000e+00> : vector<8x8xf32>
    %350 = tpu.matmul %349, %337, %cst_147 {dimension_numbers = #tpu.dot_dimension_numbers<[1], [0], [0], [1], [0, 0, 1, 1], [], []>} : vector<8x8xf32>, vector<8x8xf32>, vector<8x8xf32> -> vector<8x8xf32>
    %351 = vector.extract_strided_slice %302 {offsets = [0, 24], sizes = [8, 8], strides = [1, 1]} : vector<8x96xf32> to vector<8x8xf32>
    %352 = vector.extract_strided_slice %302 {offsets = [0, 56], sizes = [8, 8], strides = [1, 1]} : vector<8x96xf32> to vector<8x8xf32>
    %353 = vector.extract_strided_slice %302 {offsets = [0, 88], sizes = [8, 8], strides = [1, 1]} : vector<8x96xf32> to vector<8x8xf32>
    "tpu.trace_start"() <{level = 10 : i32, message = "qd,kd->qk"}> : () -> ()
    %cst_148 = arith.constant dense<0.000000e+00> : vector<8x8xf32>
    %354 = tpu.matmul %351, %352, %cst_148 {dimension_numbers = #tpu.dot_dimension_numbers<[1], [1], [0], [0], [0, 0, 1, 0], [], []>} : vector<8x8xf32>, vector<8x8xf32>, vector<8x8xf32> -> vector<8x8xf32>
    "tpu.trace_stop"() : () -> ()
    %cst_149 = arith.constant 0.353553385 : f32
    %355 = vector.broadcast %cst_149 : f32 to vector<8x8xf32>
    %356 = arith.mulf %354, %355 : vector<8x8xf32>
    %cst_150 = arith.constant dense<0xFF800000> : vector<8xf32>
    %357 = vector.multi_reduction <maximumf>, %356, %cst_150 [1] : vector<8x8xf32> to vector<8xf32>
    %358 = vector.shape_cast %357 : vector<8xf32> to vector<8x1xf32>
    %359 = vector.broadcast %358 : vector<8x1xf32> to vector<8x8xf32>
    %360 = arith.subf %356, %359 : vector<8x8xf32>
    %361 = math.exp %360 : vector<8x8xf32>
    %cst_151 = arith.constant dense<0.000000e+00> : vector<8xf32>
    %362 = vector.multi_reduction <add>, %361, %cst_151 [1] : vector<8x8xf32> to vector<8xf32>
    %363 = vector.shape_cast %362 : vector<8xf32> to vector<8x1xf32>
    %364 = vector.broadcast %363 : vector<8x1xf32> to vector<8x8xf32>
    %365 = arith.divf %361, %364 : vector<8x8xf32>
    %cst_152 = arith.constant dense<0.000000e+00> : vector<8x8xf32>
    %366 = tpu.matmul %365, %353, %cst_152 {dimension_numbers = #tpu.dot_dimension_numbers<[1], [0], [0], [1], [0, 0, 1, 1], [], []>} : vector<8x8xf32>, vector<8x8xf32>, vector<8x8xf32> -> vector<8x8xf32>
    %367 = tpu.concatenate %318, %334, %350, %366 in 1 : vector<8x8xf32>, vector<8x8xf32>, vector<8x8xf32>, vector<8x8xf32> -> vector<8x32xf32>
    %368 = tpu.concatenate %301, %367 in 0 : vector<8x32xf32>, vector<8x32xf32> -> vector<16x32xf32>
    %369 = arith.truncf %368 : vector<16x32xf32> to vector<16x32xbf16>
    %c0_153 = arith.constant 0 : index
    %c1_154 = arith.constant 1 : index
    %c0_155 = arith.constant 0 : index
    %c0_156 = arith.constant 0 : index
    %370 = vector.load %arg4[%c0_153, %c1_154, %c0_155, %c0_156] : memref<1x2x32x32xbf16, #tpu.memory_space<vmem>>, vector<1x1x32x32xbf16>
    %371 = vector.shape_cast %370 : vector<1x1x32x32xbf16> to vector<32x32xbf16>
    %cst_157 = arith.constant dense<0.000000e+00> : vector<16x32xf32>
    %372 = tpu.matmul %369, %371, %cst_157 {dimension_numbers = #tpu.dot_dimension_numbers<[1], [0], [0], [1], [0, 0, 1, 1], [], []>} : vector<16x32xbf16>, vector<32x32xbf16>, vector<16x32xf32> -> vector<16x32xf32>
    %c0_158 = arith.constant 0 : index
    %c1_159 = arith.constant 1 : index
    %c0_160 = arith.constant 0 : index
    %c0_161 = arith.constant 0 : index
    %373 = vector.load %arg5[%c0_158, %c1_159, %c0_160, %c0_161] : memref<1x2x1x32xf32, #tpu.memory_space<vmem>>, vector<1x1x1x32xf32>
    %374 = vector.shape_cast %373 : vector<1x1x1x32xf32> to vector<1x32xf32>
    %375 = vector.broadcast %374 : vector<1x32xf32> to vector<16x32xf32>
    %376 = arith.addf %372, %375 : vector<16x32xf32>
    %377 = arith.addf %376, %227 : vector<16x32xf32>
    %c0_162 = arith.constant 0 : index
    %c1_163 = arith.constant 1 : index
    %c0_164 = arith.constant 0 : index
    %c0_165 = arith.constant 0 : index
    %378 = vector.load %arg6[%c0_162, %c1_163, %c0_164, %c0_165] : memref<1x2x1x32xf32, #tpu.memory_space<vmem>>, vector<1x1x1x32xf32>
    %379 = vector.shape_cast %378 : vector<1x1x1x32xf32> to vector<1x32xf32>
    %c0_166 = arith.constant 0 : index
    %c1_167 = arith.constant 1 : index
    %c0_168 = arith.constant 0 : index
    %c0_169 = arith.constant 0 : index
    %380 = vector.load %arg7[%c0_166, %c1_167, %c0_168, %c0_169] : memref<1x2x1x32xf32, #tpu.memory_space<vmem>>, vector<1x1x1x32xf32>
    %381 = vector.shape_cast %380 : vector<1x1x1x32xf32> to vector<1x32xf32>
    %cst_170 = arith.constant dense<0.000000e+00> : vector<16xf32>
    %382 = vector.multi_reduction <add>, %377, %cst_170 [1] : vector<16x32xf32> to vector<16xf32>
    %383 = vector.shape_cast %382 : vector<16xf32> to vector<16x1xf32>
    %cst_171 = arith.constant 3.200000e+01 : f32
    %384 = vector.broadcast %cst_171 : f32 to vector<16x1xf32>
    %385 = arith.divf %383, %384 : vector<16x1xf32>
    %386 = vector.broadcast %385 : vector<16x1xf32> to vector<16x32xf32>
    %387 = arith.subf %377, %386 : vector<16x32xf32>
    %388 = arith.mulf %387, %387 : vector<16x32xf32>
    %cst_172 = arith.constant dense<0.000000e+00> : vector<16xf32>
    %389 = vector.multi_reduction <add>, %388, %cst_172 [1] : vector<16x32xf32> to vector<16xf32>
    %390 = vector.shape_cast %389 : vector<16xf32> to vector<16x1xf32>
    %cst_173 = arith.constant 3.200000e+01 : f32
    %391 = vector.broadcast %cst_173 : f32 to vector<16x1xf32>
    %392 = arith.divf %390, %391 : vector<16x1xf32>
    %393 = vector.broadcast %385 : vector<16x1xf32> to vector<16x32xf32>
    %394 = arith.subf %377, %393 : vector<16x32xf32>
    %cst_174 = arith.constant 9.99999974E-6 : f32
    %395 = vector.broadcast %cst_174 : f32 to vector<16x1xf32>
    %396 = arith.addf %392, %395 : vector<16x1xf32>
    %397 = math.rsqrt %396 : vector<16x1xf32>
    %398 = vector.broadcast %397 : vector<16x1xf32> to vector<16x32xf32>
    %399 = arith.mulf %394, %398 : vector<16x32xf32>
    %400 = vector.broadcast %379 : vector<1x32xf32> to vector<16x32xf32>
    %401 = arith.mulf %399, %400 : vector<16x32xf32>
    %402 = vector.broadcast %381 : vector<1x32xf32> to vector<16x32xf32>
    %403 = arith.addf %401, %402 : vector<16x32xf32>
    %404 = arith.truncf %403 : vector<16x32xf32> to vector<16x32xbf16>
    %c0_175 = arith.constant 0 : index
    %c1_176 = arith.constant 1 : index
    %c0_177 = arith.constant 0 : index
    %c0_178 = arith.constant 0 : index
    %405 = vector.load %arg8[%c0_175, %c1_176, %c0_177, %c0_178] : memref<1x2x32x128xbf16, #tpu.memory_space<vmem>>, vector<1x1x32x128xbf16>
    %406 = vector.shape_cast %405 : vector<1x1x32x128xbf16> to vector<32x128xbf16>
    %cst_179 = arith.constant dense<0.000000e+00> : vector<16x128xf32>
    %407 = tpu.matmul %404, %406, %cst_179 {dimension_numbers = #tpu.dot_dimension_numbers<[1], [0], [0], [1], [0, 0, 1, 1], [], []>} : vector<16x32xbf16>, vector<32x128xbf16>, vector<16x128xf32> -> vector<16x128xf32>
    %c0_180 = arith.constant 0 : index
    %c1_181 = arith.constant 1 : index
    %c0_182 = arith.constant 0 : index
    %c0_183 = arith.constant 0 : index
    %408 = vector.load %arg9[%c0_180, %c1_181, %c0_182, %c0_183] : memref<1x2x1x128xf32, #tpu.memory_space<vmem>>, vector<1x1x1x128xf32>
    %409 = vector.shape_cast %408 : vector<1x1x1x128xf32> to vector<1x128xf32>
    %410 = vector.broadcast %409 : vector<1x128xf32> to vector<16x128xf32>
    %411 = arith.addf %407, %410 : vector<16x128xf32>
    %cst_184 = arith.constant 5.000000e-01 : f32
    %412 = vector.broadcast %cst_184 : f32 to vector<16x128xf32>
    %413 = arith.mulf %412, %411 : vector<16x128xf32>
    %cst_185 = arith.constant 0.707106769 : f32
    %414 = vector.broadcast %cst_185 : f32 to vector<16x128xf32>
    %415 = arith.mulf %411, %414 : vector<16x128xf32>
    %416 = math.erf %415 : vector<16x128xf32>
    %cst_186 = arith.constant 1.000000e+00 : f32
    %417 = vector.broadcast %cst_186 : f32 to vector<16x128xf32>
    %418 = arith.addf %417, %416 : vector<16x128xf32>
    %419 = arith.mulf %413, %418 : vector<16x128xf32>
    %420 = arith.truncf %419 : vector<16x128xf32> to vector<16x128xbf16>
    %c0_187 = arith.constant 0 : index
    %c1_188 = arith.constant 1 : index
    %c0_189 = arith.constant 0 : index
    %c0_190 = arith.constant 0 : index
    %421 = vector.load %arg10[%c0_187, %c1_188, %c0_189, %c0_190] : memref<1x2x128x32xbf16, #tpu.memory_space<vmem>>, vector<1x1x128x32xbf16>
    %422 = vector.shape_cast %421 : vector<1x1x128x32xbf16> to vector<128x32xbf16>
    %cst_191 = arith.constant dense<0.000000e+00> : vector<16x32xf32>
    %423 = tpu.matmul %420, %422, %cst_191 {dimension_numbers = #tpu.dot_dimension_numbers<[1], [0], [0], [1], [0, 0, 1, 1], [], []>} : vector<16x128xbf16>, vector<128x32xbf16>, vector<16x32xf32> -> vector<16x32xf32>
    %c0_192 = arith.constant 0 : index
    %c1_193 = arith.constant 1 : index
    %c0_194 = arith.constant 0 : index
    %c0_195 = arith.constant 0 : index
    %424 = vector.load %arg11[%c0_192, %c1_193, %c0_194, %c0_195] : memref<1x2x1x32xf32, #tpu.memory_space<vmem>>, vector<1x1x1x32xf32>
    %425 = vector.shape_cast %424 : vector<1x1x1x32xf32> to vector<1x32xf32>
    %426 = vector.broadcast %425 : vector<1x32xf32> to vector<16x32xf32>
    %427 = arith.addf %423, %426 : vector<16x32xf32>
    %428 = arith.addf %427, %403 : vector<16x32xf32>
    %c0_196 = arith.constant 0 : index
    %c1_197 = arith.constant 1 : index
    %c0_198 = arith.constant 0 : index
    %c0_199 = arith.constant 0 : index
    %429 = vector.load %arg12[%c0_196, %c1_197, %c0_198, %c0_199] : memref<1x2x1x32xf32, #tpu.memory_space<vmem>>, vector<1x1x1x32xf32>
    %430 = vector.shape_cast %429 : vector<1x1x1x32xf32> to vector<1x32xf32>
    %c0_200 = arith.constant 0 : index
    %c1_201 = arith.constant 1 : index
    %c0_202 = arith.constant 0 : index
    %c0_203 = arith.constant 0 : index
    %431 = vector.load %arg13[%c0_200, %c1_201, %c0_202, %c0_203] : memref<1x2x1x32xf32, #tpu.memory_space<vmem>>, vector<1x1x1x32xf32>
    %432 = vector.shape_cast %431 : vector<1x1x1x32xf32> to vector<1x32xf32>
    %cst_204 = arith.constant dense<0.000000e+00> : vector<16xf32>
    %433 = vector.multi_reduction <add>, %428, %cst_204 [1] : vector<16x32xf32> to vector<16xf32>
    %434 = vector.shape_cast %433 : vector<16xf32> to vector<16x1xf32>
    %cst_205 = arith.constant 3.200000e+01 : f32
    %435 = vector.broadcast %cst_205 : f32 to vector<16x1xf32>
    %436 = arith.divf %434, %435 : vector<16x1xf32>
    %437 = vector.broadcast %436 : vector<16x1xf32> to vector<16x32xf32>
    %438 = arith.subf %428, %437 : vector<16x32xf32>
    %439 = arith.mulf %438, %438 : vector<16x32xf32>
    %cst_206 = arith.constant dense<0.000000e+00> : vector<16xf32>
    %440 = vector.multi_reduction <add>, %439, %cst_206 [1] : vector<16x32xf32> to vector<16xf32>
    %441 = vector.shape_cast %440 : vector<16xf32> to vector<16x1xf32>
    %cst_207 = arith.constant 3.200000e+01 : f32
    %442 = vector.broadcast %cst_207 : f32 to vector<16x1xf32>
    %443 = arith.divf %441, %442 : vector<16x1xf32>
    %444 = vector.broadcast %436 : vector<16x1xf32> to vector<16x32xf32>
    %445 = arith.subf %428, %444 : vector<16x32xf32>
    %cst_208 = arith.constant 9.99999974E-6 : f32
    %446 = vector.broadcast %cst_208 : f32 to vector<16x1xf32>
    %447 = arith.addf %443, %446 : vector<16x1xf32>
    %448 = math.rsqrt %447 : vector<16x1xf32>
    %449 = vector.broadcast %448 : vector<16x1xf32> to vector<16x32xf32>
    %450 = arith.mulf %445, %449 : vector<16x32xf32>
    %451 = vector.broadcast %430 : vector<1x32xf32> to vector<16x32xf32>
    %452 = arith.mulf %450, %451 : vector<16x32xf32>
    %453 = vector.broadcast %432 : vector<1x32xf32> to vector<16x32xf32>
    %454 = arith.addf %452, %453 : vector<16x32xf32>
    %c0_209 = arith.constant 0 : index
    %c0_210 = arith.constant 0 : index
    %c0_211 = arith.constant 0 : index
    %455 = vector.load %arg14[%c0_209, %c0_210, %c0_211] : memref<1x16x32xf32, #tpu.memory_space<vmem>>, vector<1x16x32xf32>
    %456 = vector.shape_cast %455 : vector<1x16x32xf32> to vector<16x32xf32>
    %457 = vector.shape_cast %454 : vector<16x32xf32> to vector<1x16x32xf32>
    tpu.vector_store %arg14[%c0_209, %c0_210, %c0_211], %457 {strides = array<i32>} : memref<1x16x32xf32, #tpu.memory_space<vmem>>, vector<1x16x32xf32>,
    return
  }
  func.func @transform_0(%arg0: i32) -> (i32, i32) {
    %c0_i32 = arith.constant 0 : i32
    %c0_i32_0 = arith.constant 0 : i32
    %c0_i32_1 = arith.constant 0 : i32
    return %c0_i32, %c0_i32_0 : i32, i32
  }
  func.func @transform_1(%arg0: i32) -> (i32, i32, i32, i32) {
    %c0_i32 = arith.constant 0 : i32
    %c0_i32_0 = arith.constant 0 : i32
    %c0_i32_1 = arith.constant 0 : i32
    %c0_i32_2 = arith.constant 0 : i32
    return %arg0, %c0_i32, %c0_i32_0, %c0_i32_1 : i32, i32, i32, i32
  }
  func.func @transform_2(%arg0: i32) -> (i32, i32, i32, i32) {
    %c0_i32 = arith.constant 0 : i32
    %c0_i32_0 = arith.constant 0 : i32
    %c0_i32_1 = arith.constant 0 : i32
    %c0_i32_2 = arith.constant 0 : i32
    return %arg0, %c0_i32, %c0_i32_0, %c0_i32_1 : i32, i32, i32, i32
  }
  func.func @transform_3(%arg0: i32) -> (i32, i32, i32, i32) {
    %c0_i32 = arith.constant 0 : i32
    %c0_i32_0 = arith.constant 0 : i32
    %c0_i32_1 = arith.constant 0 : i32
    %c0_i32_2 = arith.constant 0 : i32
    return %arg0, %c0_i32, %c0_i32_0, %c0_i32_1 : i32, i32, i32, i32
  }
  func.func @transform_4(%arg0: i32) -> (i32, i32, i32, i32) {
    %c0_i32 = arith.constant 0 : i32
    %c0_i32_0 = arith.constant 0 : i32
    %c0_i32_1 = arith.constant 0 : i32
    %c0_i32_2 = arith.constant 0 : i32
    return %arg0, %c0_i32, %c0_i32_0, %c0_i32_1 : i32, i32, i32, i32
  }
  func.func @transform_5(%arg0: i32) -> (i32, i32, i32, i32) {
    %c0_i32 = arith.constant 0 : i32
    %c0_i32_0 = arith.constant 0 : i32
    %c0_i32_1 = arith.constant 0 : i32
    %c0_i32_2 = arith.constant 0 : i32
    return %arg0, %c0_i32, %c0_i32_0, %c0_i32_1 : i32, i32, i32, i32
  }
  func.func @transform_6(%arg0: i32) -> (i32, i32, i32, i32) {
    %c0_i32 = arith.constant 0 : i32
    %c0_i32_0 = arith.constant 0 : i32
    %c0_i32_1 = arith.constant 0 : i32
    %c0_i32_2 = arith.constant 0 : i32
    return %arg0, %c0_i32, %c0_i32_0, %c0_i32_1 : i32, i32, i32, i32
  }
  func.func @transform_7(%arg0: i32) -> (i32, i32, i32, i32) {
    %c0_i32 = arith.constant 0 : i32
    %c0_i32_0 = arith.constant 0 : i32
    %c0_i32_1 = arith.constant 0 : i32
    %c0_i32_2 = arith.constant 0 : i32
    return %arg0, %c0_i32, %c0_i32_0, %c0_i32_1 : i32, i32, i32, i32
  }
  func.func @transform_8(%arg0: i32) -> (i32, i32, i32, i32) {
    %c0_i32 = arith.constant 0 : i32
    %c0_i32_0 = arith.constant 0 : i32
    %c0_i32_1 = arith.constant 0 : i32
    %c0_i32_2 = arith.constant 0 : i32
    return %arg0, %c0_i32, %c0_i32_0, %c0_i32_1 : i32, i32, i32, i32
  }
  func.func @transform_9(%arg0: i32) -> (i32, i32, i32, i32) {
    %c0_i32 = arith.constant 0 : i32
    %c0_i32_0 = arith.constant 0 : i32
    %c0_i32_1 = arith.constant 0 : i32
    %c0_i32_2 = arith.constant 0 : i32
    return %arg0, %c0_i32, %c0_i32_0, %c0_i32_1 : i32, i32, i32, i32
  }
  func.func @transform_10(%arg0: i32) -> (i32, i32, i32, i32) {
    %c0_i32 = arith.constant 0 : i32
    %c0_i32_0 = arith.constant 0 : i32
    %c0_i32_1 = arith.constant 0 : i32
    %c0_i32_2 = arith.constant 0 : i32
    return %arg0, %c0_i32, %c0_i32_0, %c0_i32_1 : i32, i32, i32, i32
  }
  func.func @transform_11(%arg0: i32) -> (i32, i32, i32, i32) {
    %c0_i32 = arith.constant 0 : i32
    %c0_i32_0 = arith.constant 0 : i32
    %c0_i32_1 = arith.constant 0 : i32
    %c0_i32_2 = arith.constant 0 : i32
    return %arg0, %c0_i32, %c0_i32_0, %c0_i32_1 : i32, i32, i32, i32
  }
  func.func @transform_12(%arg0: i32) -> (i32, i32, i32, i32) {
    %c0_i32 = arith.constant 0 : i32
    %c0_i32_0 = arith.constant 0 : i32
    %c0_i32_1 = arith.constant 0 : i32
    %c0_i32_2 = arith.constant 0 : i32
    return %arg0, %c0_i32, %c0_i32_0, %c0_i32_1 : i32, i32, i32, i32
  }
  func.func @transform_13(%arg0: i32) -> (i32, i32, i32) {
    %c0_i32 = arith.constant 0 : i32
    %c0_i32_0 = arith.constant 0 : i32
    %c0_i32_1 = arith.constant 0 : i32
    return %arg0, %c0_i32, %c0_i32_0 : i32, i32, i32
  }
}

</mosaic_0001>

<llo_original>
// kernel: forward.3
$region0: #{forward.3}
  #allocation0 [shape = 'u32[]', space=smem, size = 0x4, offset = 0x4, fixed_abs, tag = 'smem constant byte address 0x4 - core index']
  #allocation1 [shape = 'u32[144,128]{1,0:T(1,128)}', space=vmem, size = 0x12000, scoped, tag = 'internal scratch']
  %s0 = inlined_call_operand.vmem [shape: f32[2,32], index: 0, kind: input, shape index: {}]
  %s1 = inlined_call_operand.vmem [shape: bf16[32,128], index: 1, kind: input, shape index: {}]
  %s2 = inlined_call_operand.vmem [shape: f32[1,128], index: 2, kind: input, shape index: {}]
  %s3 = inlined_call_operand.vmem [shape: bf16[128,32], index: 3, kind: input, shape index: {}]
  %s4 = inlined_call_operand.vmem [shape: f32[1,32], index: 4, kind: input, shape index: {}]
  %s5 = inlined_call_operand.vmem [shape: f32[2,8,32], index: 5, kind: input, shape index: {}]
  %s6 = inlined_call_operand.vmem [shape: f32[1,8,32], index: 6, kind: input, shape index: {}]
  %s7 = inlined_call_operand.vmem [shape: f32[16,32], index: 7, kind: output, shape index: {}]
  %s8 = sld [smem:[#allocation0]]
  $region38: #{forward.3} parent=0
    _
  %s10 = ssub.s32 1, %s8
  %s11 = scalar_select 0, %s10, %s8
  // Predicated region
  $region2: #{forward.3} parent=0 // pred_check
    _
  $region3: #{forward.3} parent=0 // pred_check_branch
    %13 = sbr.rel (0) target = $region5
  $region4: #{forward.3} parent=0 // pred_region
    _
  $region5: #{forward.3} parent=0 // pred_fallthru
    _
  // Predicated region
  $region6: #{forward.3} parent=0 // pred_check
    _
  $region7: #{forward.3} parent=0 // pred_check_branch
    %15 = sbr.rel (0) target = $region9
  $region8: #{forward.3} parent=0 // pred_region
    _
  $region9: #{forward.3} parent=0 // pred_fallthru
    _
  // Predicated region
  $region10: #{forward.3} parent=0 // pred_check
    _
  $region11: #{forward.3} parent=0 // pred_check_branch
    %17 = sbr.rel (0) target = $region13
  $region12: #{forward.3} parent=0 // pred_region
    _
  $region13: #{forward.3} parent=0 // pred_fallthru
    _
  // Predicated region
  $region14: #{forward.3} parent=0 // pred_check
    _
  $region15: #{forward.3} parent=0 // pred_check_branch
    %19 = sbr.rel (0) target = $region17
  $region16: #{forward.3} parent=0 // pred_region
    _
  $region17: #{forward.3} parent=0 // pred_fallthru
    _
  // Predicated region
  $region18: #{forward.3} parent=0 // pred_check
    _
  $region19: #{forward.3} parent=0 // pred_check_branch
    %21 = sbr.rel (0) target = $region21
  $region20: #{forward.3} parent=0 // pred_region
    _
  $region21: #{forward.3} parent=0 // pred_fallthru
    _
  // Predicated region
  $region22: #{forward.3} parent=0 // pred_check
    _
  $region23: #{forward.3} parent=0 // pred_check_branch
    %23 = sbr.rel (0) target = $region25
  $region24: #{forward.3} parent=0 // pred_region
    _
  $region25: #{forward.3} parent=0 // pred_fallthru
    _
  // Predicated region
  $region26: #{forward.3} parent=0 // pred_check
    _
  $region27: #{forward.3} parent=0 // pred_check_branch
    %25 = sbr.rel (0) target = $region29
  $region28: #{forward.3} parent=0 // pred_region
    _
  $region29: #{forward.3} parent=0 // pred_fallthru
    _
  %v27 = vld [vmem:[%s0] sm:$0x3]
  %v28 = vpack.c.bf16 %v27, %v27
  %v29 = vld [vmem:[%s1] sm:$0xf]
  %v30 = vld [vmem:[%s1 + $0x4] sm:$0xf]
  %v31 = vld [vmem:[%s1 + $0x8] sm:$0xf]
  %v32 = vld [vmem:[%s1 + $0xc] sm:$0xf]
  %v33 = vld [vmem:[%s2] sm:$0x1]
  %v35 = vlaneseq
  %v36 = vshrl.u32 %v35, 7
  %v37 = vsub.s32 0, %v36
  %v38 = vrot.slane %v33, %v37
  %v44 = vunpack.c.l.b16 %v29
  %v45 = vunpack.c.l.b16 %v30
  %v46 = vunpack.c.l.b16 %v31
  %v47 = vunpack.c.l.b16 %v32
  %v48 = vpack.c.b16 %v45, %v44
  %v49 = vpack.c.b16 %v47, %v46
  %vm52 = vcmask 261120
  %v54 = vsel %vm52, %v28, 0
  %56 = vmatprep.subr.bf16.mxu0 0
  %57 = vmatpush1.bf16.msra.mxu0 0
  %58 = vmatprep.subr.bf16.mxu0 0
  %59 = vmatpush1.bf16.msra.mxu0 0
  %60 = vmatprep.subr.bf16.mxu0 0
  %61 = vmatpush1.bf16.msra.mxu0 0
  %62 = vmatprep.subr.bf16.mxu0 0
  %63 = vmatpush1.bf16.msra.mxu0 0
  %64 = vmatprep.subr.bf16.mxu0 0
  %65 = vmatpush1.bf16.msra.mxu0 0
  %66 = vmatprep.subr.bf16.mxu0 0
  %67 = vmatpush1.bf16.msra.mxu0 0
  %68 = vmatprep.subr.bf16.mxu0 0
  %69 = vmatpush1.bf16.msra.mxu0 %v49
  %70 = vmatprep.subr.bf16.mxu0 0
  %71 = vmatpush1.bf16.msra.mxu0 %v48
  %72 = vmatprep.subr.bf16.mxu0 0
  %73 = vmatpush2.bf16.msra.mxu0 0
  %74 = vmatprep.subr.bf16.mxu0 0
  %75 = vmatpush2.bf16.msra.mxu0 0
  %76 = vmatprep.subr.bf16.mxu0 0
  %77 = vmatpush2.bf16.msra.mxu0 0
  %78 = vmatprep.subr.bf16.mxu0 0
  %79 = vmatpush2.bf16.msra.mxu0 0
  %80 = vmatprep.subr.bf16.mxu0 0
  %81 = vmatpush2.bf16.msra.mxu0 0
  %82 = vmatprep.subr.bf16.mxu0 0
  %83 = vmatpush2.bf16.msra.mxu0 0
  %84 = vmatprep.subr.bf16.mxu0 0
  %85 = vmatpush2.bf16.msra.mxu0 0
  %86 = vmatprep.subr.bf16.mxu0 0
  %87 = vmatpush2.bf16.msra.mxu0 0
  %88 = vmatprep.mubr.bf16.mxu0 0
  %89 = vmatmul.mubr.bf16.gmra.mxu0 %v54
  %v90 = vpop.f32.mrf.mxu0
  %v91 = vadd.f32 %v38, %v90
  %v92 = vpop.f32.mrf.mxu0
  %v93 = vpop.f32.mrf.mxu0
  %v94 = vpop.f32.mrf.mxu0
  %95 = vdwg.mxu0
  %v96 = vxor.u32 %v91, 2147483648
  %v97 = vmul.f32 %v96, 1.442695
  %v98 = vpow.pop %v97
  %v99 = vadd.f32 %v98, 1.0
  %v100 = vrcp.pop %v99
  %v101 = vmul.f32 1.0, %v100
  %v102 = vmul.f32 %v91, %v101
  %v103 = vpack.c.bf16 %v102, %v102
  %v104 = vld [vmem:[%s3] sm:$0xf]
  %v105 = vld [vmem:[%s3 + $0x4] sm:$0xf]
  %v106 = vld [vmem:[%s3 + $0x8] sm:$0xf]
  %v107 = vld [vmem:[%s3 + $0xc] sm:$0xf]
  %v108 = vld [vmem:[%s3 + $0x10] sm:$0xf]
  %v109 = vld [vmem:[%s3 + $0x14] sm:$0xf]
  %v110 = vld [vmem:[%s3 + $0x18] sm:$0xf]
  %v111 = vld [vmem:[%s3 + $0x1c] sm:$0xf]
  %v112 = vld [vmem:[%s3 + $0x20] sm:$0xf]
  %v113 = vld [vmem:[%s3 + $0x24] sm:$0xf]
  %v114 = vld [vmem:[%s3 + $0x28] sm:$0xf]
  %v115 = vld [vmem:[%s3 + $0x2c] sm:$0xf]
  %v116 = vld [vmem:[%s3 + $0x30] sm:$0xf]
  %v117 = vld [vmem:[%s3 + $0x34] sm:$0xf]
  %v118 = vld [vmem:[%s3 + $0x38] sm:$0xf]
  %v119 = vld [vmem:[%s3 + $0x3c] sm:$0xf]
  %v120 = vld [vmem:[%s4] sm:$0x1]
  %v122 = vlaneseq
  %v123 = vshrl.u32 %v122, 7
  %v124 = vsub.s32 0, %v123
  %v125 = vrot.slane %v120, %v124
  %v143 = vunpack.c.l.b16 %v104
  %v144 = vunpack.c.l.b16 %v105
  %v145 = vunpack.c.l.b16 %v106
  %v146 = vunpack.c.l.b16 %v107
  %v147 = vunpack.c.l.b16 %v108
  %v148 = vunpack.c.l.b16 %v109
  %v149 = vunpack.c.l.b16 %v110
  %v150 = vunpack.c.l.b16 %v111
  %v151 = vunpack.c.l.b16 %v112
  %v152 = vunpack.c.l.b16 %v113
  %v153 = vunpack.c.l.b16 %v114
  %v154 = vunpack.c.l.b16 %v115
  %v155 = vunpack.c.l.b16 %v116
  %v156 = vunpack.c.l.b16 %v117
  %v157 = vunpack.c.l.b16 %v118
  %v158 = vunpack.c.l.b16 %v119
  %v159 = vpack.c.b16 %v144, %v143
  %v160 = vpack.c.b16 %v146, %v145
  %v161 = vpack.c.b16 %v148, %v147
  %v162 = vpack.c.b16 %v150, %v149
  %v163 = vpack.c.b16 %v152, %v151
  %v164 = vpack.c.b16 %v154, %v153
  %v165 = vpack.c.b16 %v156, %v155
  %v166 = vpack.c.b16 %v158, %v157
  %175 = vmatprep.subr.bf16.mxu0 0
  %176 = vmatpush1.bf16.msra.mxu0 %v166
  %177 = vmatprep.subr.bf16.mxu0 0
  %178 = vmatpush1.bf16.msra.mxu0 %v165
  %179 = vmatprep.subr.bf16.mxu0 0
  %180 = vmatpush1.bf16.msra.mxu0 %v164
  %181 = vmatprep.subr.bf16.mxu0 0
  %182 = vmatpush1.bf16.msra.mxu0 %v163
  %183 = vmatprep.subr.bf16.mxu0 0
  %184 = vmatpush1.bf16.msra.mxu0 %v162
  %185 = vmatprep.subr.bf16.mxu0 0
  %186 = vmatpush1.bf16.msra.mxu0 %v161
  %187 = vmatprep.subr.bf16.mxu0 0
  %188 = vmatpush1.bf16.msra.mxu0 %v160
  %189 = vmatprep.subr.bf16.mxu0 0
  %190 = vmatpush1.bf16.msra.mxu0 %v159
  %191 = vmatprep.subr.bf16.mxu0 0
  %192 = vmatpush2.bf16.msra.mxu0 0
  %193 = vmatprep.subr.bf16.mxu0 0
  %194 = vmatpush2.bf16.msra.mxu0 0
  %195 = vmatprep.subr.bf16.mxu0 0
  %196 = vmatpush2.bf16.msra.mxu0 0
  %197 = vmatprep.subr.bf16.mxu0 0
  %198 = vmatpush2.bf16.msra.mxu0 0
  %199 = vmatprep.subr.bf16.mxu0 0
  %200 = vmatpush2.bf16.msra.mxu0 0
  %201 = vmatprep.subr.bf16.mxu0 0
  %202 = vmatpush2.bf16.msra.mxu0 0
  %203 = vmatprep.subr.bf16.mxu0 0
  %204 = vmatpush2.bf16.msra.mxu0 0
  %205 = vmatprep.subr.bf16.mxu0 0
  %206 = vmatpush2.bf16.msra.mxu0 0
  %207 = vmatprep.mubr.bf16.mxu0 0
  %208 = vmatmul.mubr.bf16.gmra.mxu0 %v103
  %v209 = vpop.f32.mrf.mxu0
  %v210 = vadd.f32 %v125, %v209
  %v211 = vpop.f32.mrf.mxu0
  %v212 = vpop.f32.mrf.mxu0
  %v213 = vpop.f32.mrf.mxu0
  %214 = vdwg.mxu0
  %v215 = vld [vmem:[%s5] sm:$0xff]
  %v216 = vld [vmem:[%s5 + $0x8] sm:$0xff]
  %v217 = vld [vmem:[%s6] sm:$0xff]
  %v218 = vadd.f32 %v215, %v217
  %v219 = vadd.f32 %v216, %v217
  %v222 = vunpack.c.l.s4 1966171168
  %v223 = vunpack.c.0.s8 %v222
  %v224 = vlaneseq
  %v225 = vshrl.u32 %v224, 7
  %v226 = vsub.s32 %v223, %v225
  %v227 = vrot.slane %v210, %v226
  %v228 = vcombine.high %v227, %v227
  %v230 = vunpack.c.l.s4 1966171168
  %v231 = vunpack.c.0.s8 %v230
  %v232 = vlaneseq
  %v233 = vshrl.u32 %v232, 7
  %v234 = vsub.s32 %v231, %v233
  %v235 = vrot.slane %v227, %v234
  %v237 = vunpack.c.l.s4 1966171168
  %v238 = vunpack.c.0.s8 %v237
  %v239 = vlaneseq
  %v240 = vshrl.u32 %v239, 7
  %v241 = vsub.s32 %v238, %v240
  %v242 = vrot.slane %v228, %v241
  %v243 = vlaneseq
  %v244 = vshrl.u32 %v243, 7
  %v245 = vsub.s32 0, %v244
  %v246 = vrot.slane %v235, %v245
  %v247 = vlaneseq
  %v248 = vshrl.u32 %v247, 7
  %v249 = vsub.s32 0, %v248
  %v250 = vrot.slane %v242, %v249
  %v253 = vadd.f32 %v218, %v246
  %v254 = vadd.f32 %v219, %v250
  %255 = vst.msk [vmem:[%s7] sm:$0xff] %vm52, %v253
  %256 = vst.msk [vmem:[%s7 + $0x8] sm:$0xff] %vm52, %v254
  // Predicated region
  $region30: #{forward.3} parent=0 // pred_check
    _
  $region31: #{forward.3} parent=0 // pred_check_branch
    %258 = sbr.rel (0) target = $region33
  $region32: #{forward.3} parent=0 // pred_region
    _
  $region33: #{forward.3} parent=0 // pred_fallthru
    _
  // Predicated region
  $region34: #{forward.3} parent=0 // pred_check
    _
  $region35: #{forward.3} parent=0 // pred_check_branch
    %260 = sbr.rel (0) target = $region37
  $region36: #{forward.3} parent=0 // pred_region
    _
  $region37: #{forward.3} parent=0 // pred_fallthru
    _

// kernel: forward.5
$region0: #{forward.5}
  #allocation0 [shape = 'u32[]', space=smem, size = 0x4, offset = 0x4, fixed_abs, tag = 'smem constant byte address 0x4 - core index']
  #allocation1 [shape = 'u32[144,128]{1,0:T(1,128)}', space=vmem, size = 0x12000, scoped, tag = 'internal scratch']
  %s0 = inlined_call_operand.vmem [shape: f32[2,16,32], index: 0, kind: input, shape index: {}]
  %s1 = inlined_call_operand.vmem [shape: bf16[64,32], index: 1, kind: input, shape index: {}]
  %s2 = inlined_call_operand.vmem [shape: f32[1,32], index: 2, kind: input, shape index: {}]
  %s3 = inlined_call_operand.vmem [shape: bf16[32,2], index: 3, kind: input, shape index: {}]
  %s4 = inlined_call_operand.vmem [shape: f32[1,2], index: 4, kind: input, shape index: {}]
  %s5 = inlined_call_operand.vmem [shape: bf16[32,32], index: 5, kind: input, shape index: {}]
  %s6 = inlined_call_operand.vmem [shape: f32[1,32], index: 6, kind: input, shape index: {}]
  %s7 = inlined_call_operand.hbm [shape: f32[16,32], index: 7, kind: output, shape index: {}]
  %s8 = sld [smem:[#allocation0]]
  $region38: #{forward.5} parent=0
    _
  %s10 = ssub.s32 1, %s8
  %s11 = scalar_select 0, %s10, %s8
  $region1: #{forward.5} parent=0
    #allocation2 [shape = 'u8[8192]{0}', space=vmem, size = 0x2000, scoped, tag = 'output window, operand 0, single buffered']
    #allocation3 [shape = 's32[1]{0}', space=sflag, size = 0x4, scoped, tag = 'scoped memory for forward.5']
    %12 = vsyncpa [#allocation3], 0
    // Predicated region
    $region2: #{forward.5} parent=1 // pred_check
      _
    $region3: #{forward.5} parent=1 // pred_check_branch
      %14 = sbr.rel (0) target = $region5
    $region4: #{forward.5} parent=1 // pred_region
      _
    $region5: #{forward.5} parent=1 // pred_fallthru
      _
    // Predicated region
    $region6: #{forward.5} parent=1 // pred_check
      _
    $region7: #{forward.5} parent=1 // pred_check_branch
      %16 = sbr.rel (0) target = $region9
    $region8: #{forward.5} parent=1 // pred_region
      _
    $region9: #{forward.5} parent=1 // pred_fallthru
      _
    // Predicated region
    $region10: #{forward.5} parent=1 // pred_check
      _
    $region11: #{forward.5} parent=1 // pred_check_branch
      %18 = sbr.rel (0) target = $region13
    $region12: #{forward.5} parent=1 // pred_region
      _
    $region13: #{forward.5} parent=1 // pred_fallthru
      _
    // Predicated region
    $region14: #{forward.5} parent=1 // pred_check
      _
    $region15: #{forward.5} parent=1 // pred_check_branch
      %20 = sbr.rel (0) target = $region17
    $region16: #{forward.5} parent=1 // pred_region
      _
    $region17: #{forward.5} parent=1 // pred_fallthru
      _
    // Predicated region
    $region18: #{forward.5} parent=1 // pred_check
      _
    $region19: #{forward.5} parent=1 // pred_check_branch
      %22 = sbr.rel (0) target = $region21
    $region20: #{forward.5} parent=1 // pred_region
      _
    $region21: #{forward.5} parent=1 // pred_fallthru
      _
    // Predicated region
    $region22: #{forward.5} parent=1 // pred_check
      _
    $region23: #{forward.5} parent=1 // pred_check_branch
      %24 = sbr.rel (0) target = $region25
    $region24: #{forward.5} parent=1 // pred_region
      _
    $region25: #{forward.5} parent=1 // pred_fallthru
      _
    // Predicated region
    $region26: #{forward.5} parent=1 // pred_check
      _
    $region27: #{forward.5} parent=1 // pred_check_branch
      %26 = sbr.rel (0) target = $region29
    $region28: #{forward.5} parent=1 // pred_region
      _
    $region29: #{forward.5} parent=1 // pred_fallthru
      _
    %v28 = vld [vmem:[%s0] sm:$0xff]
    %v29 = vld [vmem:[%s0 + $0x8] sm:$0xff]
    %v30 = vld [vmem:[%s0 + $0x10] sm:$0xff]
    %v31 = vld [vmem:[%s0 + $0x18] sm:$0xff]
    %vm32 = vcmask 261120
    %v33 = vsel %vm32, %v28, 0.0
    %v34 = vrot.slane %v33, 4
    %v35 = vadd.f32 %v33, %v34
    %v36 = vrot.slane %v35, 2
    %v37 = vadd.f32 %v35, %v36
    %v38 = vrot.slane %v37, 1
    %v39 = vadd.f32 %v37, %v38
    %v40 = vrcp.pop 8.0
    %v41 = vmul.f32 %v39, %v40
    %v42 = vsel %vm32, %v30, 0.0
    %v43 = vrot.slane %v42, 4
    %v44 = vadd.f32 %v42, %v43
    %v45 = vrot.slane %v44, 2
    %v46 = vadd.f32 %v44, %v45
    %v47 = vrot.slane %v46, 1
    %v48 = vadd.f32 %v46, %v47
    %v49 = vmul.f32 %v48, %v40
    %51 = vrot.lane.b32.xlu0 %v49, 32
    %v52 = vpop.permute.xlu0 %51
    %v54 = vsel %vm32, %v41, %v52
    %v55 = vsel %vm32, %v29, 0.0
    %v56 = vrot.slane %v55, 4
    %v57 = vadd.f32 %v55, %v56
    %v58 = vrot.slane %v57, 2
    %v59 = vadd.f32 %v57, %v58
    %v60 = vrot.slane %v59, 1
    %v61 = vadd.f32 %v59, %v60
    %v62 = vmul.f32 %v61, %v40
    %v63 = vsel %vm32, %v31, 0.0
    %v64 = vrot.slane %v63, 4
    %v65 = vadd.f32 %v63, %v64
    %v66 = vrot.slane %v65, 2
    %v67 = vadd.f32 %v65, %v66
    %v68 = vrot.slane %v67, 1
    %v69 = vadd.f32 %v67, %v68
    %v70 = vmul.f32 %v69, %v40
    %72 = vrot.lane.b32.xlu0 %v70, 32
    %v73 = vpop.permute.xlu0 %72
    %v75 = vsel %vm32, %v62, %v73
    %v77 = vrot.slane %v75, 7
    %vm79 = vcmask 1040384
    %v80 = vsel %vm79, %v54, %v77
    %v81 = vpack.c.bf16 %v80, %v80
    %v82 = vld [vmem:[%s1] sm:$0xf]
    %v83 = vld [vmem:[%s1 + $0x4] sm:$0xf]
    %v84 = vld [vmem:[%s1 + $0x8] sm:$0xf]
    %v85 = vld [vmem:[%s1 + $0xc] sm:$0xf]
    %v86 = vld [vmem:[%s1 + $0x10] sm:$0xf]
    %v87 = vld [vmem:[%s1 + $0x14] sm:$0xf]
    %v88 = vld [vmem:[%s1 + $0x18] sm:$0xf]
    %v89 = vld [vmem:[%s1 + $0x1c] sm:$0xf]
    %v90 = vld [vmem:[%s2] sm:$0x1]
    %v92 = vlaneseq
    %v93 = vshrl.u32 %v92, 7
    %v94 = vsub.s32 0, %v93
    %v95 = vrot.slane %v90, %v94
    %v105 = vunpack.c.l.b16 %v82
    %v106 = vunpack.c.l.b16 %v83
    %v107 = vunpack.c.l.b16 %v84
    %v108 = vunpack.c.l.b16 %v85
    %v109 = vunpack.c.l.b16 %v86
    %v110 = vunpack.c.l.b16 %v87
    %v111 = vunpack.c.l.b16 %v88
    %v112 = vunpack.c.l.b16 %v89
    %v113 = vpack.c.b16 %v106, %v105
    %v114 = vpack.c.b16 %v108, %v107
    %v115 = vpack.c.b16 %v110, %v109
    %v116 = vpack.c.b16 %v112, %v111
    %vm121 = vcmask 523264
    %v123 = vsel %vm121, %v81, 0
    %125 = vmatprep.subr.bf16.mxu0 0
    %126 = vmatpush1.bf16.msra.mxu0 0
    %127 = vmatprep.subr.bf16.mxu0 0
    %128 = vmatpush1.bf16.msra.mxu0 0
    %129 = vmatprep.subr.bf16.mxu0 0
    %130 = vmatpush1.bf16.msra.mxu0 0
    %131 = vmatprep.subr.bf16.mxu0 0
    %132 = vmatpush1.bf16.msra.mxu0 0
    %133 = vmatprep.subr.bf16.mxu0 0
    %134 = vmatpush1.bf16.msra.mxu0 %v116
    %135 = vmatprep.subr.bf16.mxu0 0
    %136 = vmatpush1.bf16.msra.mxu0 %v115
    %137 = vmatprep.subr.bf16.mxu0 0
    %138 = vmatpush1.bf16.msra.mxu0 %v114
    %139 = vmatprep.subr.bf16.mxu0 0
    %140 = vmatpush1.bf16.msra.mxu0 %v113
    %141 = vmatprep.subr.bf16.mxu0 0
    %142 = vmatpush2.bf16.msra.mxu0 0
    %143 = vmatprep.subr.bf16.mxu0 0
    %144 = vmatpush2.bf16.msra.mxu0 0
    %145 = vmatprep.subr.bf16.mxu0 0
    %146 = vmatpush2.bf16.msra.mxu0 0
    %147 = vmatprep.subr.bf16.mxu0 0
    %148 = vmatpush2.bf16.msra.mxu0 0
    %149 = vmatprep.subr.bf16.mxu0 0
    %150 = vmatpush2.bf16.msra.mxu0 0
    %151 = vmatprep.subr.bf16.mxu0 0
    %152 = vmatpush2.bf16.msra.mxu0 0
    %153 = vmatprep.subr.bf16.mxu0 0
    %154 = vmatpush2.bf16.msra.mxu0 0
    %155 = vmatprep.subr.bf16.mxu0 0
    %156 = vmatpush2.bf16.msra.mxu0 0
    %157 = vmatprep.mubr.bf16.mxu0 0
    %158 = vmatmul.mubr.bf16.gmra.mxu0 %v123
    %v159 = vpop.f32.mrf.mxu0
    %v160 = vadd.f32 %v95, %v159
    %v161 = vpop.f32.mrf.mxu0
    %v162 = vpop.f32.mrf.mxu0
    %v163 = vpop.f32.mrf.mxu0
    %164 = vdwg.mxu0
    %v165 = vxor.u32 %v160, 2147483648
    %v166 = vmul.f32 %v165, 1.442695
    %v167 = vpow.pop %v166
    %v168 = vadd.f32 %v167, 1.0
    %v169 = vrcp.pop %v168
    %v170 = vmul.f32 1.0, %v169
    %v171 = vmul.f32 %v160, %v170
    %v172 = vpack.c.bf16 %v171, %v171
    %v173 = vld [vmem:[%s3] sm:$0xf]
    %v174 = vld [vmem:[%s3 + $0x4] sm:$0xf]
    %v175 = vld [vmem:[%s3 + $0x8] sm:$0xf]
    %v176 = vld [vmem:[%s3 + $0xc] sm:$0xf]
    %v177 = vld [vmem:[%s4] sm:$0x1]
    %v179 = vlaneseq
    %v180 = vshrl.u32 %v179, 7
    %v181 = vsub.s32 0, %v180
    %v182 = vrot.slane %v177, %v181
    %v188 = vunpack.c.l.b16 %v173
    %v189 = vunpack.c.l.b16 %v174
    %v190 = vunpack.c.l.b16 %v175
    %v191 = vunpack.c.l.b16 %v176
    %v192 = vpack.c.b16 %v189, %v188
    %v193 = vpack.c.b16 %v191, %v190
    %v197 = vsel %vm32, %v172, 0
    %199 = vmatprep.subr.bf16.mxu0 0
    %200 = vmatpush1.bf16.msra.mxu0 0
    %201 = vmatprep.subr.bf16.mxu0 0
    %202 = vmatpush1.bf16.msra.mxu0 0
    %203 = vmatprep.subr.bf16.mxu0 0
    %204 = vmatpush1.bf16.msra.mxu0 0
    %205 = vmatprep.subr.bf16.mxu0 0
    %206 = vmatpush1.bf16.msra.mxu0 0
    %207 = vmatprep.subr.bf16.mxu0 0
    %208 = vmatpush1.bf16.msra.mxu0 0
    %209 = vmatprep.subr.bf16.mxu0 0
    %210 = vmatpush1.bf16.msra.mxu0 0
    %211 = vmatprep.subr.bf16.mxu0 0
    %212 = vmatpush1.bf16.msra.mxu0 %v193
    %213 = vmatprep.subr.bf16.mxu0 0
    %214 = vmatpush1.bf16.msra.mxu0 %v192
    %215 = vmatprep.subr.bf16.mxu0 0
    %216 = vmatpush2.bf16.msra.mxu0 0
    %217 = vmatprep.subr.bf16.mxu0 0
    %218 = vmatpush2.bf16.msra.mxu0 0
    %219 = vmatprep.subr.bf16.mxu0 0
    %220 = vmatpush2.bf16.msra.mxu0 0
    %221 = vmatprep.subr.bf16.mxu0 0
    %222 = vmatpush2.bf16.msra.mxu0 0
    %223 = vmatprep.subr.bf16.mxu0 0
    %224 = vmatpush2.bf16.msra.mxu0 0
    %225 = vmatprep.subr.bf16.mxu0 0
    %226 = vmatpush2.bf16.msra.mxu0 0
    %227 = vmatprep.subr.bf16.mxu0 0
    %228 = vmatpush2.bf16.msra.mxu0 0
    %229 = vmatprep.subr.bf16.mxu0 0
    %230 = vmatpush2.bf16.msra.mxu0 0
    %231 = vmatprep.mubr.bf16.mxu0 0
    %232 = vmatmul.mubr.bf16.gmra.mxu0 %v197
    %v233 = vpop.f32.mrf.mxu0
    %v234 = vadd.f32 %v182, %v233
    %v235 = vpop.f32.mrf.mxu0
    %v236 = vpop.f32.mrf.mxu0
    %v237 = vpop.f32.mrf.mxu0
    %238 = vdwg.mxu0
    %vm239 = vcmask 9216
    %v240 = vsel %vm239, %v234, -inf
    %241 = vmax.xlane.f32.xlu0 %v240
    %v242 = vpop.xlane.xlu0 %241
    %v243 = vsub.f32 %v234, %v242
    %v244 = vmul.f32 %v243, 1.442695
    %v245 = vpow.pop %v244
    %v246 = vsel %vm239, %v245, 0.0
    %247 = vadd.xlane.f32.xlu0 %v246
    %v248 = vpop.xlane.xlu0 %247
    %v249 = vrcp.pop %v248
    %v250 = vmul.f32 %v245, %v249
    %s252 = vtos %v250
    %v253 = vstv %s252
    %v255 = vmul.f32 %v253, %v28
    %256 = vrot.lane.b32.xlu0 %v250, 127
    %v257 = vpop.permute.xlu0 %256
    %s258 = vtos %v257
    %v259 = vstv %s258
    %v261 = vmul.f32 %v259, %v30
    %v262 = vadd.f32 %v255, %v261
    %v263 = vrot.slane %v250, 1
    %s264 = vtos %v263
    %v265 = vstv %s264
    %v267 = vmul.f32 %v265, %v29
    %268 = vrot.lane.b32.xlu0 %v263, 127
    %v269 = vpop.permute.xlu0 %268
    %s270 = vtos %v269
    %v271 = vstv %s270
    %v273 = vmul.f32 %v271, %v31
    %v274 = vadd.f32 %v267, %v273
    %v275 = vpack.c.bf16 %v274, %v262
    %v276 = vld [vmem:[%s5] sm:$0xf]
    %v277 = vld [vmem:[%s5 + $0x4] sm:$0xf]
    %v278 = vld [vmem:[%s5 + $0x8] sm:$0xf]
    %v279 = vld [vmem:[%s5 + $0xc] sm:$0xf]
    %v280 = vld [vmem:[%s6] sm:$0x1]
    %v282 = vlaneseq
    %v283 = vshrl.u32 %v282, 7
    %v284 = vsub.s32 0, %v283
    %v285 = vrot.slane %v280, %v284
    %v291 = vunpack.c.l.b16 %v276
    %v292 = vunpack.c.l.b16 %v277
    %v293 = vunpack.c.l.b16 %v278
    %v294 = vunpack.c.l.b16 %v279
    %v295 = vpack.c.b16 %v292, %v291
    %v296 = vpack.c.b16 %v294, %v293
    %v300 = vsel %vm32, %v275, 0
    %302 = vmatprep.subr.bf16.mxu0 0
    %303 = vmatpush1.bf16.msra.mxu0 0
    %304 = vmatprep.subr.bf16.mxu0 0
    %305 = vmatpush1.bf16.msra.mxu0 0
    %306 = vmatprep.subr.bf16.mxu0 0
    %307 = vmatpush1.bf16.msra.mxu0 0
    %308 = vmatprep.subr.bf16.mxu0 0
    %309 = vmatpush1.bf16.msra.mxu0 0
    %310 = vmatprep.subr.bf16.mxu0 0
    %311 = vmatpush1.bf16.msra.mxu0 0
    %312 = vmatprep.subr.bf16.mxu0 0
    %313 = vmatpush1.bf16.msra.mxu0 0
    %314 = vmatprep.subr.bf16.mxu0 0
    %315 = vmatpush1.bf16.msra.mxu0 %v296
    %316 = vmatprep.subr.bf16.mxu0 0
    %317 = vmatpush1.bf16.msra.mxu0 %v295
    %318 = vmatprep.subr.bf16.mxu0 0
    %319 = vmatpush2.bf16.msra.mxu0 0
    %320 = vmatprep.subr.bf16.mxu0 0
    %321 = vmatpush2.bf16.msra.mxu0 0
    %322 = vmatprep.subr.bf16.mxu0 0
    %323 = vmatpush2.bf16.msra.mxu0 0
    %324 = vmatprep.subr.bf16.mxu0 0
    %325 = vmatpush2.bf16.msra.mxu0 0
    %326 = vmatprep.subr.bf16.mxu0 0
    %327 = vmatpush2.bf16.msra.mxu0 0
    %328 = vmatprep.subr.bf16.mxu0 0
    %329 = vmatpush2.bf16.msra.mxu0 0
    %330 = vmatprep.subr.bf16.mxu0 0
    %331 = vmatpush2.bf16.msra.mxu0 0
    %332 = vmatprep.subr.bf16.mxu0 0
    %333 = vmatpush2.bf16.msra.mxu0 0
    %334 = vmatprep.mubr.bf16.mxu0 0
    %335 = vmatmul.mubr.bf16.gmra.mxu0 %v300
    %v336 = vpop.f32.mrf.mxu0
    %v337 = vadd.f32 %v285, %v336
    %v338 = vpop.f32.mrf.mxu0
    %v339 = vpop.f32.mrf.mxu0
    %v340 = vadd.f32 %v285, %v339
    %v341 = vpop.f32.mrf.mxu0
    %342 = vdwg.mxu0
    %343 = vst.msk [vmem:[#allocation2] sm:$0xff] %vm32, %v337
    %344 = vst.msk [vmem:[#allocation2 + $0x8] sm:$0xff] %vm32, %v340
    // Predicated region
    $region30: #{forward.5} parent=1 // pred_check
      _
    $region31: #{forward.5} parent=1 // pred_check_branch
      %346 = sbr.rel (0) target = $region33
    $region32: #{forward.5} parent=1 // pred_region
      %s348 = ssub.s32 256, 256
      %349 = vsyncadd [#allocation3], %s348
      %s350 = sshll.u32 [#allocation2], 4
      %s351 = int_to_ptr.vmem [resolvable:$true] %s350
      %356 = dma.vmem_to_hbm [thread:$0]  %s351, 256, %s7, [#allocation3], 128, 128, 8
    $region33: #{forward.5} parent=1 // pred_fallthru
      _
    // Predicated region
    $region34: #{forward.5} parent=1 // pred_check
      _
    $region35: #{forward.5} parent=1 // pred_check_branch
      %358 = sbr.rel (0) target = $region37
    $region36: #{forward.5} parent=1 // pred_region
      %359 = dma.done [#allocation3], 256
    $region37: #{forward.5} parent=1 // pred_fallthru
      _
    %360 = vsyncpa [#allocation3], 1

// kernel: forward.4
$region0: #{forward.4}
  #allocation0 [shape = 'u32[]', space=smem, size = 0x4, offset = 0x4, fixed_abs, tag = 'smem constant byte address 0x4 - core index']
  #allocation1 [shape = 'u32[144,128]{1,0:T(1,128)}', space=vmem, size = 0x12000, scoped, tag = 'internal scratch']
  %s0 = inlined_call_operand.vmem [shape: f32[16,32], index: 0, kind: input, shape index: {}]
  %s1 = inlined_call_operand.vmem [shape: bf16[2,2,32,96], index: 1, kind: input, shape index: {}]
  %s2 = inlined_call_operand.vmem [shape: f32[2,2,1,96], index: 2, kind: input, shape index: {}]
  %s3 = inlined_call_operand.vmem [shape: bf16[2,2,32,32], index: 3, kind: input, shape index: {}]
  %s4 = inlined_call_operand.vmem [shape: f32[2,2,1,32], index: 4, kind: input, shape index: {}]
  %s5 = inlined_call_operand.vmem [shape: f32[2,2,1,32], index: 5, kind: input, shape index: {}]
  %s6 = inlined_call_operand.vmem [shape: f32[2,2,1,32], index: 6, kind: input, shape index: {}]
  %s7 = inlined_call_operand.vmem [shape: bf16[2,2,32,128], index: 7, kind: input, shape index: {}]
  %s8 = inlined_call_operand.vmem [shape: f32[2,2,1,128], index: 8, kind: input, shape index: {}]
  %s9 = inlined_call_operand.vmem [shape: bf16[2,2,128,32], index: 9, kind: input, shape index: {}]
  %s10 = inlined_call_operand.vmem [shape: f32[2,2,1,32], index: 10, kind: input, shape index: {}]
  %s11 = inlined_call_operand.vmem [shape: f32[2,2,1,32], index: 11, kind: input, shape index: {}]
  %s12 = inlined_call_operand.vmem [shape: f32[2,2,1,32], index: 12, kind: input, shape index: {}]
  %s13 = inlined_call_operand.vmem [shape: f32[2,16,32], index: 13, kind: output, shape index: {}]
  %s14 = sld [smem:[#allocation0]]
  $region85: #{forward.4} parent=0
    _
  %s16 = ssub.s32 1, %s14
  %s17 = scalar_select 0, %s16, %s14
  loop: start=0, step=1, limit=4
  $region2: #{forward.4} parent=0 // loop_pre_header
    _
  $region3: #{forward.4} parent=0 // loop_header
    %s19 = sphi 0, %s23
    %p20 = scmp.ge.s32.totalorder %s19, 4
    %s27 = sphi 0, %s27
    %s29 = sphi 0, %s27
    %s30 = sphi 0, %s29
    %s44 = sphi 0, %s30
    %s50 = sphi 0, %s52
    %s53 = sphi 0, %s50
    %s54 = sphi 0, %s53
    %s70 = sphi 0, %s54
    %s76 = sphi 0, %s78
    %s79 = sphi 0, %s76
    %s80 = sphi 0, %s79
    %s96 = sphi 0, %s80
    %s102 = sphi 0, %s104
    %s105 = sphi 0, %s102
    %s106 = sphi 0, %s105
    %s122 = sphi 0, %s106
    %s128 = sphi 0, %s130
    %s131 = sphi 0, %s128
    %s132 = sphi 0, %s131
    %s148 = sphi 0, %s132
    %s154 = sphi 0, %s156
    %s157 = sphi 0, %s154
    %s158 = sphi 0, %s157
    %s174 = sphi 0, %s158
    %s180 = sphi 0, %s182
    %s183 = sphi 0, %s180
    %s184 = sphi 0, %s183
    %s200 = sphi 0, %s184
    %s206 = sphi 0, %s208
    %s209 = sphi 0, %s206
    %s210 = sphi 0, %s209
    %s226 = sphi 0, %s210
    %s232 = sphi 0, %s234
    %s235 = sphi 0, %s232
    %s236 = sphi 0, %s235
    %s252 = sphi 0, %s236
    %s258 = sphi 0, %s260
    %s261 = sphi 0, %s258
    %s262 = sphi 0, %s261
    %s278 = sphi 0, %s262
    %s284 = sphi 0, %s286
    %s287 = sphi 0, %s284
    %s288 = sphi 0, %s287
    %s304 = sphi 0, %s288
    %s310 = sphi 0, %s312
    %s313 = sphi 0, %s310
    %s314 = sphi 0, %s313
    %s330 = sphi 0, %s314
    %s336 = sphi 0, %s338
    %s339 = sphi 0, %s336
    %s340 = sphi 0, %s339
    %s356 = sphi 0, %s340
    %s362 = sphi 0, %s364
    %s365 = sphi 0, %s362
    %s366 = sphi 0, %s365
    %s382 = sphi 0, %s366
  $region4: #{forward.4} parent=0 // loop_header_branch
    %22 = sbr.rel (%p20) target = $region8
  $region5: #{forward.4} parent=0 // loop_body
    %s24 = ssub.s32 %s19, 1
    %s25 = ssub.s32 %s19, 2
    %s26 = sadd.s32 %s19, 1
    %s28 = sadd.s32 %s27, 1
    %p31 = scmp.eq.s32.totalorder %s19, 1
    %p32 = scmp.ne.s32.totalorder %s27, %s29
    %p33 = scmp.eq.s32.totalorder %s19, 0
    %p34 = por %p32, %p33
    %p35 = scmp.ne.s32.totalorder %s27, %s29
    %p36 = scmp.eq.s32.totalorder %s24, 1
    %p37 = por %p35, %p36
    %p38 = scmp.ne.s32.totalorder %s29, %s30
    %p39 = scmp.eq.s32.totalorder %s24, 0
    %p40 = por %p38, %p39
    %p41 = scmp.ne.s32.totalorder %s29, %s30
    %p42 = scmp.eq.s32.totalorder %s25, 1
    %p43 = por %p41, %p42
    %p45 = scmp.ne.s32.totalorder %s30, %s44
    %p46 = scmp.eq.s32.totalorder %s25, 0
    %p47 = por %p45, %p46
    %s48 = ssub.s32 %s19, %s26
    %p49 = scmp.eq.s32.totalorder %s48, 0
    %s51 = sadd.s32 %s50, 1
    %s52 = scalar_select %p49, %s50, %s51
    %p55 = pneg %p49
    %p56 = scmp.eq.s32.totalorder %s19, 1
    %p57 = por %p55, %p56
    %p58 = scmp.ne.s32.totalorder %s50, %s53
    %p59 = scmp.eq.s32.totalorder %s19, 0
    %p60 = por %p58, %p59
    %p61 = scmp.ne.s32.totalorder %s50, %s53
    %p62 = scmp.eq.s32.totalorder %s24, 1
    %p63 = por %p61, %p62
    %p64 = scmp.ne.s32.totalorder %s53, %s54
    %p65 = scmp.eq.s32.totalorder %s24, 0
    %p66 = por %p64, %p65
    %p67 = scmp.ne.s32.totalorder %s53, %s54
    %p68 = scmp.eq.s32.totalorder %s25, 1
    %p69 = por %p67, %p68
    %p71 = scmp.ne.s32.totalorder %s54, %s70
    %p72 = scmp.eq.s32.totalorder %s25, 0
    %p73 = por %p71, %p72
    %s74 = ssub.s32 %s19, %s26
    %p75 = scmp.eq.s32.totalorder %s74, 0
    %s77 = sadd.s32 %s76, 1
    %s78 = scalar_select %p75, %s76, %s77
    %p81 = pneg %p75
    %p82 = scmp.eq.s32.totalorder %s19, 1
    %p83 = por %p81, %p82
    %p84 = scmp.ne.s32.totalorder %s76, %s79
    %p85 = scmp.eq.s32.totalorder %s19, 0
    %p86 = por %p84, %p85
    %p87 = scmp.ne.s32.totalorder %s76, %s79
    %p88 = scmp.eq.s32.totalorder %s24, 1
    %p89 = por %p87, %p88
    %p90 = scmp.ne.s32.totalorder %s79, %s80
    %p91 = scmp.eq.s32.totalorder %s24, 0
    %p92 = por %p90, %p91
    %p93 = scmp.ne.s32.totalorder %s79, %s80
    %p94 = scmp.eq.s32.totalorder %s25, 1
    %p95 = por %p93, %p94
    %p97 = scmp.ne.s32.totalorder %s80, %s96
    %p98 = scmp.eq.s32.totalorder %s25, 0
    %p99 = por %p97, %p98
    %s100 = ssub.s32 %s19, %s26
    %p101 = scmp.eq.s32.totalorder %s100, 0
    %s103 = sadd.s32 %s102, 1
    %s104 = scalar_select %p101, %s102, %s103
    %p107 = pneg %p101
    %p108 = scmp.eq.s32.totalorder %s19, 1
    %p109 = por %p107, %p108
    %p110 = scmp.ne.s32.totalorder %s102, %s105
    %p111 = scmp.eq.s32.totalorder %s19, 0
    %p112 = por %p110, %p111
    %p113 = scmp.ne.s32.totalorder %s102, %s105
    %p114 = scmp.eq.s32.totalorder %s24, 1
    %p115 = por %p113, %p114
    %p116 = scmp.ne.s32.totalorder %s105, %s106
    %p117 = scmp.eq.s32.totalorder %s24, 0
    %p118 = por %p116, %p117
    %p119 = scmp.ne.s32.totalorder %s105, %s106
    %p120 = scmp.eq.s32.totalorder %s25, 1
    %p121 = por %p119, %p120
    %p123 = scmp.ne.s32.totalorder %s106, %s122
    %p124 = scmp.eq.s32.totalorder %s25, 0
    %p125 = por %p123, %p124
    %s126 = ssub.s32 %s19, %s26
    %p127 = scmp.eq.s32.totalorder %s126, 0
    %s129 = sadd.s32 %s128, 1
    %s130 = scalar_select %p127, %s128, %s129
    %p133 = pneg %p127
    %p134 = scmp.eq.s32.totalorder %s19, 1
    %p135 = por %p133, %p134
    %p136 = scmp.ne.s32.totalorder %s128, %s131
    %p137 = scmp.eq.s32.totalorder %s19, 0
    %p138 = por %p136, %p137
    %p139 = scmp.ne.s32.totalorder %s128, %s131
    %p140 = scmp.eq.s32.totalorder %s24, 1
    %p141 = por %p139, %p140
    %p142 = scmp.ne.s32.totalorder %s131, %s132
    %p143 = scmp.eq.s32.totalorder %s24, 0
    %p144 = por %p142, %p143
    %p145 = scmp.ne.s32.totalorder %s131, %s132
    %p146 = scmp.eq.s32.totalorder %s25, 1
    %p147 = por %p145, %p146
    %p149 = scmp.ne.s32.totalorder %s132, %s148
    %p150 = scmp.eq.s32.totalorder %s25, 0
    %p151 = por %p149, %p150
    %s152 = ssub.s32 %s19, %s26
    %p153 = scmp.eq.s32.totalorder %s152, 0
    %s155 = sadd.s32 %s154, 1
    %s156 = scalar_select %p153, %s154, %s155
    %p159 = pneg %p153
    %p160 = scmp.eq.s32.totalorder %s19, 1
    %p161 = por %p159, %p160
    %p162 = scmp.ne.s32.totalorder %s154, %s157
    %p163 = scmp.eq.s32.totalorder %s19, 0
    %p164 = por %p162, %p163
    %p165 = scmp.ne.s32.totalorder %s154, %s157
    %p166 = scmp.eq.s32.totalorder %s24, 1
    %p167 = por %p165, %p166
    %p168 = scmp.ne.s32.totalorder %s157, %s158
    %p169 = scmp.eq.s32.totalorder %s24, 0
    %p170 = por %p168, %p169
    %p171 = scmp.ne.s32.totalorder %s157, %s158
    %p172 = scmp.eq.s32.totalorder %s25, 1
    %p173 = por %p171, %p172
    %p175 = scmp.ne.s32.totalorder %s158, %s174
    %p176 = scmp.eq.s32.totalorder %s25, 0
    %p177 = por %p175, %p176
    %s178 = ssub.s32 %s19, %s26
    %p179 = scmp.eq.s32.totalorder %s178, 0
    %s181 = sadd.s32 %s180, 1
    %s182 = scalar_select %p179, %s180, %s181
    %p185 = pneg %p179
    %p186 = scmp.eq.s32.totalorder %s19, 1
    %p187 = por %p185, %p186
    %p188 = scmp.ne.s32.totalorder %s180, %s183
    %p189 = scmp.eq.s32.totalorder %s19, 0
    %p190 = por %p188, %p189
    %p191 = scmp.ne.s32.totalorder %s180, %s183
    %p192 = scmp.eq.s32.totalorder %s24, 1
    %p193 = por %p191, %p192
    %p194 = scmp.ne.s32.totalorder %s183, %s184
    %p195 = scmp.eq.s32.totalorder %s24, 0
    %p196 = por %p194, %p195
    %p197 = scmp.ne.s32.totalorder %s183, %s184
    %p198 = scmp.eq.s32.totalorder %s25, 1
    %p199 = por %p197, %p198
    %p201 = scmp.ne.s32.totalorder %s184, %s200
    %p202 = scmp.eq.s32.totalorder %s25, 0
    %p203 = por %p201, %p202
    %s204 = ssub.s32 %s19, %s26
    %p205 = scmp.eq.s32.totalorder %s204, 0
    %s207 = sadd.s32 %s206, 1
    %s208 = scalar_select %p205, %s206, %s207
    %p211 = pneg %p205
    %p212 = scmp.eq.s32.totalorder %s19, 1
    %p213 = por %p211, %p212
    %p214 = scmp.ne.s32.totalorder %s206, %s209
    %p215 = scmp.eq.s32.totalorder %s19, 0
    %p216 = por %p214, %p215
    %p217 = scmp.ne.s32.totalorder %s206, %s209
    %p218 = scmp.eq.s32.totalorder %s24, 1
    %p219 = por %p217, %p218
    %p220 = scmp.ne.s32.totalorder %s209, %s210
    %p221 = scmp.eq.s32.totalorder %s24, 0
    %p222 = por %p220, %p221
    %p223 = scmp.ne.s32.totalorder %s209, %s210
    %p224 = scmp.eq.s32.totalorder %s25, 1
    %p225 = por %p223, %p224
    %p227 = scmp.ne.s32.totalorder %s210, %s226
    %p228 = scmp.eq.s32.totalorder %s25, 0
    %p229 = por %p227, %p228
    %s230 = ssub.s32 %s19, %s26
    %p231 = scmp.eq.s32.totalorder %s230, 0
    %s233 = sadd.s32 %s232, 1
    %s234 = scalar_select %p231, %s232, %s233
    %p237 = pneg %p231
    %p238 = scmp.eq.s32.totalorder %s19, 1
    %p239 = por %p237, %p238
    %p240 = scmp.ne.s32.totalorder %s232, %s235
    %p241 = scmp.eq.s32.totalorder %s19, 0
    %p242 = por %p240, %p241
    %p243 = scmp.ne.s32.totalorder %s232, %s235
    %p244 = scmp.eq.s32.totalorder %s24, 1
    %p245 = por %p243, %p244
    %p246 = scmp.ne.s32.totalorder %s235, %s236
    %p247 = scmp.eq.s32.totalorder %s24, 0
    %p248 = por %p246, %p247
    %p249 = scmp.ne.s32.totalorder %s235, %s236
    %p250 = scmp.eq.s32.totalorder %s25, 1
    %p251 = por %p249, %p250
    %p253 = scmp.ne.s32.totalorder %s236, %s252
    %p254 = scmp.eq.s32.totalorder %s25, 0
    %p255 = por %p253, %p254
    %s256 = ssub.s32 %s19, %s26
    %p257 = scmp.eq.s32.totalorder %s256, 0
    %s259 = sadd.s32 %s258, 1
    %s260 = scalar_select %p257, %s258, %s259
    %p263 = pneg %p257
    %p264 = scmp.eq.s32.totalorder %s19, 1
    %p265 = por %p263, %p264
    %p266 = scmp.ne.s32.totalorder %s258, %s261
    %p267 = scmp.eq.s32.totalorder %s19, 0
    %p268 = por %p266, %p267
    %p269 = scmp.ne.s32.totalorder %s258, %s261
    %p270 = scmp.eq.s32.totalorder %s24, 1
    %p271 = por %p269, %p270
    %p272 = scmp.ne.s32.totalorder %s261, %s262
    %p273 = scmp.eq.s32.totalorder %s24, 0
    %p274 = por %p272, %p273
    %p275 = scmp.ne.s32.totalorder %s261, %s262
    %p276 = scmp.eq.s32.totalorder %s25, 1
    %p277 = por %p275, %p276
    %p279 = scmp.ne.s32.totalorder %s262, %s278
    %p280 = scmp.eq.s32.totalorder %s25, 0
    %p281 = por %p279, %p280
    %s282 = ssub.s32 %s19, %s26
    %p283 = scmp.eq.s32.totalorder %s282, 0
    %s285 = sadd.s32 %s284, 1
    %s286 = scalar_select %p283, %s284, %s285
    %p289 = pneg %p283
    %p290 = scmp.eq.s32.totalorder %s19, 1
    %p291 = por %p289, %p290
    %p292 = scmp.ne.s32.totalorder %s284, %s287
    %p293 = scmp.eq.s32.totalorder %s19, 0
    %p294 = por %p292, %p293
    %p295 = scmp.ne.s32.totalorder %s284, %s287
    %p296 = scmp.eq.s32.totalorder %s24, 1
    %p297 = por %p295, %p296
    %p298 = scmp.ne.s32.totalorder %s287, %s288
    %p299 = scmp.eq.s32.totalorder %s24, 0
    %p300 = por %p298, %p299
    %p301 = scmp.ne.s32.totalorder %s287, %s288
    %p302 = scmp.eq.s32.totalorder %s25, 1
    %p303 = por %p301, %p302
    %p305 = scmp.ne.s32.totalorder %s288, %s304
    %p306 = scmp.eq.s32.totalorder %s25, 0
    %p307 = por %p305, %p306
    %s308 = ssub.s32 %s19, %s26
    %p309 = scmp.eq.s32.totalorder %s308, 0
    %s311 = sadd.s32 %s310, 1
    %s312 = scalar_select %p309, %s310, %s311
    %p315 = pneg %p309
    %p316 = scmp.eq.s32.totalorder %s19, 1
    %p317 = por %p315, %p316
    %p318 = scmp.ne.s32.totalorder %s310, %s313
    %p319 = scmp.eq.s32.totalorder %s19, 0
    %p320 = por %p318, %p319
    %p321 = scmp.ne.s32.totalorder %s310, %s313
    %p322 = scmp.eq.s32.totalorder %s24, 1
    %p323 = por %p321, %p322
    %p324 = scmp.ne.s32.totalorder %s313, %s314
    %p325 = scmp.eq.s32.totalorder %s24, 0
    %p326 = por %p324, %p325
    %p327 = scmp.ne.s32.totalorder %s313, %s314
    %p328 = scmp.eq.s32.totalorder %s25, 1
    %p329 = por %p327, %p328
    %p331 = scmp.ne.s32.totalorder %s314, %s330
    %p332 = scmp.eq.s32.totalorder %s25, 0
    %p333 = por %p331, %p332
    %s334 = ssub.s32 %s19, %s26
    %p335 = scmp.eq.s32.totalorder %s334, 0
    %s337 = sadd.s32 %s336, 1
    %s338 = scalar_select %p335, %s336, %s337
    %p341 = pneg %p335
    %p342 = scmp.eq.s32.totalorder %s19, 1
    %p343 = por %p341, %p342
    %p344 = scmp.ne.s32.totalorder %s336, %s339
    %p345 = scmp.eq.s32.totalorder %s19, 0
    %p346 = por %p344, %p345
    %p347 = scmp.ne.s32.totalorder %s336, %s339
    %p348 = scmp.eq.s32.totalorder %s24, 1
    %p349 = por %p347, %p348
    %p350 = scmp.ne.s32.totalorder %s339, %s340
    %p351 = scmp.eq.s32.totalorder %s24, 0
    %p352 = por %p350, %p351
    %p353 = scmp.ne.s32.totalorder %s339, %s340
    %p354 = scmp.eq.s32.totalorder %s25, 1
    %p355 = por %p353, %p354
    %p357 = scmp.ne.s32.totalorder %s340, %s356
    %p358 = scmp.eq.s32.totalorder %s25, 0
    %p359 = por %p357, %p358
    %s360 = ssub.s32 %s19, %s26
    %p361 = scmp.eq.s32.totalorder %s360, 0
    %s363 = sadd.s32 %s362, 1
    %s364 = scalar_select %p361, %s362, %s363
    %p367 = pneg %p361
    %p368 = scmp.eq.s32.totalorder %s19, 1
    %p369 = por %p367, %p368
    %p370 = scmp.ne.s32.totalorder %s362, %s365
    %p371 = scmp.eq.s32.totalorder %s19, 0
    %p372 = por %p370, %p371
    %p373 = scmp.ne.s32.totalorder %s362, %s365
    %p374 = scmp.eq.s32.totalorder %s24, 1
    %p375 = por %p373, %p374
    %p376 = scmp.ne.s32.totalorder %s365, %s366
    %p377 = scmp.eq.s32.totalorder %s24, 0
    %p378 = por %p376, %p377
    %p379 = scmp.ne.s32.totalorder %s365, %s366
    %p380 = scmp.eq.s32.totalorder %s25, 1
    %p381 = por %p379, %p380
    %p383 = scmp.ne.s32.totalorder %s366, %s382
    %p384 = scmp.eq.s32.totalorder %s25, 0
    %p385 = por %p383, %p384
    %p386 = scmp.le.s32.totalorder 1, %s19
    %p387 = scmp.lt.s32.totalorder %s19, 3
    %p388 = pnand %p386, %p387
    %p389 = pneg %p388
    // Predicated region
    $region9: #{forward.4} parent=5 // pred_check
      _
    $region10: #{forward.4} parent=5 // pred_check_branch
      %391 = sbr.rel (%p388) target = $region12
    $region11: #{forward.4} parent=5 // pred_region
      %s392 = ssub.s32 %s19, 1
      // Predicated region
      $region13: #{forward.4} parent=11 // pred_check
        %p393 = pneg %p40
      $region14: #{forward.4} parent=11 // pred_check_branch
        %395 = sbr.rel (%p393) target = $region16
      $region15: #{forward.4} parent=11 // pred_region
        _
      $region16: #{forward.4} parent=11 // pred_fallthru
        _
    $region12: #{forward.4} parent=5 // pred_fallthru
      _
    %p396 = scmp.lt.s32.totalorder %s19, 2
    // Predicated region
    $region17: #{forward.4} parent=5 // pred_check
      %p397 = pneg %p396
    $region18: #{forward.4} parent=5 // pred_check_branch
      %399 = sbr.rel (%p397) target = $region20
    $region19: #{forward.4} parent=5 // pred_region
      // Predicated region
      $region21: #{forward.4} parent=19 // pred_check
        %p400 = pneg %p60
      $region22: #{forward.4} parent=19 // pred_check_branch
        %402 = sbr.rel (%p400) target = $region24
      $region23: #{forward.4} parent=19 // pred_region
        %p403 = scmp.lt.s32.totalorder %s19, 1
        %s404 = scalar_select %p403, %s19, 1
        %s405 = smul.addr %s404, 8
        %s406 = smul.addr %s405, 4
        %s407 = scalar_lea.vmem %s1, %s406
      $region24: #{forward.4} parent=19 // pred_fallthru
        _
      // Predicated region
      $region25: #{forward.4} parent=19 // pred_check
        %p408 = pneg %p86
      $region26: #{forward.4} parent=19 // pred_check_branch
        %410 = sbr.rel (%p408) target = $region28
      $region27: #{forward.4} parent=19 // pred_region
        %p411 = scmp.lt.s32.totalorder %s19, 1
        %s412 = scalar_select %p411, %s19, 1
        %s413 = smul.addr %s412, 2
        %s414 = scalar_lea.vmem %s2, %s413
      $region28: #{forward.4} parent=19 // pred_fallthru
        _
      // Predicated region
      $region29: #{forward.4} parent=19 // pred_check
        %p415 = pneg %p112
      $region30: #{forward.4} parent=19 // pred_check_branch
        %417 = sbr.rel (%p415) target = $region32
      $region31: #{forward.4} parent=19 // pred_region
        %p418 = scmp.lt.s32.totalorder %s19, 1
        %s419 = scalar_select %p418, %s19, 1
        %s420 = smul.addr %s419, 8
        %s421 = smul.addr %s420, 4
        %s422 = scalar_lea.vmem %s3, %s421
      $region32: #{forward.4} parent=19 // pred_fallthru
        _
      // Predicated region
      $region33: #{forward.4} parent=19 // pred_check
        %p423 = pneg %p138
      $region34: #{forward.4} parent=19 // pred_check_branch
        %425 = sbr.rel (%p423) target = $region36
      $region35: #{forward.4} parent=19 // pred_region
        %p426 = scmp.lt.s32.totalorder %s19, 1
        %s427 = scalar_select %p426, %s19, 1
        %s428 = smul.addr %s427, 2
        %s429 = scalar_lea.vmem %s4, %s428
      $region36: #{forward.4} parent=19 // pred_fallthru
        _
      // Predicated region
      $region37: #{forward.4} parent=19 // pred_check
        %p430 = pneg %p164
      $region38: #{forward.4} parent=19 // pred_check_branch
        %432 = sbr.rel (%p430) target = $region40
      $region39: #{forward.4} parent=19 // pred_region
        %p433 = scmp.lt.s32.totalorder %s19, 1
        %s434 = scalar_select %p433, %s19, 1
        %s435 = smul.addr %s434, 2
        %s436 = scalar_lea.vmem %s5, %s435
      $region40: #{forward.4} parent=19 // pred_fallthru
        _
      // Predicated region
      $region41: #{forward.4} parent=19 // pred_check
        %p437 = pneg %p190
      $region42: #{forward.4} parent=19 // pred_check_branch
        %439 = sbr.rel (%p437) target = $region44
      $region43: #{forward.4} parent=19 // pred_region
        %p440 = scmp.lt.s32.totalorder %s19, 1
        %s441 = scalar_select %p440, %s19, 1
        %s442 = smul.addr %s441, 2
        %s443 = scalar_lea.vmem %s6, %s442
      $region44: #{forward.4} parent=19 // pred_fallthru
        _
      // Predicated region
      $region45: #{forward.4} parent=19 // pred_check
        %p444 = pneg %p216
      $region46: #{forward.4} parent=19 // pred_check_branch
        %446 = sbr.rel (%p444) target = $region48
      $region47: #{forward.4} parent=19 // pred_region
        %p447 = scmp.lt.s32.totalorder %s19, 1
        %s448 = scalar_select %p447, %s19, 1
        %s449 = smul.addr %s448, 8
        %s450 = smul.addr %s449, 4
        %s451 = scalar_lea.vmem %s7, %s450
      $region48: #{forward.4} parent=19 // pred_fallthru
        _
      // Predicated region
      $region49: #{forward.4} parent=19 // pred_check
        %p452 = pneg %p242
      $region50: #{forward.4} parent=19 // pred_check_branch
        %454 = sbr.rel (%p452) target = $region52
      $region51: #{forward.4} parent=19 // pred_region
        %p455 = scmp.lt.s32.totalorder %s19, 1
        %s456 = scalar_select %p455, %s19, 1
        %s457 = smul.addr %s456, 2
        %s458 = scalar_lea.vmem %s8, %s457
      $region52: #{forward.4} parent=19 // pred_fallthru
        _
      // Predicated region
      $region53: #{forward.4} parent=19 // pred_check
        %p459 = pneg %p268
      $region54: #{forward.4} parent=19 // pred_check_branch
        %461 = sbr.rel (%p459) target = $region56
      $region55: #{forward.4} parent=19 // pred_region
        %p462 = scmp.lt.s32.totalorder %s19, 1
        %s463 = scalar_select %p462, %s19, 1
        %s464 = smul.addr %s463, 32
        %s465 = smul.addr %s464, 4
        %s466 = scalar_lea.vmem %s9, %s465
      $region56: #{forward.4} parent=19 // pred_fallthru
        _
      // Predicated region
      $region57: #{forward.4} parent=19 // pred_check
        %p467 = pneg %p294
      $region58: #{forward.4} parent=19 // pred_check_branch
        %469 = sbr.rel (%p467) target = $region60
      $region59: #{forward.4} parent=19 // pred_region
        %p470 = scmp.lt.s32.totalorder %s19, 1
        %s471 = scalar_select %p470, %s19, 1
        %s472 = smul.addr %s471, 2
        %s473 = scalar_lea.vmem %s10, %s472
      $region60: #{forward.4} parent=19 // pred_fallthru
        _
      // Predicated region
      $region61: #{forward.4} parent=19 // pred_check
        %p474 = pneg %p320
      $region62: #{forward.4} parent=19 // pred_check_branch
        %476 = sbr.rel (%p474) target = $region64
      $region63: #{forward.4} parent=19 // pred_region
        %p477 = scmp.lt.s32.totalorder %s19, 1
        %s478 = scalar_select %p477, %s19, 1
        %s479 = smul.addr %s478, 2
        %s480 = scalar_lea.vmem %s11, %s479
      $region64: #{forward.4} parent=19 // pred_fallthru
        _
      // Predicated region
      $region65: #{forward.4} parent=19 // pred_check
        %p481 = pneg %p346
      $region66: #{forward.4} parent=19 // pred_check_branch
        %483 = sbr.rel (%p481) target = $region68
      $region67: #{forward.4} parent=19 // pred_region
        %p484 = scmp.lt.s32.totalorder %s19, 1
        %s485 = scalar_select %p484, %s19, 1
        %s486 = smul.addr %s485, 2
        %s487 = scalar_lea.vmem %s12, %s486
      $region68: #{forward.4} parent=19 // pred_fallthru
        _
    $region20: #{forward.4} parent=5 // pred_fallthru
      _
    %p488 = scmp.le.s32.totalorder 1, %s19
    %p489 = scmp.lt.s32.totalorder %s19, 3
    %p490 = pnand %p488, %p489
    %p491 = pneg %p490
    // Predicated region
    $region69: #{forward.4} parent=5 // pred_check
      _
    $region70: #{forward.4} parent=5 // pred_check_branch
      %493 = sbr.rel (%p490) target = $region72
    $region71: #{forward.4} parent=5 // pred_region
      %s494 = ssub.s32 %s19, 1
      %p495 = pneg %p40
      %p496 = pneg %p37
      %p497 = scmp.lt.s32.totalorder %s24, 1
      %s498 = scalar_select %p497, %s24, 1
      %s499 = smul.addr %s498, 8
      %s500 = smul.addr %s499, 4
      %s501 = scalar_lea.vmem %s1, %s500
      %p502 = pneg %p66
      %p503 = pneg %p63
      %p504 = scmp.lt.s32.totalorder %s24, 1
      %s505 = scalar_select %p504, %s24, 1
      %s506 = smul.addr %s505, 2
      %s507 = scalar_lea.vmem %s2, %s506
      %p508 = pneg %p92
      %p509 = pneg %p89
      %p510 = scmp.lt.s32.totalorder %s24, 1
      %s511 = scalar_select %p510, %s24, 1
      %s512 = smul.addr %s511, 8
      %s513 = smul.addr %s512, 4
      %s514 = scalar_lea.vmem %s3, %s513
      %p515 = pneg %p118
      %p516 = pneg %p115
      %p517 = scmp.lt.s32.totalorder %s24, 1
      %s518 = scalar_select %p517, %s24, 1
      %s519 = smul.addr %s518, 2
      %s520 = scalar_lea.vmem %s4, %s519
      %p521 = pneg %p144
      %p522 = pneg %p141
      %p523 = scmp.lt.s32.totalorder %s24, 1
      %s524 = scalar_select %p523, %s24, 1
      %s525 = smul.addr %s524, 2
      %s526 = scalar_lea.vmem %s5, %s525
      %p527 = pneg %p170
      %p528 = pneg %p167
      %p529 = scmp.lt.s32.totalorder %s24, 1
      %s530 = scalar_select %p529, %s24, 1
      %s531 = smul.addr %s530, 2
      %s532 = scalar_lea.vmem %s6, %s531
      %p533 = pneg %p196
      %p534 = pneg %p193
      %p535 = scmp.lt.s32.totalorder %s24, 1
      %s536 = scalar_select %p535, %s24, 1
      %s537 = smul.addr %s536, 8
      %s538 = smul.addr %s537, 4
      %s539 = scalar_lea.vmem %s7, %s538
      %p540 = pneg %p222
      %p541 = pneg %p219
      %p542 = scmp.lt.s32.totalorder %s24, 1
      %s543 = scalar_select %p542, %s24, 1
      %s544 = smul.addr %s543, 2
      %s545 = scalar_lea.vmem %s8, %s544
      %p546 = pneg %p248
      %p547 = pneg %p245
      %p548 = scmp.lt.s32.totalorder %s24, 1
      %s549 = scalar_select %p548, %s24, 1
      %s550 = smul.addr %s549, 32
      %s551 = smul.addr %s550, 4
      %s552 = scalar_lea.vmem %s9, %s551
      %p553 = pneg %p274
      %p554 = pneg %p271
      %p555 = scmp.lt.s32.totalorder %s24, 1
      %s556 = scalar_select %p555, %s24, 1
      %s557 = smul.addr %s556, 2
      %s558 = scalar_lea.vmem %s10, %s557
      %p559 = pneg %p300
      %p560 = pneg %p297
      %p561 = scmp.lt.s32.totalorder %s24, 1
      %s562 = scalar_select %p561, %s24, 1
      %s563 = smul.addr %s562, 2
      %s564 = scalar_lea.vmem %s11, %s563
      %p565 = pneg %p326
      %p566 = pneg %p323
      %p567 = scmp.lt.s32.totalorder %s24, 1
      %s568 = scalar_select %p567, %s24, 1
      %s569 = smul.addr %s568, 2
      %s570 = scalar_lea.vmem %s12, %s569
      %p571 = pneg %p352
      %p572 = pneg %p349
      %p573 = pneg %p378
      %p574 = pneg %p375
      %p575 = scmp.lt.s32.totalorder %s24, 1
      %s576 = scalar_select %p575, %s24, 1
      %s577 = smul.addr %s576, 2
      %s578 = smul.addr %s577, 8
      %s579 = scalar_lea.vmem %s13, %s578
      %p580 = scmp.lt.s32.totalorder %s24, 1
      %s581 = scalar_select %p580, %s24, 1
      %s582 = smul.addr %s581, 8
      %s583 = smul.addr %s582, 4
      %s584 = scalar_lea.vmem %s1, %s583
      %p585 = scmp.lt.s32.totalorder %s24, 1
      %s586 = scalar_select %p585, %s24, 1
      %s587 = smul.addr %s586, 2
      %s588 = scalar_lea.vmem %s2, %s587
      %p589 = scmp.lt.s32.totalorder %s24, 1
      %s590 = scalar_select %p589, %s24, 1
      %s591 = smul.addr %s590, 8
      %s592 = smul.addr %s591, 4
      %s593 = scalar_lea.vmem %s3, %s592
      %p594 = scmp.lt.s32.totalorder %s24, 1
      %s595 = scalar_select %p594, %s24, 1
      %s596 = smul.addr %s595, 2
      %s597 = scalar_lea.vmem %s4, %s596
      %p598 = scmp.lt.s32.totalorder %s24, 1
      %s599 = scalar_select %p598, %s24, 1
      %s600 = smul.addr %s599, 2
      %s601 = scalar_lea.vmem %s5, %s600
      %p602 = scmp.lt.s32.totalorder %s24, 1
      %s603 = scalar_select %p602, %s24, 1
      %s604 = smul.addr %s603, 2
      %s605 = scalar_lea.vmem %s6, %s604
      %p606 = scmp.lt.s32.totalorder %s24, 1
      %s607 = scalar_select %p606, %s24, 1
      %s608 = smul.addr %s607, 8
      %s609 = smul.addr %s608, 4
      %s610 = scalar_lea.vmem %s7, %s609
      %p611 = scmp.lt.s32.totalorder %s24, 1
      %s612 = scalar_select %p611, %s24, 1
      %s613 = smul.addr %s612, 2
      %s614 = scalar_lea.vmem %s8, %s613
      %p615 = scmp.lt.s32.totalorder %s24, 1
      %s616 = scalar_select %p615, %s24, 1
      %s617 = smul.addr %s616, 32
      %s618 = smul.addr %s617, 4
      %s619 = scalar_lea.vmem %s9, %s618
      %p620 = scmp.lt.s32.totalorder %s24, 1
      %s621 = scalar_select %p620, %s24, 1
      %s622 = smul.addr %s621, 2
      %s623 = scalar_lea.vmem %s10, %s622
      %p624 = scmp.lt.s32.totalorder %s24, 1
      %s625 = scalar_select %p624, %s24, 1
      %s626 = smul.addr %s625, 2
      %s627 = scalar_lea.vmem %s11, %s626
      %p628 = scmp.lt.s32.totalorder %s24, 1
      %s629 = scalar_select %p628, %s24, 1
      %s630 = smul.addr %s629, 2
      %s631 = scalar_lea.vmem %s12, %s630
      %p632 = scmp.lt.s32.totalorder %s24, 1
      %s633 = scalar_select %p632, %s24, 1
      %s634 = smul.addr %s633, 2
      %s635 = smul.addr %s634, 8
      %s636 = scalar_lea.vmem %s13, %s635
      %v638 = vld [vmem:[%s0] sm:$0xff]
      %v639 = vld [vmem:[%s0 + $0x8] sm:$0xff]
      %v640 = vpack.c.bf16 %v639, %v638
      %v641 = vld [vmem:[%s584] sm:$0xf]
      %v642 = vld [vmem:[%s584 + $0x4] sm:$0xf]
      %v643 = vld [vmem:[%s584 + $0x8] sm:$0xf]
      %v644 = vld [vmem:[%s584 + $0xc] sm:$0xf]
      %v645 = vld [vmem:[%s588] sm:$0x1]
      %v647 = vlaneseq
      %v648 = vshrl.u32 %v647, 7
      %v649 = vsub.s32 0, %v648
      %v650 = vrot.slane %v645, %v649
      %v656 = vunpack.c.l.b16 %v641
      %v657 = vunpack.c.l.b16 %v642
      %v658 = vunpack.c.l.b16 %v643
      %v659 = vunpack.c.l.b16 %v644
      %v660 = vpack.c.b16 %v657, %v656
      %v661 = vpack.c.b16 %v659, %v658
      %vm664 = vcmask 261120
      %v666 = vsel %vm664, %v640, 0
      %668 = vmatprep.subr.bf16.mxu0 0
      %669 = vmatpush1.bf16.msra.mxu0 0
      %670 = vmatprep.subr.bf16.mxu0 0
      %671 = vmatpush1.bf16.msra.mxu0 0
      %672 = vmatprep.subr.bf16.mxu0 0
      %673 = vmatpush1.bf16.msra.mxu0 0
      %674 = vmatprep.subr.bf16.mxu0 0
      %675 = vmatpush1.bf16.msra.mxu0 0
      %676 = vmatprep.subr.bf16.mxu0 0
      %677 = vmatpush1.bf16.msra.mxu0 0
      %678 = vmatprep.subr.bf16.mxu0 0
      %679 = vmatpush1.bf16.msra.mxu0 0
      %680 = vmatprep.subr.bf16.mxu0 0
      %681 = vmatpush1.bf16.msra.mxu0 %v661
      %682 = vmatprep.subr.bf16.mxu0 0
      %683 = vmatpush1.bf16.msra.mxu0 %v660
      %684 = vmatprep.subr.bf16.mxu0 0
      %685 = vmatpush2.bf16.msra.mxu0 0
      %686 = vmatprep.subr.bf16.mxu0 0
      %687 = vmatpush2.bf16.msra.mxu0 0
      %688 = vmatprep.subr.bf16.mxu0 0
      %689 = vmatpush2.bf16.msra.mxu0 0
      %690 = vmatprep.subr.bf16.mxu0 0
      %691 = vmatpush2.bf16.msra.mxu0 0
      %692 = vmatprep.subr.bf16.mxu0 0
      %693 = vmatpush2.bf16.msra.mxu0 0
      %694 = vmatprep.subr.bf16.mxu0 0
      %695 = vmatpush2.bf16.msra.mxu0 0
      %696 = vmatprep.subr.bf16.mxu0 0
      %697 = vmatpush2.bf16.msra.mxu0 0
      %698 = vmatprep.subr.bf16.mxu0 0
      %699 = vmatpush2.bf16.msra.mxu0 0
      %700 = vmatprep.mubr.bf16.mxu0 0
      %701 = vmatmul.mubr.bf16.gmra.mxu0 %v666
      %v702 = vpop.f32.mrf.mxu0
      %v703 = vadd.f32 %v650, %v702
      %v704 = vpop.f32.mrf.mxu0
      %v705 = vpop.f32.mrf.mxu0
      %v706 = vadd.f32 %v650, %v705
      %v707 = vpop.f32.mrf.mxu0
      %708 = vdwg.mxu0
      %710 = vrot.lane.b32.xlu0 %v703, 96
      %v711 = vpop.permute.xlu0 %710
      %vm712 = vcmask 64512
      %v713 = vsel %vm712, %v703, 0
      %v715 = vsel %vm712, %v711, 0
      %717 = vmatprep.subr.mxu0 0.0
      %718 = vmatpush1.xpose.msra.mxu0 0.0
      %719 = vmatprep.subr.mxu0 0.0
      %720 = vmatpush1.xpose.msra.mxu0 0.0
      %721 = vmatprep.subr.mxu0 0.0
      %722 = vmatpush1.xpose.msra.mxu0 0.0
      %723 = vmatprep.subr.mxu0 0.0
      %724 = vmatpush1.xpose.msra.mxu0 0.0
      %725 = vmatprep.subr.mxu0 0.0
      %726 = vmatpush1.xpose.msra.mxu0 0.0
      %727 = vmatprep.subr.mxu0 0.0
      %728 = vmatpush1.xpose.msra.mxu0 0.0
      %729 = vmatprep.subr.mxu0 0.0
      %730 = vmatpush1.xpose.msra.mxu0 0.0
      %731 = vmatprep.subr.mxu0 0.0
      %732 = vmatpush1.xpose.msra.mxu0 0.0
      %733 = vmatprep.subr.mxu0 0.0
      %734 = vmatpush1.xpose.msra.mxu0 0.0
      %735 = vmatprep.subr.mxu0 0.0
      %736 = vmatpush1.xpose.msra.mxu0 0.0
      %737 = vmatprep.subr.mxu0 0.0
      %738 = vmatpush1.xpose.msra.mxu0 0.0
      %739 = vmatprep.subr.mxu0 0.0
      %740 = vmatpush1.xpose.msra.mxu0 0.0
      %741 = vmatprep.subr.mxu0 0.0
      %742 = vmatpush1.xpose.msra.mxu0 0.0
      %743 = vmatprep.subr.mxu0 0.0
      %744 = vmatpush1.xpose.msra.mxu0 0.0
      %745 = vmatprep.subr.mxu0 0.0
      %746 = vmatpush1.xpose.msra.mxu0 0.0
      %747 = vmatprep.subr.mxu0 0.0
      %748 = vmatpush1.xpose.msra.mxu0 %v715
      %749 = vmatprep.subr.mxu0 0.0
      %750 = vmatpush2.xpose.msra.mxu0 0.0
      %751 = vmatprep.subr.mxu0 0.0
      %752 = vmatpush2.xpose.msra.mxu0 0.0
      %753 = vmatprep.subr.mxu0 0.0
      %754 = vmatpush2.xpose.msra.mxu0 0.0
      %755 = vmatprep.subr.mxu0 0.0
      %756 = vmatpush2.xpose.msra.mxu0 0.0
      %757 = vmatprep.subr.mxu0 0.0
      %758 = vmatpush2.xpose.msra.mxu0 0.0
      %759 = vmatprep.subr.mxu0 0.0
      %760 = vmatpush2.xpose.msra.mxu0 0.0
      %761 = vmatprep.subr.mxu0 0.0
      %762 = vmatpush2.xpose.msra.mxu0 0.0
      %763 = vmatprep.subr.mxu0 0.0
      %764 = vmatpush2.xpose.msra.mxu0 0.0
      %765 = vmatprep.subr.mxu0 0.0
      %766 = vmatpush2.xpose.msra.mxu0 0.0
      %767 = vmatprep.subr.mxu0 0.0
      %768 = vmatpush2.xpose.msra.mxu0 0.0
      %769 = vmatprep.subr.mxu0 0.0
      %770 = vmatpush2.xpose.msra.mxu0 0.0
      %771 = vmatprep.subr.mxu0 0.0
      %772 = vmatpush2.xpose.msra.mxu0 0.0
      %773 = vmatprep.subr.mxu0 0.0
      %774 = vmatpush2.xpose.msra.mxu0 0.0
      %775 = vmatprep.subr.mxu0 0.0
      %776 = vmatpush2.xpose.msra.mxu0 0.0
      %777 = vmatprep.subr.mxu0 0.0
      %778 = vmatpush2.xpose.msra.mxu0 0.0
      %779 = vmatprep.subr.mxu0 0.0
      %780 = vmatpush2.xpose.msra.mxu0 0.0
      %781 = vmatprep.mubr.f32.mxu0 0.0
      %782 = vmatmul.mubr.f32.gmra.mxu0 %v713
      %v783 = vpop.f32.mrf.mxu0
      %v784 = vadd.f32 0.0, %v783
      %v785 = vpop.f32.mrf.mxu0
      %786 = vdwg.mxu0
      %v787 = vmul.f32 %v784, 0.35355338
      %v788 = vsel %vm712, %v787, -inf
      %789 = vmax.xlane.f32.xlu0 %v788
      %v790 = vpop.xlane.xlu0 %789
      %v791 = vsub.f32 %v787, %v790
      %v792 = vmul.f32 %v791, 1.442695
      %v793 = vpow.pop %v792
      %v794 = vsel %vm712, %v793, 0.0
      %795 = vadd.xlane.f32.xlu0 %v794
      %v796 = vpop.xlane.xlu0 %795
      %v797 = vrcp.pop %v796
      %v798 = vmul.f32 %v793, %v797
      %799 = vrot.lane.b32.xlu0 %v703, 64
      %v800 = vpop.permute.xlu0 %799
      %v803 = vsel %vm712, %v798, 0
      %805 = vmatprep.subr.mxu0 0.0
      %806 = vmatpush1.msra.mxu0 0.0
      %807 = vmatprep.subr.mxu0 0.0
      %808 = vmatpush1.msra.mxu0 0.0
      %809 = vmatprep.subr.mxu0 0.0
      %810 = vmatpush1.msra.mxu0 0.0
      %811 = vmatprep.subr.mxu0 0.0
      %812 = vmatpush1.msra.mxu0 0.0
      %813 = vmatprep.subr.mxu0 0.0
      %814 = vmatpush1.msra.mxu0 0.0
      %815 = vmatprep.subr.mxu0 0.0
      %816 = vmatpush1.msra.mxu0 0.0
      %817 = vmatprep.subr.mxu0 0.0
      %818 = vmatpush1.msra.mxu0 0.0
      %819 = vmatprep.subr.mxu0 0.0
      %820 = vmatpush1.msra.mxu0 0.0
      %821 = vmatprep.subr.mxu0 0.0
      %822 = vmatpush1.msra.mxu0 0.0
      %823 = vmatprep.subr.mxu0 0.0
      %824 = vmatpush1.msra.mxu0 0.0
      %825 = vmatprep.subr.mxu0 0.0
      %826 = vmatpush1.msra.mxu0 0.0
      %827 = vmatprep.subr.mxu0 0.0
      %828 = vmatpush1.msra.mxu0 0.0
      %829 = vmatprep.subr.mxu0 0.0
      %830 = vmatpush1.msra.mxu0 0.0
      %831 = vmatprep.subr.mxu0 0.0
      %832 = vmatpush1.msra.mxu0 0.0
      %833 = vmatprep.subr.mxu0 0.0
      %834 = vmatpush1.msra.mxu0 0.0
      %835 = vmatprep.subr.mxu0 0.0
      %836 = vmatpush1.msra.mxu0 %v800
      %837 = vmatprep.subr.mxu0 0.0
      %838 = vmatpush2.msra.mxu0 0.0
      %839 = vmatprep.subr.mxu0 0.0
      %840 = vmatpush2.msra.mxu0 0.0
      %841 = vmatprep.subr.mxu0 0.0
      %842 = vmatpush2.msra.mxu0 0.0
      %843 = vmatprep.subr.mxu0 0.0
      %844 = vmatpush2.msra.mxu0 0.0
      %845 = vmatprep.subr.mxu0 0.0
      %846 = vmatpush2.msra.mxu0 0.0
      %847 = vmatprep.subr.mxu0 0.0
      %848 = vmatpush2.msra.mxu0 0.0
      %849 = vmatprep.subr.mxu0 0.0
      %850 = vmatpush2.msra.mxu0 0.0
      %851 = vmatprep.subr.mxu0 0.0
      %852 = vmatpush2.msra.mxu0 0.0
      %853 = vmatprep.subr.mxu0 0.0
      %854 = vmatpush2.msra.mxu0 0.0
      %855 = vmatprep.subr.mxu0 0.0
      %856 = vmatpush2.msra.mxu0 0.0
      %857 = vmatprep.subr.mxu0 0.0
      %858 = vmatpush2.msra.mxu0 0.0
      %859 = vmatprep.subr.mxu0 0.0
      %860 = vmatpush2.msra.mxu0 0.0
      %861 = vmatprep.subr.mxu0 0.0
      %862 = vmatpush2.msra.mxu0 0.0
      %863 = vmatprep.subr.mxu0 0.0
      %864 = vmatpush2.msra.mxu0 0.0
      %865 = vmatprep.subr.mxu0 0.0
      %866 = vmatpush2.msra.mxu0 0.0
      %867 = vmatprep.subr.mxu0 0.0
      %868 = vmatpush2.msra.mxu0 0.0
      %869 = vmatprep.mubr.f32.mxu0 0.0
      %870 = vmatmul.mubr.f32.gmra.mxu0 %v803
      %v871 = vpop.f32.mrf.mxu0
      %v872 = vadd.f32 0.0, %v871
      %v873 = vpop.f32.mrf.mxu0
      %874 = vdwg.mxu0
      %875 = vrot.lane.b32.xlu0 %v703, 120
      %v876 = vpop.permute.xlu0 %875
      %877 = vrot.lane.b32.xlu0 %v703, 88
      %v878 = vpop.permute.xlu0 %877
      %v879 = vsel %vm712, %v876, 0
      %v881 = vsel %vm712, %v878, 0
      %883 = vmatprep.subr.mxu0 0.0
      %884 = vmatpush1.xpose.msra.mxu0 0.0
      %885 = vmatprep.subr.mxu0 0.0
      %886 = vmatpush1.xpose.msra.mxu0 0.0
      %887 = vmatprep.subr.mxu0 0.0
      %888 = vmatpush1.xpose.msra.mxu0 0.0
      %889 = vmatprep.subr.mxu0 0.0
      %890 = vmatpush1.xpose.msra.mxu0 0.0
      %891 = vmatprep.subr.mxu0 0.0
      %892 = vmatpush1.xpose.msra.mxu0 0.0
      %893 = vmatprep.subr.mxu0 0.0
      %894 = vmatpush1.xpose.msra.mxu0 0.0
      %895 = vmatprep.subr.mxu0 0.0
      %896 = vmatpush1.xpose.msra.mxu0 0.0
      %897 = vmatprep.subr.mxu0 0.0
      %898 = vmatpush1.xpose.msra.mxu0 0.0
      %899 = vmatprep.subr.mxu0 0.0
      %900 = vmatpush1.xpose.msra.mxu0 0.0
      %901 = vmatprep.subr.mxu0 0.0
      %902 = vmatpush1.xpose.msra.mxu0 0.0
      %903 = vmatprep.subr.mxu0 0.0
      %904 = vmatpush1.xpose.msra.mxu0 0.0
      %905 = vmatprep.subr.mxu0 0.0
      %906 = vmatpush1.xpose.msra.mxu0 0.0
      %907 = vmatprep.subr.mxu0 0.0
      %908 = vmatpush1.xpose.msra.mxu0 0.0
      %909 = vmatprep.subr.mxu0 0.0
      %910 = vmatpush1.xpose.msra.mxu0 0.0
      %911 = vmatprep.subr.mxu0 0.0
      %912 = vmatpush1.xpose.msra.mxu0 0.0
      %913 = vmatprep.subr.mxu0 0.0
      %914 = vmatpush1.xpose.msra.mxu0 %v881
      %915 = vmatprep.subr.mxu0 0.0
      %916 = vmatpush2.xpose.msra.mxu0 0.0
      %917 = vmatprep.subr.mxu0 0.0
      %918 = vmatpush2.xpose.msra.mxu0 0.0
      %919 = vmatprep.subr.mxu0 0.0
      %920 = vmatpush2.xpose.msra.mxu0 0.0
      %921 = vmatprep.subr.mxu0 0.0
      %922 = vmatpush2.xpose.msra.mxu0 0.0
      %923 = vmatprep.subr.mxu0 0.0
      %924 = vmatpush2.xpose.msra.mxu0 0.0
      %925 = vmatprep.subr.mxu0 0.0
      %926 = vmatpush2.xpose.msra.mxu0 0.0
      %927 = vmatprep.subr.mxu0 0.0
      %928 = vmatpush2.xpose.msra.mxu0 0.0
      %929 = vmatprep.subr.mxu0 0.0
      %930 = vmatpush2.xpose.msra.mxu0 0.0
      %931 = vmatprep.subr.mxu0 0.0
      %932 = vmatpush2.xpose.msra.mxu0 0.0
      %933 = vmatprep.subr.mxu0 0.0
      %934 = vmatpush2.xpose.msra.mxu0 0.0
      %935 = vmatprep.subr.mxu0 0.0
      %936 = vmatpush2.xpose.msra.mxu0 0.0
      %937 = vmatprep.subr.mxu0 0.0
      %938 = vmatpush2.xpose.msra.mxu0 0.0
      %939 = vmatprep.subr.mxu0 0.0
      %940 = vmatpush2.xpose.msra.mxu0 0.0
      %941 = vmatprep.subr.mxu0 0.0
      %942 = vmatpush2.xpose.msra.mxu0 0.0
      %943 = vmatprep.subr.mxu0 0.0
      %944 = vmatpush2.xpose.msra.mxu0 0.0
      %945 = vmatprep.subr.mxu0 0.0
      %946 = vmatpush2.xpose.msra.mxu0 0.0
      %947 = vmatprep.mubr.f32.mxu0 0.0
      %948 = vmatmul.mubr.f32.gmra.mxu0 %v879
      %v949 = vpop.f32.mrf.mxu0
      %v950 = vadd.f32 0.0, %v949
      %v951 = vpop.f32.mrf.mxu0
      %952 = vdwg.mxu0
      %v953 = vmul.f32 %v950, 0.35355338
      %v954 = vsel %vm712, %v953, -inf
      %955 = vmax.xlane.f32.xlu0 %v954
      %v956 = vpop.xlane.xlu0 %955
      %v957 = vsub.f32 %v953, %v956
      %v958 = vmul.f32 %v957, 1.442695
      %v959 = vpow.pop %v958
      %v960 = vsel %vm712, %v959, 0.0
      %961 = vadd.xlane.f32.xlu0 %v960
      %v962 = vpop.xlane.xlu0 %961
      %v963 = vrcp.pop %v962
      %v964 = vmul.f32 %v959, %v963
      %965 = vrot.lane.b32.xlu0 %v703, 56
      %v966 = vpop.permute.xlu0 %965
      %v969 = vsel %vm712, %v964, 0
      %971 = vmatprep.subr.mxu0 0.0
      %972 = vmatpush1.msra.mxu0 0.0
      %973 = vmatprep.subr.mxu0 0.0
      %974 = vmatpush1.msra.mxu0 0.0
      %975 = vmatprep.subr.mxu0 0.0
      %976 = vmatpush1.msra.mxu0 0.0
      %977 = vmatprep.subr.mxu0 0.0
      %978 = vmatpush1.msra.mxu0 0.0
      %979 = vmatprep.subr.mxu0 0.0
      %980 = vmatpush1.msra.mxu0 0.0
      %981 = vmatprep.subr.mxu0 0.0
      %982 = vmatpush1.msra.mxu0 0.0
      %983 = vmatprep.subr.mxu0 0.0
      %984 = vmatpush1.msra.mxu0 0.0
      %985 = vmatprep.subr.mxu0 0.0
      %986 = vmatpush1.msra.mxu0 0.0
      %987 = vmatprep.subr.mxu0 0.0
      %988 = vmatpush1.msra.mxu0 0.0
      %989 = vmatprep.subr.mxu0 0.0
      %990 = vmatpush1.msra.mxu0 0.0
      %991 = vmatprep.subr.mxu0 0.0
      %992 = vmatpush1.msra.mxu0 0.0
      %993 = vmatprep.subr.mxu0 0.0
      %994 = vmatpush1.msra.mxu0 0.0
      %995 = vmatprep.subr.mxu0 0.0
      %996 = vmatpush1.msra.mxu0 0.0
      %997 = vmatprep.subr.mxu0 0.0
      %998 = vmatpush1.msra.mxu0 0.0
      %999 = vmatprep.subr.mxu0 0.0
      %1000 = vmatpush1.msra.mxu0 0.0
      %1001 = vmatprep.subr.mxu0 0.0
      %1002 = vmatpush1.msra.mxu0 %v966
      %1003 = vmatprep.subr.mxu0 0.0
      %1004 = vmatpush2.msra.mxu0 0.0
      %1005 = vmatprep.subr.mxu0 0.0
      %1006 = vmatpush2.msra.mxu0 0.0
      %1007 = vmatprep.subr.mxu0 0.0
      %1008 = vmatpush2.msra.mxu0 0.0
      %1009 = vmatprep.subr.mxu0 0.0
      %1010 = vmatpush2.msra.mxu0 0.0
      %1011 = vmatprep.subr.mxu0 0.0
      %1012 = vmatpush2.msra.mxu0 0.0
      %1013 = vmatprep.subr.mxu0 0.0
      %1014 = vmatpush2.msra.mxu0 0.0
      %1015 = vmatprep.subr.mxu0 0.0
      %1016 = vmatpush2.msra.mxu0 0.0
      %1017 = vmatprep.subr.mxu0 0.0
      %1018 = vmatpush2.msra.mxu0 0.0
      %1019 = vmatprep.subr.mxu0 0.0
      %1020 = vmatpush2.msra.mxu0 0.0
      %1021 = vmatprep.subr.mxu0 0.0
      %1022 = vmatpush2.msra.mxu0 0.0
      %1023 = vmatprep.subr.mxu0 0.0
      %1024 = vmatpush2.msra.mxu0 0.0
      %1025 = vmatprep.subr.mxu0 0.0
      %1026 = vmatpush2.msra.mxu0 0.0
      %1027 = vmatprep.subr.mxu0 0.0
      %1028 = vmatpush2.msra.mxu0 0.0
      %1029 = vmatprep.subr.mxu0 0.0
      %1030 = vmatpush2.msra.mxu0 0.0
      %1031 = vmatprep.subr.mxu0 0.0
      %1032 = vmatpush2.msra.mxu0 0.0
      %1033 = vmatprep.subr.mxu0 0.0
      %1034 = vmatpush2.msra.mxu0 0.0
      %1035 = vmatprep.mubr.f32.mxu0 0.0
      %1036 = vmatmul.mubr.f32.gmra.mxu0 %v969
      %v1037 = vpop.f32.mrf.mxu0
      %v1038 = vadd.f32 0.0, %v1037
      %v1039 = vpop.f32.mrf.mxu0
      %1040 = vdwg.mxu0
      %1041 = vrot.lane.b32.xlu0 %v703, 112
      %v1042 = vpop.permute.xlu0 %1041
      %1043 = vrot.lane.b32.xlu0 %v703, 80
      %v1044 = vpop.permute.xlu0 %1043
      %v1045 = vsel %vm712, %v1042, 0
      %v1047 = vsel %vm712, %v1044, 0
      %1049 = vmatprep.subr.mxu0 0.0
      %1050 = vmatpush1.xpose.msra.mxu0 0.0
      %1051 = vmatprep.subr.mxu0 0.0
      %1052 = vmatpush1.xpose.msra.mxu0 0.0
      %1053 = vmatprep.subr.mxu0 0.0
      %1054 = vmatpush1.xpose.msra.mxu0 0.0
      %1055 = vmatprep.subr.mxu0 0.0
      %1056 = vmatpush1.xpose.msra.mxu0 0.0
      %1057 = vmatprep.subr.mxu0 0.0
      %1058 = vmatpush1.xpose.msra.mxu0 0.0
      %1059 = vmatprep.subr.mxu0 0.0
      %1060 = vmatpush1.xpose.msra.mxu0 0.0
      %1061 = vmatprep.subr.mxu0 0.0
      %1062 = vmatpush1.xpose.msra.mxu0 0.0
      %1063 = vmatprep.subr.mxu0 0.0
      %1064 = vmatpush1.xpose.msra.mxu0 0.0
      %1065 = vmatprep.subr.mxu0 0.0
      %1066 = vmatpush1.xpose.msra.mxu0 0.0
      %1067 = vmatprep.subr.mxu0 0.0
      %1068 = vmatpush1.xpose.msra.mxu0 0.0
      %1069 = vmatprep.subr.mxu0 0.0
      %1070 = vmatpush1.xpose.msra.mxu0 0.0
      %1071 = vmatprep.subr.mxu0 0.0
      %1072 = vmatpush1.xpose.msra.mxu0 0.0
      %1073 = vmatprep.subr.mxu0 0.0
      %1074 = vmatpush1.xpose.msra.mxu0 0.0
      %1075 = vmatprep.subr.mxu0 0.0
      %1076 = vmatpush1.xpose.msra.mxu0 0.0
      %1077 = vmatprep.subr.mxu0 0.0
      %1078 = vmatpush1.xpose.msra.mxu0 0.0
      %1079 = vmatprep.subr.mxu0 0.0
      %1080 = vmatpush1.xpose.msra.mxu0 %v1047
      %1081 = vmatprep.subr.mxu0 0.0
      %1082 = vmatpush2.xpose.msra.mxu0 0.0
      %1083 = vmatprep.subr.mxu0 0.0
      %1084 = vmatpush2.xpose.msra.mxu0 0.0
      %1085 = vmatprep.subr.mxu0 0.0
      %1086 = vmatpush2.xpose.msra.mxu0 0.0
      %1087 = vmatprep.subr.mxu0 0.0
      %1088 = vmatpush2.xpose.msra.mxu0 0.0
      %1089 = vmatprep.subr.mxu0 0.0
      %1090 = vmatpush2.xpose.msra.mxu0 0.0
      %1091 = vmatprep.subr.mxu0 0.0
      %1092 = vmatpush2.xpose.msra.mxu0 0.0
      %1093 = vmatprep.subr.mxu0 0.0
      %1094 = vmatpush2.xpose.msra.mxu0 0.0
      %1095 = vmatprep.subr.mxu0 0.0
      %1096 = vmatpush2.xpose.msra.mxu0 0.0
      %1097 = vmatprep.subr.mxu0 0.0
      %1098 = vmatpush2.xpose.msra.mxu0 0.0
      %1099 = vmatprep.subr.mxu0 0.0
      %1100 = vmatpush2.xpose.msra.mxu0 0.0
      %1101 = vmatprep.subr.mxu0 0.0
      %1102 = vmatpush2.xpose.msra.mxu0 0.0
      %1103 = vmatprep.subr.mxu0 0.0
      %1104 = vmatpush2.xpose.msra.mxu0 0.0
      %1105 = vmatprep.subr.mxu0 0.0
      %1106 = vmatpush2.xpose.msra.mxu0 0.0
      %1107 = vmatprep.subr.mxu0 0.0
      %1108 = vmatpush2.xpose.msra.mxu0 0.0
      %1109 = vmatprep.subr.mxu0 0.0
      %1110 = vmatpush2.xpose.msra.mxu0 0.0
      %1111 = vmatprep.subr.mxu0 0.0
      %1112 = vmatpush2.xpose.msra.mxu0 0.0
      %1113 = vmatprep.mubr.f32.mxu0 0.0
      %1114 = vmatmul.mubr.f32.gmra.mxu0 %v1045
      %v1115 = vpop.f32.mrf.mxu0
      %v1116 = vadd.f32 0.0, %v1115
      %v1117 = vpop.f32.mrf.mxu0
      %1118 = vdwg.mxu0
      %v1119 = vmul.f32 %v1116, 0.35355338
      %v1120 = vsel %vm712, %v1119, -inf
      %1121 = vmax.xlane.f32.xlu0 %v1120
      %v1122 = vpop.xlane.xlu0 %1121
      %v1123 = vsub.f32 %v1119, %v1122
      %v1124 = vmul.f32 %v1123, 1.442695
      %v1125 = vpow.pop %v1124
      %v1126 = vsel %vm712, %v1125, 0.0
      %1127 = vadd.xlane.f32.xlu0 %v1126
      %v1128 = vpop.xlane.xlu0 %1127
      %v1129 = vrcp.pop %v1128
      %v1130 = vmul.f32 %v1125, %v1129
      %1131 = vrot.lane.b32.xlu0 %v703, 48
      %v1132 = vpop.permute.xlu0 %1131
      %v1135 = vsel %vm712, %v1130, 0
      %1137 = vmatprep.subr.mxu0 0.0
      %1138 = vmatpush1.msra.mxu0 0.0
      %1139 = vmatprep.subr.mxu0 0.0
      %1140 = vmatpush1.msra.mxu0 0.0
      %1141 = vmatprep.subr.mxu0 0.0
      %1142 = vmatpush1.msra.mxu0 0.0
      %1143 = vmatprep.subr.mxu0 0.0
      %1144 = vmatpush1.msra.mxu0 0.0
      %1145 = vmatprep.subr.mxu0 0.0
      %1146 = vmatpush1.msra.mxu0 0.0
      %1147 = vmatprep.subr.mxu0 0.0
      %1148 = vmatpush1.msra.mxu0 0.0
      %1149 = vmatprep.subr.mxu0 0.0
      %1150 = vmatpush1.msra.mxu0 0.0
      %1151 = vmatprep.subr.mxu0 0.0
      %1152 = vmatpush1.msra.mxu0 0.0
      %1153 = vmatprep.subr.mxu0 0.0
      %1154 = vmatpush1.msra.mxu0 0.0
      %1155 = vmatprep.subr.mxu0 0.0
      %1156 = vmatpush1.msra.mxu0 0.0
      %1157 = vmatprep.subr.mxu0 0.0
      %1158 = vmatpush1.msra.mxu0 0.0
      %1159 = vmatprep.subr.mxu0 0.0
      %1160 = vmatpush1.msra.mxu0 0.0
      %1161 = vmatprep.subr.mxu0 0.0
      %1162 = vmatpush1.msra.mxu0 0.0
      %1163 = vmatprep.subr.mxu0 0.0
      %1164 = vmatpush1.msra.mxu0 0.0
      %1165 = vmatprep.subr.mxu0 0.0
      %1166 = vmatpush1.msra.mxu0 0.0
      %1167 = vmatprep.subr.mxu0 0.0
      %1168 = vmatpush1.msra.mxu0 %v1132
      %1169 = vmatprep.subr.mxu0 0.0
      %1170 = vmatpush2.msra.mxu0 0.0
      %1171 = vmatprep.subr.mxu0 0.0
      %1172 = vmatpush2.msra.mxu0 0.0
      %1173 = vmatprep.subr.mxu0 0.0
      %1174 = vmatpush2.msra.mxu0 0.0
      %1175 = vmatprep.subr.mxu0 0.0
      %1176 = vmatpush2.msra.mxu0 0.0
      %1177 = vmatprep.subr.mxu0 0.0
      %1178 = vmatpush2.msra.mxu0 0.0
      %1179 = vmatprep.subr.mxu0 0.0
      %1180 = vmatpush2.msra.mxu0 0.0
      %1181 = vmatprep.subr.mxu0 0.0
      %1182 = vmatpush2.msra.mxu0 0.0
      %1183 = vmatprep.subr.mxu0 0.0
      %1184 = vmatpush2.msra.mxu0 0.0
      %1185 = vmatprep.subr.mxu0 0.0
      %1186 = vmatpush2.msra.mxu0 0.0
      %1187 = vmatprep.subr.mxu0 0.0
      %1188 = vmatpush2.msra.mxu0 0.0
      %1189 = vmatprep.subr.mxu0 0.0
      %1190 = vmatpush2.msra.mxu0 0.0
      %1191 = vmatprep.subr.mxu0 0.0
      %1192 = vmatpush2.msra.mxu0 0.0
      %1193 = vmatprep.subr.mxu0 0.0
      %1194 = vmatpush2.msra.mxu0 0.0
      %1195 = vmatprep.subr.mxu0 0.0
      %1196 = vmatpush2.msra.mxu0 0.0
      %1197 = vmatprep.subr.mxu0 0.0
      %1198 = vmatpush2.msra.mxu0 0.0
      %1199 = vmatprep.subr.mxu0 0.0
      %1200 = vmatpush2.msra.mxu0 0.0
      %1201 = vmatprep.mubr.f32.mxu0 0.0
      %1202 = vmatmul.mubr.f32.gmra.mxu0 %v1135
      %v1203 = vpop.f32.mrf.mxu0
      %v1204 = vadd.f32 0.0, %v1203
      %v1205 = vpop.f32.mrf.mxu0
      %1206 = vdwg.mxu0
      %1207 = vrot.lane.b32.xlu0 %v703, 104
      %v1208 = vpop.permute.xlu0 %1207
      %1209 = vrot.lane.b32.xlu0 %v703, 72
      %v1210 = vpop.permute.xlu0 %1209
      %v1211 = vsel %vm712, %v1208, 0
      %v1213 = vsel %vm712, %v1210, 0
      %1215 = vmatprep.subr.mxu0 0.0
      %1216 = vmatpush1.xpose.msra.mxu0 0.0
      %1217 = vmatprep.subr.mxu0 0.0
      %1218 = vmatpush1.xpose.msra.mxu0 0.0
      %1219 = vmatprep.subr.mxu0 0.0
      %1220 = vmatpush1.xpose.msra.mxu0 0.0
      %1221 = vmatprep.subr.mxu0 0.0
      %1222 = vmatpush1.xpose.msra.mxu0 0.0
      %1223 = vmatprep.subr.mxu0 0.0
      %1224 = vmatpush1.xpose.msra.mxu0 0.0
      %1225 = vmatprep.subr.mxu0 0.0
      %1226 = vmatpush1.xpose.msra.mxu0 0.0
      %1227 = vmatprep.subr.mxu0 0.0
      %1228 = vmatpush1.xpose.msra.mxu0 0.0
      %1229 = vmatprep.subr.mxu0 0.0
      %1230 = vmatpush1.xpose.msra.mxu0 0.0
      %1231 = vmatprep.subr.mxu0 0.0
      %1232 = vmatpush1.xpose.msra.mxu0 0.0
      %1233 = vmatprep.subr.mxu0 0.0
      %1234 = vmatpush1.xpose.msra.mxu0 0.0
      %1235 = vmatprep.subr.mxu0 0.0
      %1236 = vmatpush1.xpose.msra.mxu0 0.0
      %1237 = vmatprep.subr.mxu0 0.0
      %1238 = vmatpush1.xpose.msra.mxu0 0.0
      %1239 = vmatprep.subr.mxu0 0.0
      %1240 = vmatpush1.xpose.msra.mxu0 0.0
      %1241 = vmatprep.subr.mxu0 0.0
      %1242 = vmatpush1.xpose.msra.mxu0 0.0
      %1243 = vmatprep.subr.mxu0 0.0
      %1244 = vmatpush1.xpose.msra.mxu0 0.0
      %1245 = vmatprep.subr.mxu0 0.0
      %1246 = vmatpush1.xpose.msra.mxu0 %v1213
      %1247 = vmatprep.subr.mxu0 0.0
      %1248 = vmatpush2.xpose.msra.mxu0 0.0
      %1249 = vmatprep.subr.mxu0 0.0
      %1250 = vmatpush2.xpose.msra.mxu0 0.0
      %1251 = vmatprep.subr.mxu0 0.0
      %1252 = vmatpush2.xpose.msra.mxu0 0.0
      %1253 = vmatprep.subr.mxu0 0.0
      %1254 = vmatpush2.xpose.msra.mxu0 0.0
      %1255 = vmatprep.subr.mxu0 0.0
      %1256 = vmatpush2.xpose.msra.mxu0 0.0
      %1257 = vmatprep.subr.mxu0 0.0
      %1258 = vmatpush2.xpose.msra.mxu0 0.0
      %1259 = vmatprep.subr.mxu0 0.0
      %1260 = vmatpush2.xpose.msra.mxu0 0.0
      %1261 = vmatprep.subr.mxu0 0.0
      %1262 = vmatpush2.xpose.msra.mxu0 0.0
      %1263 = vmatprep.subr.mxu0 0.0
      %1264 = vmatpush2.xpose.msra.mxu0 0.0
      %1265 = vmatprep.subr.mxu0 0.0
      %1266 = vmatpush2.xpose.msra.mxu0 0.0
      %1267 = vmatprep.subr.mxu0 0.0
      %1268 = vmatpush2.xpose.msra.mxu0 0.0
      %1269 = vmatprep.subr.mxu0 0.0
      %1270 = vmatpush2.xpose.msra.mxu0 0.0
      %1271 = vmatprep.subr.mxu0 0.0
      %1272 = vmatpush2.xpose.msra.mxu0 0.0
      %1273 = vmatprep.subr.mxu0 0.0
      %1274 = vmatpush2.xpose.msra.mxu0 0.0
      %1275 = vmatprep.subr.mxu0 0.0
      %1276 = vmatpush2.xpose.msra.mxu0 0.0
      %1277 = vmatprep.subr.mxu0 0.0
      %1278 = vmatpush2.xpose.msra.mxu0 0.0
      %1279 = vmatprep.mubr.f32.mxu0 0.0
      %1280 = vmatmul.mubr.f32.gmra.mxu0 %v1211
      %v1281 = vpop.f32.mrf.mxu0
      %v1282 = vadd.f32 0.0, %v1281
      %v1283 = vpop.f32.mrf.mxu0
      %1284 = vdwg.mxu0
      %v1285 = vmul.f32 %v1282, 0.35355338
      %v1286 = vsel %vm712, %v1285, -inf
      %1287 = vmax.xlane.f32.xlu0 %v1286
      %v1288 = vpop.xlane.xlu0 %1287
      %v1289 = vsub.f32 %v1285, %v1288
      %v1290 = vmul.f32 %v1289, 1.442695
      %v1291 = vpow.pop %v1290
      %v1292 = vsel %vm712, %v1291, 0.0
      %1293 = vadd.xlane.f32.xlu0 %v1292
      %v1294 = vpop.xlane.xlu0 %1293
      %v1295 = vrcp.pop %v1294
      %v1296 = vmul.f32 %v1291, %v1295
      %1297 = vrot.lane.b32.xlu0 %v703, 40
      %v1298 = vpop.permute.xlu0 %1297
      %v1301 = vsel %vm712, %v1296, 0
      %1303 = vmatprep.subr.mxu0 0.0
      %1304 = vmatpush1.msra.mxu0 0.0
      %1305 = vmatprep.subr.mxu0 0.0
      %1306 = vmatpush1.msra.mxu0 0.0
      %1307 = vmatprep.subr.mxu0 0.0
      %1308 = vmatpush1.msra.mxu0 0.0
      %1309 = vmatprep.subr.mxu0 0.0
      %1310 = vmatpush1.msra.mxu0 0.0
      %1311 = vmatprep.subr.mxu0 0.0
      %1312 = vmatpush1.msra.mxu0 0.0
      %1313 = vmatprep.subr.mxu0 0.0
      %1314 = vmatpush1.msra.mxu0 0.0
      %1315 = vmatprep.subr.mxu0 0.0
      %1316 = vmatpush1.msra.mxu0 0.0
      %1317 = vmatprep.subr.mxu0 0.0
      %1318 = vmatpush1.msra.mxu0 0.0
      %1319 = vmatprep.subr.mxu0 0.0
      %1320 = vmatpush1.msra.mxu0 0.0
      %1321 = vmatprep.subr.mxu0 0.0
      %1322 = vmatpush1.msra.mxu0 0.0
      %1323 = vmatprep.subr.mxu0 0.0
      %1324 = vmatpush1.msra.mxu0 0.0
      %1325 = vmatprep.subr.mxu0 0.0
      %1326 = vmatpush1.msra.mxu0 0.0
      %1327 = vmatprep.subr.mxu0 0.0
      %1328 = vmatpush1.msra.mxu0 0.0
      %1329 = vmatprep.subr.mxu0 0.0
      %1330 = vmatpush1.msra.mxu0 0.0
      %1331 = vmatprep.subr.mxu0 0.0
      %1332 = vmatpush1.msra.mxu0 0.0
      %1333 = vmatprep.subr.mxu0 0.0
      %1334 = vmatpush1.msra.mxu0 %v1298
      %1335 = vmatprep.subr.mxu0 0.0
      %1336 = vmatpush2.msra.mxu0 0.0
      %1337 = vmatprep.subr.mxu0 0.0
      %1338 = vmatpush2.msra.mxu0 0.0
      %1339 = vmatprep.subr.mxu0 0.0
      %1340 = vmatpush2.msra.mxu0 0.0
      %1341 = vmatprep.subr.mxu0 0.0
      %1342 = vmatpush2.msra.mxu0 0.0
      %1343 = vmatprep.subr.mxu0 0.0
      %1344 = vmatpush2.msra.mxu0 0.0
      %1345 = vmatprep.subr.mxu0 0.0
      %1346 = vmatpush2.msra.mxu0 0.0
      %1347 = vmatprep.subr.mxu0 0.0
      %1348 = vmatpush2.msra.mxu0 0.0
      %1349 = vmatprep.subr.mxu0 0.0
      %1350 = vmatpush2.msra.mxu0 0.0
      %1351 = vmatprep.subr.mxu0 0.0
      %1352 = vmatpush2.msra.mxu0 0.0
      %1353 = vmatprep.subr.mxu0 0.0
      %1354 = vmatpush2.msra.mxu0 0.0
      %1355 = vmatprep.subr.mxu0 0.0
      %1356 = vmatpush2.msra.mxu0 0.0
      %1357 = vmatprep.subr.mxu0 0.0
      %1358 = vmatpush2.msra.mxu0 0.0
      %1359 = vmatprep.subr.mxu0 0.0
      %1360 = vmatpush2.msra.mxu0 0.0
      %1361 = vmatprep.subr.mxu0 0.0
      %1362 = vmatpush2.msra.mxu0 0.0
      %1363 = vmatprep.subr.mxu0 0.0
      %1364 = vmatpush2.msra.mxu0 0.0
      %1365 = vmatprep.subr.mxu0 0.0
      %1366 = vmatpush2.msra.mxu0 0.0
      %1367 = vmatprep.mubr.f32.mxu0 0.0
      %1368 = vmatmul.mubr.f32.gmra.mxu0 %v1301
      %v1369 = vpop.f32.mrf.mxu0
      %v1370 = vadd.f32 0.0, %v1369
      %v1371 = vpop.f32.mrf.mxu0
      %1372 = vdwg.mxu0
      %1374 = vrot.lane.b32.xlu0 %v1038, 8
      %v1375 = vpop.permute.xlu0 %1374
      %1378 = vrot.lane.b32.xlu0 %v1204, 16
      %v1379 = vpop.permute.xlu0 %1378
      %1382 = vrot.lane.b32.xlu0 %v1370, 24
      %v1383 = vpop.permute.xlu0 %1382
      %v1385 = vsel %vm712, %v872, %v1375
      %vm1386 = vcmask 130048
      %v1387 = vsel %vm1386, %v1385, %v1379
      %vm1388 = vcmask 195584
      %v1389 = vsel %vm1388, %v1387, %v1383
      %1391 = vrot.lane.b32.xlu0 %v706, 96
      %v1392 = vpop.permute.xlu0 %1391
      %v1393 = vsel %vm712, %v706, 0
      %v1395 = vsel %vm712, %v1392, 0
      %1397 = vmatprep.subr.mxu0 0.0
      %1398 = vmatpush1.xpose.msra.mxu0 0.0
      %1399 = vmatprep.subr.mxu0 0.0
      %1400 = vmatpush1.xpose.msra.mxu0 0.0
      %1401 = vmatprep.subr.mxu0 0.0
      %1402 = vmatpush1.xpose.msra.mxu0 0.0
      %1403 = vmatprep.subr.mxu0 0.0
      %1404 = vmatpush1.xpose.msra.mxu0 0.0
      %1405 = vmatprep.subr.mxu0 0.0
      %1406 = vmatpush1.xpose.msra.mxu0 0.0
      %1407 = vmatprep.subr.mxu0 0.0
      %1408 = vmatpush1.xpose.msra.mxu0 0.0
      %1409 = vmatprep.subr.mxu0 0.0
      %1410 = vmatpush1.xpose.msra.mxu0 0.0
      %1411 = vmatprep.subr.mxu0 0.0
      %1412 = vmatpush1.xpose.msra.mxu0 0.0
      %1413 = vmatprep.subr.mxu0 0.0
      %1414 = vmatpush1.xpose.msra.mxu0 0.0
      %1415 = vmatprep.subr.mxu0 0.0
      %1416 = vmatpush1.xpose.msra.mxu0 0.0
      %1417 = vmatprep.subr.mxu0 0.0
      %1418 = vmatpush1.xpose.msra.mxu0 0.0
      %1419 = vmatprep.subr.mxu0 0.0
      %1420 = vmatpush1.xpose.msra.mxu0 0.0
      %1421 = vmatprep.subr.mxu0 0.0
      %1422 = vmatpush1.xpose.msra.mxu0 0.0
      %1423 = vmatprep.subr.mxu0 0.0
      %1424 = vmatpush1.xpose.msra.mxu0 0.0
      %1425 = vmatprep.subr.mxu0 0.0
      %1426 = vmatpush1.xpose.msra.mxu0 0.0
      %1427 = vmatprep.subr.mxu0 0.0
      %1428 = vmatpush1.xpose.msra.mxu0 %v1395
      %1429 = vmatprep.subr.mxu0 0.0
      %1430 = vmatpush2.xpose.msra.mxu0 0.0
      %1431 = vmatprep.subr.mxu0 0.0
      %1432 = vmatpush2.xpose.msra.mxu0 0.0
      %1433 = vmatprep.subr.mxu0 0.0
      %1434 = vmatpush2.xpose.msra.mxu0 0.0
      %1435 = vmatprep.subr.mxu0 0.0
      %1436 = vmatpush2.xpose.msra.mxu0 0.0
      %1437 = vmatprep.subr.mxu0 0.0
      %1438 = vmatpush2.xpose.msra.mxu0 0.0
      %1439 = vmatprep.subr.mxu0 0.0
      %1440 = vmatpush2.xpose.msra.mxu0 0.0
      %1441 = vmatprep.subr.mxu0 0.0
      %1442 = vmatpush2.xpose.msra.mxu0 0.0
      %1443 = vmatprep.subr.mxu0 0.0
      %1444 = vmatpush2.xpose.msra.mxu0 0.0
      %1445 = vmatprep.subr.mxu0 0.0
      %1446 = vmatpush2.xpose.msra.mxu0 0.0
      %1447 = vmatprep.subr.mxu0 0.0
      %1448 = vmatpush2.xpose.msra.mxu0 0.0
      %1449 = vmatprep.subr.mxu0 0.0
      %1450 = vmatpush2.xpose.msra.mxu0 0.0
      %1451 = vmatprep.subr.mxu0 0.0
      %1452 = vmatpush2.xpose.msra.mxu0 0.0
      %1453 = vmatprep.subr.mxu0 0.0
      %1454 = vmatpush2.xpose.msra.mxu0 0.0
      %1455 = vmatprep.subr.mxu0 0.0
      %1456 = vmatpush2.xpose.msra.mxu0 0.0
      %1457 = vmatprep.subr.mxu0 0.0
      %1458 = vmatpush2.xpose.msra.mxu0 0.0
      %1459 = vmatprep.subr.mxu0 0.0
      %1460 = vmatpush2.xpose.msra.mxu0 0.0
      %1461 = vmatprep.mubr.f32.mxu0 0.0
      %1462 = vmatmul.mubr.f32.gmra.mxu0 %v1393
      %v1463 = vpop.f32.mrf.mxu0
      %v1464 = vadd.f32 0.0, %v1463
      %v1465 = vpop.f32.mrf.mxu0
      %1466 = vdwg.mxu0
      %v1467 = vmul.f32 %v1464, 0.35355338
      %v1468 = vsel %vm712, %v1467, -inf
      %1469 = vmax.xlane.f32.xlu0 %v1468
      %v1470 = vpop.xlane.xlu0 %1469
      %v1471 = vsub.f32 %v1467, %v1470
      %v1472 = vmul.f32 %v1471, 1.442695
      %v1473 = vpow.pop %v1472
      %v1474 = vsel %vm712, %v1473, 0.0
      %1475 = vadd.xlane.f32.xlu0 %v1474
      %v1476 = vpop.xlane.xlu0 %1475
      %v1477 = vrcp.pop %v1476
      %v1478 = vmul.f32 %v1473, %v1477
      %1479 = vrot.lane.b32.xlu0 %v706, 64
      %v1480 = vpop.permute.xlu0 %1479
      %v1483 = vsel %vm712, %v1478, 0
      %1485 = vmatprep.subr.mxu0 0.0
      %1486 = vmatpush1.msra.mxu0 0.0
      %1487 = vmatprep.subr.mxu0 0.0
      %1488 = vmatpush1.msra.mxu0 0.0
      %1489 = vmatprep.subr.mxu0 0.0
      %1490 = vmatpush1.msra.mxu0 0.0
      %1491 = vmatprep.subr.mxu0 0.0
      %1492 = vmatpush1.msra.mxu0 0.0
      %1493 = vmatprep.subr.mxu0 0.0
      %1494 = vmatpush1.msra.mxu0 0.0
      %1495 = vmatprep.subr.mxu0 0.0
      %1496 = vmatpush1.msra.mxu0 0.0
      %1497 = vmatprep.subr.mxu0 0.0
      %1498 = vmatpush1.msra.mxu0 0.0
      %1499 = vmatprep.subr.mxu0 0.0
      %1500 = vmatpush1.msra.mxu0 0.0
      %1501 = vmatprep.subr.mxu0 0.0
      %1502 = vmatpush1.msra.mxu0 0.0
      %1503 = vmatprep.subr.mxu0 0.0
      %1504 = vmatpush1.msra.mxu0 0.0
      %1505 = vmatprep.subr.mxu0 0.0
      %1506 = vmatpush1.msra.mxu0 0.0
      %1507 = vmatprep.subr.mxu0 0.0
      %1508 = vmatpush1.msra.mxu0 0.0
      %1509 = vmatprep.subr.mxu0 0.0
      %1510 = vmatpush1.msra.mxu0 0.0
      %1511 = vmatprep.subr.mxu0 0.0
      %1512 = vmatpush1.msra.mxu0 0.0
      %1513 = vmatprep.subr.mxu0 0.0
      %1514 = vmatpush1.msra.mxu0 0.0
      %1515 = vmatprep.subr.mxu0 0.0
      %1516 = vmatpush1.msra.mxu0 %v1480
      %1517 = vmatprep.subr.mxu0 0.0
      %1518 = vmatpush2.msra.mxu0 0.0
      %1519 = vmatprep.subr.mxu0 0.0
      %1520 = vmatpush2.msra.mxu0 0.0
      %1521 = vmatprep.subr.mxu0 0.0
      %1522 = vmatpush2.msra.mxu0 0.0
      %1523 = vmatprep.subr.mxu0 0.0
      %1524 = vmatpush2.msra.mxu0 0.0
      %1525 = vmatprep.subr.mxu0 0.0
      %1526 = vmatpush2.msra.mxu0 0.0
      %1527 = vmatprep.subr.mxu0 0.0
      %1528 = vmatpush2.msra.mxu0 0.0
      %1529 = vmatprep.subr.mxu0 0.0
      %1530 = vmatpush2.msra.mxu0 0.0
      %1531 = vmatprep.subr.mxu0 0.0
      %1532 = vmatpush2.msra.mxu0 0.0
      %1533 = vmatprep.subr.mxu0 0.0
      %1534 = vmatpush2.msra.mxu0 0.0
      %1535 = vmatprep.subr.mxu0 0.0
      %1536 = vmatpush2.msra.mxu0 0.0
      %1537 = vmatprep.subr.mxu0 0.0
      %1538 = vmatpush2.msra.mxu0 0.0
      %1539 = vmatprep.subr.mxu0 0.0
      %1540 = vmatpush2.msra.mxu0 0.0
      %1541 = vmatprep.subr.mxu0 0.0
      %1542 = vmatpush2.msra.mxu0 0.0
      %1543 = vmatprep.subr.mxu0 0.0
      %1544 = vmatpush2.msra.mxu0 0.0
      %1545 = vmatprep.subr.mxu0 0.0
      %1546 = vmatpush2.msra.mxu0 0.0
      %1547 = vmatprep.subr.mxu0 0.0
      %1548 = vmatpush2.msra.mxu0 0.0
      %1549 = vmatprep.mubr.f32.mxu0 0.0
      %1550 = vmatmul.mubr.f32.gmra.mxu0 %v1483
      %v1551 = vpop.f32.mrf.mxu0
      %v1552 = vadd.f32 0.0, %v1551
      %v1553 = vpop.f32.mrf.mxu0
      %1554 = vdwg.mxu0
      %1555 = vrot.lane.b32.xlu0 %v706, 120
      %v1556 = vpop.permute.xlu0 %1555
      %1557 = vrot.lane.b32.xlu0 %v706, 88
      %v1558 = vpop.permute.xlu0 %1557
      %v1559 = vsel %vm712, %v1556, 0
      %v1561 = vsel %vm712, %v1558, 0
      %1563 = vmatprep.subr.mxu0 0.0
      %1564 = vmatpush1.xpose.msra.mxu0 0.0
      %1565 = vmatprep.subr.mxu0 0.0
      %1566 = vmatpush1.xpose.msra.mxu0 0.0
      %1567 = vmatprep.subr.mxu0 0.0
      %1568 = vmatpush1.xpose.msra.mxu0 0.0
      %1569 = vmatprep.subr.mxu0 0.0
      %1570 = vmatpush1.xpose.msra.mxu0 0.0
      %1571 = vmatprep.subr.mxu0 0.0
      %1572 = vmatpush1.xpose.msra.mxu0 0.0
      %1573 = vmatprep.subr.mxu0 0.0
      %1574 = vmatpush1.xpose.msra.mxu0 0.0
      %1575 = vmatprep.subr.mxu0 0.0
      %1576 = vmatpush1.xpose.msra.mxu0 0.0
      %1577 = vmatprep.subr.mxu0 0.0
      %1578 = vmatpush1.xpose.msra.mxu0 0.0
      %1579 = vmatprep.subr.mxu0 0.0
      %1580 = vmatpush1.xpose.msra.mxu0 0.0
      %1581 = vmatprep.subr.mxu0 0.0
      %1582 = vmatpush1.xpose.msra.mxu0 0.0
      %1583 = vmatprep.subr.mxu0 0.0
      %1584 = vmatpush1.xpose.msra.mxu0 0.0
      %1585 = vmatprep.subr.mxu0 0.0
      %1586 = vmatpush1.xpose.msra.mxu0 0.0
      %1587 = vmatprep.subr.mxu0 0.0
      %1588 = vmatpush1.xpose.msra.mxu0 0.0
      %1589 = vmatprep.subr.mxu0 0.0
      %1590 = vmatpush1.xpose.msra.mxu0 0.0
      %1591 = vmatprep.subr.mxu0 0.0
      %1592 = vmatpush1.xpose.msra.mxu0 0.0
      %1593 = vmatprep.subr.mxu0 0.0
      %1594 = vmatpush1.xpose.msra.mxu0 %v1561
      %1595 = vmatprep.subr.mxu0 0.0
      %1596 = vmatpush2.xpose.msra.mxu0 0.0
      %1597 = vmatprep.subr.mxu0 0.0
      %1598 = vmatpush2.xpose.msra.mxu0 0.0
      %1599 = vmatprep.subr.mxu0 0.0
      %1600 = vmatpush2.xpose.msra.mxu0 0.0
      %1601 = vmatprep.subr.mxu0 0.0
      %1602 = vmatpush2.xpose.msra.mxu0 0.0
      %1603 = vmatprep.subr.mxu0 0.0
      %1604 = vmatpush2.xpose.msra.mxu0 0.0
      %1605 = vmatprep.subr.mxu0 0.0
      %1606 = vmatpush2.xpose.msra.mxu0 0.0
      %1607 = vmatprep.subr.mxu0 0.0
      %1608 = vmatpush2.xpose.msra.mxu0 0.0
      %1609 = vmatprep.subr.mxu0 0.0
      %1610 = vmatpush2.xpose.msra.mxu0 0.0
      %1611 = vmatprep.subr.mxu0 0.0
      %1612 = vmatpush2.xpose.msra.mxu0 0.0
      %1613 = vmatprep.subr.mxu0 0.0
      %1614 = vmatpush2.xpose.msra.mxu0 0.0
      %1615 = vmatprep.subr.mxu0 0.0
      %1616 = vmatpush2.xpose.msra.mxu0 0.0
      %1617 = vmatprep.subr.mxu0 0.0
      %1618 = vmatpush2.xpose.msra.mxu0 0.0
      %1619 = vmatprep.subr.mxu0 0.0
      %1620 = vmatpush2.xpose.msra.mxu0 0.0
      %1621 = vmatprep.subr.mxu0 0.0
      %1622 = vmatpush2.xpose.msra.mxu0 0.0
      %1623 = vmatprep.subr.mxu0 0.0
      %1624 = vmatpush2.xpose.msra.mxu0 0.0
      %1625 = vmatprep.subr.mxu0 0.0
      %1626 = vmatpush2.xpose.msra.mxu0 0.0
      %1627 = vmatprep.mubr.f32.mxu0 0.0
      %1628 = vmatmul.mubr.f32.gmra.mxu0 %v1559
      %v1629 = vpop.f32.mrf.mxu0
      %v1630 = vadd.f32 0.0, %v1629
      %v1631 = vpop.f32.mrf.mxu0
      %1632 = vdwg.mxu0
      %v1633 = vmul.f32 %v1630, 0.35355338
      %v1634 = vsel %vm712, %v1633, -inf
      %1635 = vmax.xlane.f32.xlu0 %v1634
      %v1636 = vpop.xlane.xlu0 %1635
      %v1637 = vsub.f32 %v1633, %v1636
      %v1638 = vmul.f32 %v1637, 1.442695
      %v1639 = vpow.pop %v1638
      %v1640 = vsel %vm712, %v1639, 0.0
      %1641 = vadd.xlane.f32.xlu0 %v1640
      %v1642 = vpop.xlane.xlu0 %1641
      %v1643 = vrcp.pop %v1642
      %v1644 = vmul.f32 %v1639, %v1643
      %1645 = vrot.lane.b32.xlu0 %v706, 56
      %v1646 = vpop.permute.xlu0 %1645
      %v1649 = vsel %vm712, %v1644, 0
      %1651 = vmatprep.subr.mxu0 0.0
      %1652 = vmatpush1.msra.mxu0 0.0
      %1653 = vmatprep.subr.mxu0 0.0
      %1654 = vmatpush1.msra.mxu0 0.0
      %1655 = vmatprep.subr.mxu0 0.0
      %1656 = vmatpush1.msra.mxu0 0.0
      %1657 = vmatprep.subr.mxu0 0.0
      %1658 = vmatpush1.msra.mxu0 0.0
      %1659 = vmatprep.subr.mxu0 0.0
      %1660 = vmatpush1.msra.mxu0 0.0
      %1661 = vmatprep.subr.mxu0 0.0
      %1662 = vmatpush1.msra.mxu0 0.0
      %1663 = vmatprep.subr.mxu0 0.0
      %1664 = vmatpush1.msra.mxu0 0.0
      %1665 = vmatprep.subr.mxu0 0.0
      %1666 = vmatpush1.msra.mxu0 0.0
      %1667 = vmatprep.subr.mxu0 0.0
      %1668 = vmatpush1.msra.mxu0 0.0
      %1669 = vmatprep.subr.mxu0 0.0
      %1670 = vmatpush1.msra.mxu0 0.0
      %1671 = vmatprep.subr.mxu0 0.0
      %1672 = vmatpush1.msra.mxu0 0.0
      %1673 = vmatprep.subr.mxu0 0.0
      %1674 = vmatpush1.msra.mxu0 0.0
      %1675 = vmatprep.subr.mxu0 0.0
      %1676 = vmatpush1.msra.mxu0 0.0
      %1677 = vmatprep.subr.mxu0 0.0
      %1678 = vmatpush1.msra.mxu0 0.0
      %1679 = vmatprep.subr.mxu0 0.0
      %1680 = vmatpush1.msra.mxu0 0.0
      %1681 = vmatprep.subr.mxu0 0.0
      %1682 = vmatpush1.msra.mxu0 %v1646
      %1683 = vmatprep.subr.mxu0 0.0
      %1684 = vmatpush2.msra.mxu0 0.0
      %1685 = vmatprep.subr.mxu0 0.0
      %1686 = vmatpush2.msra.mxu0 0.0
      %1687 = vmatprep.subr.mxu0 0.0
      %1688 = vmatpush2.msra.mxu0 0.0
      %1689 = vmatprep.subr.mxu0 0.0
      %1690 = vmatpush2.msra.mxu0 0.0
      %1691 = vmatprep.subr.mxu0 0.0
      %1692 = vmatpush2.msra.mxu0 0.0
      %1693 = vmatprep.subr.mxu0 0.0
      %1694 = vmatpush2.msra.mxu0 0.0
      %1695 = vmatprep.subr.mxu0 0.0
      %1696 = vmatpush2.msra.mxu0 0.0
      %1697 = vmatprep.subr.mxu0 0.0
      %1698 = vmatpush2.msra.mxu0 0.0
      %1699 = vmatprep.subr.mxu0 0.0
      %1700 = vmatpush2.msra.mxu0 0.0
      %1701 = vmatprep.subr.mxu0 0.0
      %1702 = vmatpush2.msra.mxu0 0.0
      %1703 = vmatprep.subr.mxu0 0.0
      %1704 = vmatpush2.msra.mxu0 0.0
      %1705 = vmatprep.subr.mxu0 0.0
      %1706 = vmatpush2.msra.mxu0 0.0
      %1707 = vmatprep.subr.mxu0 0.0
      %1708 = vmatpush2.msra.mxu0 0.0
      %1709 = vmatprep.subr.mxu0 0.0
      %1710 = vmatpush2.msra.mxu0 0.0
      %1711 = vmatprep.subr.mxu0 0.0
      %1712 = vmatpush2.msra.mxu0 0.0
      %1713 = vmatprep.subr.mxu0 0.0
      %1714 = vmatpush2.msra.mxu0 0.0
      %1715 = vmatprep.mubr.f32.mxu0 0.0
      %1716 = vmatmul.mubr.f32.gmra.mxu0 %v1649
      %v1717 = vpop.f32.mrf.mxu0
      %v1718 = vadd.f32 0.0, %v1717
      %v1719 = vpop.f32.mrf.mxu0
      %1720 = vdwg.mxu0
      %1721 = vrot.lane.b32.xlu0 %v706, 112
      %v1722 = vpop.permute.xlu0 %1721
      %1723 = vrot.lane.b32.xlu0 %v706, 80
      %v1724 = vpop.permute.xlu0 %1723
      %v1725 = vsel %vm712, %v1722, 0
      %v1727 = vsel %vm712, %v1724, 0
      %1729 = vmatprep.subr.mxu0 0.0
      %1730 = vmatpush1.xpose.msra.mxu0 0.0
      %1731 = vmatprep.subr.mxu0 0.0
      %1732 = vmatpush1.xpose.msra.mxu0 0.0
      %1733 = vmatprep.subr.mxu0 0.0
      %1734 = vmatpush1.xpose.msra.mxu0 0.0
      %1735 = vmatprep.subr.mxu0 0.0
      %1736 = vmatpush1.xpose.msra.mxu0 0.0
      %1737 = vmatprep.subr.mxu0 0.0
      %1738 = vmatpush1.xpose.msra.mxu0 0.0
      %1739 = vmatprep.subr.mxu0 0.0
      %1740 = vmatpush1.xpose.msra.mxu0 0.0
      %1741 = vmatprep.subr.mxu0 0.0
      %1742 = vmatpush1.xpose.msra.mxu0 0.0
      %1743 = vmatprep.subr.mxu0 0.0
      %1744 = vmatpush1.xpose.msra.mxu0 0.0
      %1745 = vmatprep.subr.mxu0 0.0
      %1746 = vmatpush1.xpose.msra.mxu0 0.0
      %1747 = vmatprep.subr.mxu0 0.0
      %1748 = vmatpush1.xpose.msra.mxu0 0.0
      %1749 = vmatprep.subr.mxu0 0.0
      %1750 = vmatpush1.xpose.msra.mxu0 0.0
      %1751 = vmatprep.subr.mxu0 0.0
      %1752 = vmatpush1.xpose.msra.mxu0 0.0
      %1753 = vmatprep.subr.mxu0 0.0
      %1754 = vmatpush1.xpose.msra.mxu0 0.0
      %1755 = vmatprep.subr.mxu0 0.0
      %1756 = vmatpush1.xpose.msra.mxu0 0.0
      %1757 = vmatprep.subr.mxu0 0.0
      %1758 = vmatpush1.xpose.msra.mxu0 0.0
      %1759 = vmatprep.subr.mxu0 0.0
      %1760 = vmatpush1.xpose.msra.mxu0 %v1727
      %1761 = vmatprep.subr.mxu0 0.0
      %1762 = vmatpush2.xpose.msra.mxu0 0.0
      %1763 = vmatprep.subr.mxu0 0.0
      %1764 = vmatpush2.xpose.msra.mxu0 0.0
      %1765 = vmatprep.subr.mxu0 0.0
      %1766 = vmatpush2.xpose.msra.mxu0 0.0
      %1767 = vmatprep.subr.mxu0 0.0
      %1768 = vmatpush2.xpose.msra.mxu0 0.0
      %1769 = vmatprep.subr.mxu0 0.0
      %1770 = vmatpush2.xpose.msra.mxu0 0.0
      %1771 = vmatprep.subr.mxu0 0.0
      %1772 = vmatpush2.xpose.msra.mxu0 0.0
      %1773 = vmatprep.subr.mxu0 0.0
      %1774 = vmatpush2.xpose.msra.mxu0 0.0
      %1775 = vmatprep.subr.mxu0 0.0
      %1776 = vmatpush2.xpose.msra.mxu0 0.0
      %1777 = vmatprep.subr.mxu0 0.0
      %1778 = vmatpush2.xpose.msra.mxu0 0.0
      %1779 = vmatprep.subr.mxu0 0.0
      %1780 = vmatpush2.xpose.msra.mxu0 0.0
      %1781 = vmatprep.subr.mxu0 0.0
      %1782 = vmatpush2.xpose.msra.mxu0 0.0
      %1783 = vmatprep.subr.mxu0 0.0
      %1784 = vmatpush2.xpose.msra.mxu0 0.0
      %1785 = vmatprep.subr.mxu0 0.0
      %1786 = vmatpush2.xpose.msra.mxu0 0.0
      %1787 = vmatprep.subr.mxu0 0.0
      %1788 = vmatpush2.xpose.msra.mxu0 0.0
      %1789 = vmatprep.subr.mxu0 0.0
      %1790 = vmatpush2.xpose.msra.mxu0 0.0
      %1791 = vmatprep.subr.mxu0 0.0
      %1792 = vmatpush2.xpose.msra.mxu0 0.0
      %1793 = vmatprep.mubr.f32.mxu0 0.0
      %1794 = vmatmul.mubr.f32.gmra.mxu0 %v1725
      %v1795 = vpop.f32.mrf.mxu0
      %v1796 = vadd.f32 0.0, %v1795
      %v1797 = vpop.f32.mrf.mxu0
      %1798 = vdwg.mxu0
      %v1799 = vmul.f32 %v1796, 0.35355338
      %v1800 = vsel %vm712, %v1799, -inf
      %1801 = vmax.xlane.f32.xlu0 %v1800
      %v1802 = vpop.xlane.xlu0 %1801
      %v1803 = vsub.f32 %v1799, %v1802
      %v1804 = vmul.f32 %v1803, 1.442695
      %v1805 = vpow.pop %v1804
      %v1806 = vsel %vm712, %v1805, 0.0
      %1807 = vadd.xlane.f32.xlu0 %v1806
      %v1808 = vpop.xlane.xlu0 %1807
      %v1809 = vrcp.pop %v1808
      %v1810 = vmul.f32 %v1805, %v1809
      %1811 = vrot.lane.b32.xlu0 %v706, 48
      %v1812 = vpop.permute.xlu0 %1811
      %v1815 = vsel %vm712, %v1810, 0
      %1817 = vmatprep.subr.mxu0 0.0
      %1818 = vmatpush1.msra.mxu0 0.0
      %1819 = vmatprep.subr.mxu0 0.0
      %1820 = vmatpush1.msra.mxu0 0.0
      %1821 = vmatprep.subr.mxu0 0.0
      %1822 = vmatpush1.msra.mxu0 0.0
      %1823 = vmatprep.subr.mxu0 0.0
      %1824 = vmatpush1.msra.mxu0 0.0
      %1825 = vmatprep.subr.mxu0 0.0
      %1826 = vmatpush1.msra.mxu0 0.0
      %1827 = vmatprep.subr.mxu0 0.0
      %1828 = vmatpush1.msra.mxu0 0.0
      %1829 = vmatprep.subr.mxu0 0.0
      %1830 = vmatpush1.msra.mxu0 0.0
      %1831 = vmatprep.subr.mxu0 0.0
      %1832 = vmatpush1.msra.mxu0 0.0
      %1833 = vmatprep.subr.mxu0 0.0
      %1834 = vmatpush1.msra.mxu0 0.0
      %1835 = vmatprep.subr.mxu0 0.0
      %1836 = vmatpush1.msra.mxu0 0.0
      %1837 = vmatprep.subr.mxu0 0.0
      %1838 = vmatpush1.msra.mxu0 0.0
      %1839 = vmatprep.subr.mxu0 0.0
      %1840 = vmatpush1.msra.mxu0 0.0
      %1841 = vmatprep.subr.mxu0 0.0
      %1842 = vmatpush1.msra.mxu0 0.0
      %1843 = vmatprep.subr.mxu0 0.0
      %1844 = vmatpush1.msra.mxu0 0.0
      %1845 = vmatprep.subr.mxu0 0.0
      %1846 = vmatpush1.msra.mxu0 0.0
      %1847 = vmatprep.subr.mxu0 0.0
      %1848 = vmatpush1.msra.mxu0 %v1812
      %1849 = vmatprep.subr.mxu0 0.0
      %1850 = vmatpush2.msra.mxu0 0.0
      %1851 = vmatprep.subr.mxu0 0.0
      %1852 = vmatpush2.msra.mxu0 0.0
      %1853 = vmatprep.subr.mxu0 0.0
      %1854 = vmatpush2.msra.mxu0 0.0
      %1855 = vmatprep.subr.mxu0 0.0
      %1856 = vmatpush2.msra.mxu0 0.0
      %1857 = vmatprep.subr.mxu0 0.0
      %1858 = vmatpush2.msra.mxu0 0.0
      %1859 = vmatprep.subr.mxu0 0.0
      %1860 = vmatpush2.msra.mxu0 0.0
      %1861 = vmatprep.subr.mxu0 0.0
      %1862 = vmatpush2.msra.mxu0 0.0
      %1863 = vmatprep.subr.mxu0 0.0
      %1864 = vmatpush2.msra.mxu0 0.0
      %1865 = vmatprep.subr.mxu0 0.0
      %1866 = vmatpush2.msra.mxu0 0.0
      %1867 = vmatprep.subr.mxu0 0.0
      %1868 = vmatpush2.msra.mxu0 0.0
      %1869 = vmatprep.subr.mxu0 0.0
      %1870 = vmatpush2.msra.mxu0 0.0
      %1871 = vmatprep.subr.mxu0 0.0
      %1872 = vmatpush2.msra.mxu0 0.0
      %1873 = vmatprep.subr.mxu0 0.0
      %1874 = vmatpush2.msra.mxu0 0.0
      %1875 = vmatprep.subr.mxu0 0.0
      %1876 = vmatpush2.msra.mxu0 0.0
      %1877 = vmatprep.subr.mxu0 0.0
      %1878 = vmatpush2.msra.mxu0 0.0
      %1879 = vmatprep.subr.mxu0 0.0
      %1880 = vmatpush2.msra.mxu0 0.0
      %1881 = vmatprep.mubr.f32.mxu0 0.0
      %1882 = vmatmul.mubr.f32.gmra.mxu0 %v1815
      %v1883 = vpop.f32.mrf.mxu0
      %v1884 = vadd.f32 0.0, %v1883
      %v1885 = vpop.f32.mrf.mxu0
      %1886 = vdwg.mxu0
      %1887 = vrot.lane.b32.xlu0 %v706, 104
      %v1888 = vpop.permute.xlu0 %1887
      %1889 = vrot.lane.b32.xlu0 %v706, 72
      %v1890 = vpop.permute.xlu0 %1889
      %v1891 = vsel %vm712, %v1888, 0
      %v1893 = vsel %vm712, %v1890, 0
      %1895 = vmatprep.subr.mxu0 0.0
      %1896 = vmatpush1.xpose.msra.mxu0 0.0
      %1897 = vmatprep.subr.mxu0 0.0
      %1898 = vmatpush1.xpose.msra.mxu0 0.0
      %1899 = vmatprep.subr.mxu0 0.0
      %1900 = vmatpush1.xpose.msra.mxu0 0.0
      %1901 = vmatprep.subr.mxu0 0.0
      %1902 = vmatpush1.xpose.msra.mxu0 0.0
      %1903 = vmatprep.subr.mxu0 0.0
      %1904 = vmatpush1.xpose.msra.mxu0 0.0
      %1905 = vmatprep.subr.mxu0 0.0
      %1906 = vmatpush1.xpose.msra.mxu0 0.0
      %1907 = vmatprep.subr.mxu0 0.0
      %1908 = vmatpush1.xpose.msra.mxu0 0.0
      %1909 = vmatprep.subr.mxu0 0.0
      %1910 = vmatpush1.xpose.msra.mxu0 0.0
      %1911 = vmatprep.subr.mxu0 0.0
      %1912 = vmatpush1.xpose.msra.mxu0 0.0
      %1913 = vmatprep.subr.mxu0 0.0
      %1914 = vmatpush1.xpose.msra.mxu0 0.0
      %1915 = vmatprep.subr.mxu0 0.0
      %1916 = vmatpush1.xpose.msra.mxu0 0.0
      %1917 = vmatprep.subr.mxu0 0.0
      %1918 = vmatpush1.xpose.msra.mxu0 0.0
      %1919 = vmatprep.subr.mxu0 0.0
      %1920 = vmatpush1.xpose.msra.mxu0 0.0
      %1921 = vmatprep.subr.mxu0 0.0
      %1922 = vmatpush1.xpose.msra.mxu0 0.0
      %1923 = vmatprep.subr.mxu0 0.0
      %1924 = vmatpush1.xpose.msra.mxu0 0.0
      %1925 = vmatprep.subr.mxu0 0.0
      %1926 = vmatpush1.xpose.msra.mxu0 %v1893
      %1927 = vmatprep.subr.mxu0 0.0
      %1928 = vmatpush2.xpose.msra.mxu0 0.0
      %1929 = vmatprep.subr.mxu0 0.0
      %1930 = vmatpush2.xpose.msra.mxu0 0.0
      %1931 = vmatprep.subr.mxu0 0.0
      %1932 = vmatpush2.xpose.msra.mxu0 0.0
      %1933 = vmatprep.subr.mxu0 0.0
      %1934 = vmatpush2.xpose.msra.mxu0 0.0
      %1935 = vmatprep.subr.mxu0 0.0
      %1936 = vmatpush2.xpose.msra.mxu0 0.0
      %1937 = vmatprep.subr.mxu0 0.0
      %1938 = vmatpush2.xpose.msra.mxu0 0.0
      %1939 = vmatprep.subr.mxu0 0.0
      %1940 = vmatpush2.xpose.msra.mxu0 0.0
      %1941 = vmatprep.subr.mxu0 0.0
      %1942 = vmatpush2.xpose.msra.mxu0 0.0
      %1943 = vmatprep.subr.mxu0 0.0
      %1944 = vmatpush2.xpose.msra.mxu0 0.0
      %1945 = vmatprep.subr.mxu0 0.0
      %1946 = vmatpush2.xpose.msra.mxu0 0.0
      %1947 = vmatprep.subr.mxu0 0.0
      %1948 = vmatpush2.xpose.msra.mxu0 0.0
      %1949 = vmatprep.subr.mxu0 0.0
      %1950 = vmatpush2.xpose.msra.mxu0 0.0
      %1951 = vmatprep.subr.mxu0 0.0
      %1952 = vmatpush2.xpose.msra.mxu0 0.0
      %1953 = vmatprep.subr.mxu0 0.0
      %1954 = vmatpush2.xpose.msra.mxu0 0.0
      %1955 = vmatprep.subr.mxu0 0.0
      %1956 = vmatpush2.xpose.msra.mxu0 0.0
      %1957 = vmatprep.subr.mxu0 0.0
      %1958 = vmatpush2.xpose.msra.mxu0 0.0
      %1959 = vmatprep.mubr.f32.mxu0 0.0
      %1960 = vmatmul.mubr.f32.gmra.mxu0 %v1891
      %v1961 = vpop.f32.mrf.mxu0
      %v1962 = vadd.f32 0.0, %v1961
      %v1963 = vpop.f32.mrf.mxu0
      %1964 = vdwg.mxu0
      %v1965 = vmul.f32 %v1962, 0.35355338
      %v1966 = vsel %vm712, %v1965, -inf
      %1967 = vmax.xlane.f32.xlu0 %v1966
      %v1968 = vpop.xlane.xlu0 %1967
      %v1969 = vsub.f32 %v1965, %v1968
      %v1970 = vmul.f32 %v1969, 1.442695
      %v1971 = vpow.pop %v1970
      %v1972 = vsel %vm712, %v1971, 0.0
      %1973 = vadd.xlane.f32.xlu0 %v1972
      %v1974 = vpop.xlane.xlu0 %1973
      %v1975 = vrcp.pop %v1974
      %v1976 = vmul.f32 %v1971, %v1975
      %1977 = vrot.lane.b32.xlu0 %v706, 40
      %v1978 = vpop.permute.xlu0 %1977
      %v1981 = vsel %vm712, %v1976, 0
      %1983 = vmatprep.subr.mxu0 0.0
      %1984 = vmatpush1.msra.mxu0 0.0
      %1985 = vmatprep.subr.mxu0 0.0
      %1986 = vmatpush1.msra.mxu0 0.0
      %1987 = vmatprep.subr.mxu0 0.0
      %1988 = vmatpush1.msra.mxu0 0.0
      %1989 = vmatprep.subr.mxu0 0.0
      %1990 = vmatpush1.msra.mxu0 0.0
      %1991 = vmatprep.subr.mxu0 0.0
      %1992 = vmatpush1.msra.mxu0 0.0
      %1993 = vmatprep.subr.mxu0 0.0
      %1994 = vmatpush1.msra.mxu0 0.0
      %1995 = vmatprep.subr.mxu0 0.0
      %1996 = vmatpush1.msra.mxu0 0.0
      %1997 = vmatprep.subr.mxu0 0.0
      %1998 = vmatpush1.msra.mxu0 0.0
      %1999 = vmatprep.subr.mxu0 0.0
      %2000 = vmatpush1.msra.mxu0 0.0
      %2001 = vmatprep.subr.mxu0 0.0
      %2002 = vmatpush1.msra.mxu0 0.0
      %2003 = vmatprep.subr.mxu0 0.0
      %2004 = vmatpush1.msra.mxu0 0.0
      %2005 = vmatprep.subr.mxu0 0.0
      %2006 = vmatpush1.msra.mxu0 0.0
      %2007 = vmatprep.subr.mxu0 0.0
      %2008 = vmatpush1.msra.mxu0 0.0
      %2009 = vmatprep.subr.mxu0 0.0
      %2010 = vmatpush1.msra.mxu0 0.0
      %2011 = vmatprep.subr.mxu0 0.0
      %2012 = vmatpush1.msra.mxu0 0.0
      %2013 = vmatprep.subr.mxu0 0.0
      %2014 = vmatpush1.msra.mxu0 %v1978
      %2015 = vmatprep.subr.mxu0 0.0
      %2016 = vmatpush2.msra.mxu0 0.0
      %2017 = vmatprep.subr.mxu0 0.0
      %2018 = vmatpush2.msra.mxu0 0.0
      %2019 = vmatprep.subr.mxu0 0.0
      %2020 = vmatpush2.msra.mxu0 0.0
      %2021 = vmatprep.subr.mxu0 0.0
      %2022 = vmatpush2.msra.mxu0 0.0
      %2023 = vmatprep.subr.mxu0 0.0
      %2024 = vmatpush2.msra.mxu0 0.0
      %2025 = vmatprep.subr.mxu0 0.0
      %2026 = vmatpush2.msra.mxu0 0.0
      %2027 = vmatprep.subr.mxu0 0.0
      %2028 = vmatpush2.msra.mxu0 0.0
      %2029 = vmatprep.subr.mxu0 0.0
      %2030 = vmatpush2.msra.mxu0 0.0
      %2031 = vmatprep.subr.mxu0 0.0
      %2032 = vmatpush2.msra.mxu0 0.0
      %2033 = vmatprep.subr.mxu0 0.0
      %2034 = vmatpush2.msra.mxu0 0.0
      %2035 = vmatprep.subr.mxu0 0.0
      %2036 = vmatpush2.msra.mxu0 0.0
      %2037 = vmatprep.subr.mxu0 0.0
      %2038 = vmatpush2.msra.mxu0 0.0
      %2039 = vmatprep.subr.mxu0 0.0
      %2040 = vmatpush2.msra.mxu0 0.0
      %2041 = vmatprep.subr.mxu0 0.0
      %2042 = vmatpush2.msra.mxu0 0.0
      %2043 = vmatprep.subr.mxu0 0.0
      %2044 = vmatpush2.msra.mxu0 0.0
      %2045 = vmatprep.subr.mxu0 0.0
      %2046 = vmatpush2.msra.mxu0 0.0
      %2047 = vmatprep.mubr.f32.mxu0 0.0
      %2048 = vmatmul.mubr.f32.gmra.mxu0 %v1981
      %v2049 = vpop.f32.mrf.mxu0
      %v2050 = vadd.f32 0.0, %v2049
      %v2051 = vpop.f32.mrf.mxu0
      %2052 = vdwg.mxu0
      %2054 = vrot.lane.b32.xlu0 %v1718, 8
      %v2055 = vpop.permute.xlu0 %2054
      %2058 = vrot.lane.b32.xlu0 %v1884, 16
      %v2059 = vpop.permute.xlu0 %2058
      %2062 = vrot.lane.b32.xlu0 %v2050, 24
      %v2063 = vpop.permute.xlu0 %2062
      %v2065 = vsel %vm712, %v1552, %v2055
      %v2066 = vsel %vm1386, %v2065, %v2059
      %v2067 = vsel %vm1388, %v2066, %v2063
      %v2068 = vpack.c.bf16 %v2067, %v1389
      %v2069 = vld [vmem:[%s593] sm:$0xf]
      %v2070 = vld [vmem:[%s593 + $0x4] sm:$0xf]
      %v2071 = vld [vmem:[%s593 + $0x8] sm:$0xf]
      %v2072 = vld [vmem:[%s593 + $0xc] sm:$0xf]
      %v2073 = vld [vmem:[%s597] sm:$0x1]
      %v2075 = vlaneseq
      %v2076 = vshrl.u32 %v2075, 7
      %v2077 = vsub.s32 0, %v2076
      %v2078 = vrot.slane %v2073, %v2077
      %v2084 = vunpack.c.l.b16 %v2069
      %v2085 = vunpack.c.l.b16 %v2070
      %v2086 = vunpack.c.l.b16 %v2071
      %v2087 = vunpack.c.l.b16 %v2072
      %v2088 = vpack.c.b16 %v2085, %v2084
      %v2089 = vpack.c.b16 %v2087, %v2086
      %v2093 = vsel %vm664, %v2068, 0
      %2095 = vmatprep.subr.bf16.mxu0 0
      %2096 = vmatpush1.bf16.msra.mxu0 0
      %2097 = vmatprep.subr.bf16.mxu0 0
      %2098 = vmatpush1.bf16.msra.mxu0 0
      %2099 = vmatprep.subr.bf16.mxu0 0
      %2100 = vmatpush1.bf16.msra.mxu0 0
      %2101 = vmatprep.subr.bf16.mxu0 0
      %2102 = vmatpush1.bf16.msra.mxu0 0
      %2103 = vmatprep.subr.bf16.mxu0 0
      %2104 = vmatpush1.bf16.msra.mxu0 0
      %2105 = vmatprep.subr.bf16.mxu0 0
      %2106 = vmatpush1.bf16.msra.mxu0 0
      %2107 = vmatprep.subr.bf16.mxu0 0
      %2108 = vmatpush1.bf16.msra.mxu0 %v2089
      %2109 = vmatprep.subr.bf16.mxu0 0
      %2110 = vmatpush1.bf16.msra.mxu0 %v2088
      %2111 = vmatprep.subr.bf16.mxu0 0
      %2112 = vmatpush2.bf16.msra.mxu0 0
      %2113 = vmatprep.subr.bf16.mxu0 0
      %2114 = vmatpush2.bf16.msra.mxu0 0
      %2115 = vmatprep.subr.bf16.mxu0 0
      %2116 = vmatpush2.bf16.msra.mxu0 0
      %2117 = vmatprep.subr.bf16.mxu0 0
      %2118 = vmatpush2.bf16.msra.mxu0 0
      %2119 = vmatprep.subr.bf16.mxu0 0
      %2120 = vmatpush2.bf16.msra.mxu0 0
      %2121 = vmatprep.subr.bf16.mxu0 0
      %2122 = vmatpush2.bf16.msra.mxu0 0
      %2123 = vmatprep.subr.bf16.mxu0 0
      %2124 = vmatpush2.bf16.msra.mxu0 0
      %2125 = vmatprep.subr.bf16.mxu0 0
      %2126 = vmatpush2.bf16.msra.mxu0 0
      %2127 = vmatprep.mubr.bf16.mxu0 0
      %2128 = vmatmul.mubr.bf16.gmra.mxu0 %v2093
      %v2129 = vpop.f32.mrf.mxu0
      %v2130 = vadd.f32 %v2078, %v2129
      %v2131 = vpop.f32.mrf.mxu0
      %v2132 = vpop.f32.mrf.mxu0
      %v2133 = vadd.f32 %v2078, %v2132
      %v2134 = vpop.f32.mrf.mxu0
      %2135 = vdwg.mxu0
      %v2136 = vadd.f32 %v2130, %v638
      %v2137 = vadd.f32 %v2133, %v639
      %v2138 = vld [vmem:[%s601] sm:$0x1]
      %v2139 = vld [vmem:[%s605] sm:$0x1]
      %v2140 = vsel %vm664, %v2136, 0.0
      %2141 = vadd.xlane.f32.xlu0 %v2140
      %v2142 = vpop.xlane.xlu0 %2141
      %v2143 = vsel %vm664, %v2137, 0.0
      %2144 = vadd.xlane.f32.xlu0 %v2143
      %v2145 = vpop.xlane.xlu0 %2144
      %v2146 = vrcp.pop 32.0
      %v2147 = vmul.f32 %v2142, %v2146
      %v2148 = vmul.f32 %v2145, %v2146
      %v2149 = vsub.f32 %v2136, %v2147
      %v2150 = vsub.f32 %v2137, %v2148
      %v2151 = vmul.f32 %v2149, %v2149
      %v2152 = vmul.f32 %v2150, %v2150
      %v2153 = vsel %vm664, %v2151, 0.0
      %2154 = vadd.xlane.f32.xlu0 %v2153
      %v2155 = vpop.xlane.xlu0 %2154
      %v2156 = vsel %vm664, %v2152, 0.0
      %2157 = vadd.xlane.f32.xlu0 %v2156
      %v2158 = vpop.xlane.xlu0 %2157
      %v2159 = vmul.f32 %v2155, %v2146
      %v2160 = vmul.f32 %v2158, %v2146
      %v2161 = vadd.f32 %v2159, 1e-05
      %v2162 = vadd.f32 %v2160, 1e-05
      %v2163 = vrsqrt.pop %v2161
      %v2164 = vrsqrt.pop %v2162
      %v2165 = vmul.f32 %v2149, %v2163
      %v2166 = vmul.f32 %v2150, %v2164
      %v2168 = vlaneseq
      %v2169 = vshrl.u32 %v2168, 7
      %v2170 = vsub.s32 0, %v2169
      %v2171 = vrot.slane %v2138, %v2170
      %v2173 = vmul.f32 %v2165, %v2171
      %v2174 = vmul.f32 %v2166, %v2171
      %v2176 = vlaneseq
      %v2177 = vshrl.u32 %v2176, 7
      %v2178 = vsub.s32 0, %v2177
      %v2179 = vrot.slane %v2139, %v2178
      %v2181 = vadd.f32 %v2173, %v2179
      %v2182 = vadd.f32 %v2174, %v2179
      %v2183 = vpack.c.bf16 %v2182, %v2181
      %v2184 = vld [vmem:[%s610] sm:$0xf]
      %v2185 = vld [vmem:[%s610 + $0x4] sm:$0xf]
      %v2186 = vld [vmem:[%s610 + $0x8] sm:$0xf]
      %v2187 = vld [vmem:[%s610 + $0xc] sm:$0xf]
      %v2188 = vld [vmem:[%s614] sm:$0x1]
      %v2190 = vlaneseq
      %v2191 = vshrl.u32 %v2190, 7
      %v2192 = vsub.s32 0, %v2191
      %v2193 = vrot.slane %v2188, %v2192
      %v2199 = vunpack.c.l.b16 %v2184
      %v2200 = vunpack.c.l.b16 %v2185
      %v2201 = vunpack.c.l.b16 %v2186
      %v2202 = vunpack.c.l.b16 %v2187
      %v2203 = vpack.c.b16 %v2200, %v2199
      %v2204 = vpack.c.b16 %v2202, %v2201
      %v2208 = vsel %vm664, %v2183, 0
      %2210 = vmatprep.subr.bf16.mxu0 0
      %2211 = vmatpush1.bf16.msra.mxu0 0
      %2212 = vmatprep.subr.bf16.mxu0 0
      %2213 = vmatpush1.bf16.msra.mxu0 0
      %2214 = vmatprep.subr.bf16.mxu0 0
      %2215 = vmatpush1.bf16.msra.mxu0 0
      %2216 = vmatprep.subr.bf16.mxu0 0
      %2217 = vmatpush1.bf16.msra.mxu0 0
      %2218 = vmatprep.subr.bf16.mxu0 0
      %2219 = vmatpush1.bf16.msra.mxu0 0
      %2220 = vmatprep.subr.bf16.mxu0 0
      %2221 = vmatpush1.bf16.msra.mxu0 0
      %2222 = vmatprep.subr.bf16.mxu0 0
      %2223 = vmatpush1.bf16.msra.mxu0 %v2204
      %2224 = vmatprep.subr.bf16.mxu0 0
      %2225 = vmatpush1.bf16.msra.mxu0 %v2203
      %2226 = vmatprep.subr.bf16.mxu0 0
      %2227 = vmatpush2.bf16.msra.mxu0 0
      %2228 = vmatprep.subr.bf16.mxu0 0
      %2229 = vmatpush2.bf16.msra.mxu0 0
      %2230 = vmatprep.subr.bf16.mxu0 0
      %2231 = vmatpush2.bf16.msra.mxu0 0
      %2232 = vmatprep.subr.bf16.mxu0 0
      %2233 = vmatpush2.bf16.msra.mxu0 0
      %2234 = vmatprep.subr.bf16.mxu0 0
      %2235 = vmatpush2.bf16.msra.mxu0 0
      %2236 = vmatprep.subr.bf16.mxu0 0
      %2237 = vmatpush2.bf16.msra.mxu0 0
      %2238 = vmatprep.subr.bf16.mxu0 0
      %2239 = vmatpush2.bf16.msra.mxu0 0
      %2240 = vmatprep.subr.bf16.mxu0 0
      %2241 = vmatpush2.bf16.msra.mxu0 0
      %2242 = vmatprep.mubr.bf16.mxu0 0
      %2243 = vmatmul.mubr.bf16.gmra.mxu0 %v2208
      %v2244 = vpop.f32.mrf.mxu0
      %v2245 = vadd.f32 %v2193, %v2244
      %v2246 = vpop.f32.mrf.mxu0
      %v2247 = vpop.f32.mrf.mxu0
      %v2248 = vadd.f32 %v2193, %v2247
      %v2249 = vpop.f32.mrf.mxu0
      %2250 = vdwg.mxu0
      %v2251 = vmul.f32 %v2245, 0.5
      %v2252 = vmul.f32 %v2248, 0.5
      %v2253 = vmul.f32 %v2245, 0.70710677
      %v2254 = vmul.f32 %v2248, 0.70710677
      %v2255 = verf.f32.pop %v2253
      %v2256 = verf.f32.pop %v2254
      %v2257 = vadd.f32 %v2255, 1.0
      %v2258 = vadd.f32 %v2256, 1.0
      %v2259 = vmul.f32 %v2251, %v2257
      %v2260 = vmul.f32 %v2252, %v2258
      %v2261 = vpack.c.bf16 %v2260, %v2259
      %v2262 = vld [vmem:[%s619] sm:$0xf]
      %v2263 = vld [vmem:[%s619 + $0x4] sm:$0xf]
      %v2264 = vld [vmem:[%s619 + $0x8] sm:$0xf]
      %v2265 = vld [vmem:[%s619 + $0xc] sm:$0xf]
      %v2266 = vld [vmem:[%s619 + $0x10] sm:$0xf]
      %v2267 = vld [vmem:[%s619 + $0x14] sm:$0xf]
      %v2268 = vld [vmem:[%s619 + $0x18] sm:$0xf]
      %v2269 = vld [vmem:[%s619 + $0x1c] sm:$0xf]
      %v2270 = vld [vmem:[%s619 + $0x20] sm:$0xf]
      %v2271 = vld [vmem:[%s619 + $0x24] sm:$0xf]
      %v2272 = vld [vmem:[%s619 + $0x28] sm:$0xf]
      %v2273 = vld [vmem:[%s619 + $0x2c] sm:$0xf]
      %v2274 = vld [vmem:[%s619 + $0x30] sm:$0xf]
      %v2275 = vld [vmem:[%s619 + $0x34] sm:$0xf]
      %v2276 = vld [vmem:[%s619 + $0x38] sm:$0xf]
      %v2277 = vld [vmem:[%s619 + $0x3c] sm:$0xf]
      %v2278 = vld [vmem:[%s623] sm:$0x1]
      %v2280 = vlaneseq
      %v2281 = vshrl.u32 %v2280, 7
      %v2282 = vsub.s32 0, %v2281
      %v2283 = vrot.slane %v2278, %v2282
      %v2301 = vunpack.c.l.b16 %v2262
      %v2302 = vunpack.c.l.b16 %v2263
      %v2303 = vunpack.c.l.b16 %v2264
      %v2304 = vunpack.c.l.b16 %v2265
      %v2305 = vunpack.c.l.b16 %v2266
      %v2306 = vunpack.c.l.b16 %v2267
      %v2307 = vunpack.c.l.b16 %v2268
      %v2308 = vunpack.c.l.b16 %v2269
      %v2309 = vunpack.c.l.b16 %v2270
      %v2310 = vunpack.c.l.b16 %v2271
      %v2311 = vunpack.c.l.b16 %v2272
      %v2312 = vunpack.c.l.b16 %v2273
      %v2313 = vunpack.c.l.b16 %v2274
      %v2314 = vunpack.c.l.b16 %v2275
      %v2315 = vunpack.c.l.b16 %v2276
      %v2316 = vunpack.c.l.b16 %v2277
      %v2317 = vpack.c.b16 %v2302, %v2301
      %v2318 = vpack.c.b16 %v2304, %v2303
      %v2319 = vpack.c.b16 %v2306, %v2305
      %v2320 = vpack.c.b16 %v2308, %v2307
      %v2321 = vpack.c.b16 %v2310, %v2309
      %v2322 = vpack.c.b16 %v2312, %v2311
      %v2323 = vpack.c.b16 %v2314, %v2313
      %v2324 = vpack.c.b16 %v2316, %v2315
      %2333 = vmatprep.subr.bf16.mxu0 0
      %2334 = vmatpush1.bf16.msra.mxu0 %v2324
      %2335 = vmatprep.subr.bf16.mxu0 0
      %2336 = vmatpush1.bf16.msra.mxu0 %v2323
      %2337 = vmatprep.subr.bf16.mxu0 0
      %2338 = vmatpush1.bf16.msra.mxu0 %v2322
      %2339 = vmatprep.subr.bf16.mxu0 0
      %2340 = vmatpush1.bf16.msra.mxu0 %v2321
      %2341 = vmatprep.subr.bf16.mxu0 0
      %2342 = vmatpush1.bf16.msra.mxu0 %v2320
      %2343 = vmatprep.subr.bf16.mxu0 0
      %2344 = vmatpush1.bf16.msra.mxu0 %v2319
      %2345 = vmatprep.subr.bf16.mxu0 0
      %2346 = vmatpush1.bf16.msra.mxu0 %v2318
      %2347 = vmatprep.subr.bf16.mxu0 0
      %2348 = vmatpush1.bf16.msra.mxu0 %v2317
      %2349 = vmatprep.subr.bf16.mxu0 0
      %2350 = vmatpush2.bf16.msra.mxu0 0
      %2351 = vmatprep.subr.bf16.mxu0 0
      %2352 = vmatpush2.bf16.msra.mxu0 0
      %2353 = vmatprep.subr.bf16.mxu0 0
      %2354 = vmatpush2.bf16.msra.mxu0 0
      %2355 = vmatprep.subr.bf16.mxu0 0
      %2356 = vmatpush2.bf16.msra.mxu0 0
      %2357 = vmatprep.subr.bf16.mxu0 0
      %2358 = vmatpush2.bf16.msra.mxu0 0
      %2359 = vmatprep.subr.bf16.mxu0 0
      %2360 = vmatpush2.bf16.msra.mxu0 0
      %2361 = vmatprep.subr.bf16.mxu0 0
      %2362 = vmatpush2.bf16.msra.mxu0 0
      %2363 = vmatprep.subr.bf16.mxu0 0
      %2364 = vmatpush2.bf16.msra.mxu0 0
      %2365 = vmatprep.mubr.bf16.mxu0 0
      %2366 = vmatmul.mubr.bf16.gmra.mxu0 %v2261
      %v2367 = vpop.f32.mrf.mxu0
      %v2368 = vadd.f32 %v2283, %v2367
      %v2369 = vpop.f32.mrf.mxu0
      %v2370 = vpop.f32.mrf.mxu0
      %v2371 = vadd.f32 %v2283, %v2370
      %v2372 = vpop.f32.mrf.mxu0
      %2373 = vdwg.mxu0
      %v2374 = vadd.f32 %v2368, %v2181
      %v2375 = vadd.f32 %v2371, %v2182
      %v2376 = vld [vmem:[%s627] sm:$0x1]
      %v2377 = vld [vmem:[%s631] sm:$0x1]
      %v2378 = vsel %vm664, %v2374, 0.0
      %2379 = vadd.xlane.f32.xlu0 %v2378
      %v2380 = vpop.xlane.xlu0 %2379
      %v2381 = vsel %vm664, %v2375, 0.0
      %2382 = vadd.xlane.f32.xlu0 %v2381
      %v2383 = vpop.xlane.xlu0 %2382
      %v2384 = vmul.f32 %v2380, %v2146
      %v2385 = vmul.f32 %v2383, %v2146
      %v2386 = vsub.f32 %v2374, %v2384
      %v2387 = vsub.f32 %v2375, %v2385
      %v2388 = vmul.f32 %v2386, %v2386
      %v2389 = vmul.f32 %v2387, %v2387
      %v2390 = vsel %vm664, %v2388, 0.0
      %2391 = vadd.xlane.f32.xlu0 %v2390
      %v2392 = vpop.xlane.xlu0 %2391
      %v2393 = vsel %vm664, %v2389, 0.0
      %2394 = vadd.xlane.f32.xlu0 %v2393
      %v2395 = vpop.xlane.xlu0 %2394
      %v2396 = vmul.f32 %v2392, %v2146
      %v2397 = vmul.f32 %v2395, %v2146
      %v2398 = vadd.f32 %v2396, 1e-05
      %v2399 = vadd.f32 %v2397, 1e-05
      %v2400 = vrsqrt.pop %v2398
      %v2401 = vrsqrt.pop %v2399
      %v2402 = vmul.f32 %v2386, %v2400
      %v2403 = vmul.f32 %v2387, %v2401
      %v2405 = vlaneseq
      %v2406 = vshrl.u32 %v2405, 7
      %v2407 = vsub.s32 0, %v2406
      %v2408 = vrot.slane %v2376, %v2407
      %v2410 = vmul.f32 %v2402, %v2408
      %v2411 = vmul.f32 %v2403, %v2408
      %v2413 = vlaneseq
      %v2414 = vshrl.u32 %v2413, 7
      %v2415 = vsub.s32 0, %v2414
      %v2416 = vrot.slane %v2377, %v2415
      %v2418 = vadd.f32 %v2410, %v2416
      %v2419 = vadd.f32 %v2411, %v2416
      %v2420 = vpack.c.bf16 %v2419, %v2418
      %s2421 = scalar_lea.vmem %s584, 16
      %v2422 = vld [vmem:[%s2421] sm:$0xf]
      %v2423 = vld [vmem:[%s2421 + $0x4] sm:$0xf]
      %v2424 = vld [vmem:[%s2421 + $0x8] sm:$0xf]
      %v2425 = vld [vmem:[%s2421 + $0xc] sm:$0xf]
      %s2426 = scalar_lea.vmem %s588, 1
      %v2427 = vld [vmem:[%s2426] sm:$0x1]
      %v2429 = vlaneseq
      %v2430 = vshrl.u32 %v2429, 7
      %v2431 = vsub.s32 0, %v2430
      %v2432 = vrot.slane %v2427, %v2431
      %v2438 = vunpack.c.l.b16 %v2422
      %v2439 = vunpack.c.l.b16 %v2423
      %v2440 = vunpack.c.l.b16 %v2424
      %v2441 = vunpack.c.l.b16 %v2425
      %v2442 = vpack.c.b16 %v2439, %v2438
      %v2443 = vpack.c.b16 %v2441, %v2440
      %v2447 = vsel %vm664, %v2420, 0
      %2449 = vmatprep.subr.bf16.mxu0 0
      %2450 = vmatpush1.bf16.msra.mxu0 0
      %2451 = vmatprep.subr.bf16.mxu0 0
      %2452 = vmatpush1.bf16.msra.mxu0 0
      %2453 = vmatprep.subr.bf16.mxu0 0
      %2454 = vmatpush1.bf16.msra.mxu0 0
      %2455 = vmatprep.subr.bf16.mxu0 0
      %2456 = vmatpush1.bf16.msra.mxu0 0
      %2457 = vmatprep.subr.bf16.mxu0 0
      %2458 = vmatpush1.bf16.msra.mxu0 0
      %2459 = vmatprep.subr.bf16.mxu0 0
      %2460 = vmatpush1.bf16.msra.mxu0 0
      %2461 = vmatprep.subr.bf16.mxu0 0
      %2462 = vmatpush1.bf16.msra.mxu0 %v2443
      %2463 = vmatprep.subr.bf16.mxu0 0
      %2464 = vmatpush1.bf16.msra.mxu0 %v2442
      %2465 = vmatprep.subr.bf16.mxu0 0
      %2466 = vmatpush2.bf16.msra.mxu0 0
      %2467 = vmatprep.subr.bf16.mxu0 0
      %2468 = vmatpush2.bf16.msra.mxu0 0
      %2469 = vmatprep.subr.bf16.mxu0 0
      %2470 = vmatpush2.bf16.msra.mxu0 0
      %2471 = vmatprep.subr.bf16.mxu0 0
      %2472 = vmatpush2.bf16.msra.mxu0 0
      %2473 = vmatprep.subr.bf16.mxu0 0
      %2474 = vmatpush2.bf16.msra.mxu0 0
      %2475 = vmatprep.subr.bf16.mxu0 0
      %2476 = vmatpush2.bf16.msra.mxu0 0
      %2477 = vmatprep.subr.bf16.mxu0 0
      %2478 = vmatpush2.bf16.msra.mxu0 0
      %2479 = vmatprep.subr.bf16.mxu0 0
      %2480 = vmatpush2.bf16.msra.mxu0 0
      %2481 = vmatprep.mubr.bf16.mxu0 0
      %2482 = vmatmul.mubr.bf16.gmra.mxu0 %v2447
      %v2483 = vpop.f32.mrf.mxu0
      %v2484 = vadd.f32 %v2432, %v2483
      %v2485 = vpop.f32.mrf.mxu0
      %v2486 = vpop.f32.mrf.mxu0
      %v2487 = vadd.f32 %v2432, %v2486
      %v2488 = vpop.f32.mrf.mxu0
      %2489 = vdwg.mxu0
      %2491 = vrot.lane.b32.xlu0 %v2484, 96
      %v2492 = vpop.permute.xlu0 %2491
      %v2493 = vsel %vm712, %v2484, 0
      %v2495 = vsel %vm712, %v2492, 0
      %2497 = vmatprep.subr.mxu0 0.0
      %2498 = vmatpush1.xpose.msra.mxu0 0.0
      %2499 = vmatprep.subr.mxu0 0.0
      %2500 = vmatpush1.xpose.msra.mxu0 0.0
      %2501 = vmatprep.subr.mxu0 0.0
      %2502 = vmatpush1.xpose.msra.mxu0 0.0
      %2503 = vmatprep.subr.mxu0 0.0
      %2504 = vmatpush1.xpose.msra.mxu0 0.0
      %2505 = vmatprep.subr.mxu0 0.0
      %2506 = vmatpush1.xpose.msra.mxu0 0.0
      %2507 = vmatprep.subr.mxu0 0.0
      %2508 = vmatpush1.xpose.msra.mxu0 0.0
      %2509 = vmatprep.subr.mxu0 0.0
      %2510 = vmatpush1.xpose.msra.mxu0 0.0
      %2511 = vmatprep.subr.mxu0 0.0
      %2512 = vmatpush1.xpose.msra.mxu0 0.0
      %2513 = vmatprep.subr.mxu0 0.0
      %2514 = vmatpush1.xpose.msra.mxu0 0.0
      %2515 = vmatprep.subr.mxu0 0.0
      %2516 = vmatpush1.xpose.msra.mxu0 0.0
      %2517 = vmatprep.subr.mxu0 0.0
      %2518 = vmatpush1.xpose.msra.mxu0 0.0
      %2519 = vmatprep.subr.mxu0 0.0
      %2520 = vmatpush1.xpose.msra.mxu0 0.0
      %2521 = vmatprep.subr.mxu0 0.0
      %2522 = vmatpush1.xpose.msra.mxu0 0.0
      %2523 = vmatprep.subr.mxu0 0.0
      %2524 = vmatpush1.xpose.msra.mxu0 0.0
      %2525 = vmatprep.subr.mxu0 0.0
      %2526 = vmatpush1.xpose.msra.mxu0 0.0
      %2527 = vmatprep.subr.mxu0 0.0
      %2528 = vmatpush1.xpose.msra.mxu0 %v2495
      %2529 = vmatprep.subr.mxu0 0.0
      %2530 = vmatpush2.xpose.msra.mxu0 0.0
      %2531 = vmatprep.subr.mxu0 0.0
      %2532 = vmatpush2.xpose.msra.mxu0 0.0
      %2533 = vmatprep.subr.mxu0 0.0
      %2534 = vmatpush2.xpose.msra.mxu0 0.0
      %2535 = vmatprep.subr.mxu0 0.0
      %2536 = vmatpush2.xpose.msra.mxu0 0.0
      %2537 = vmatprep.subr.mxu0 0.0
      %2538 = vmatpush2.xpose.msra.mxu0 0.0
      %2539 = vmatprep.subr.mxu0 0.0
      %2540 = vmatpush2.xpose.msra.mxu0 0.0
      %2541 = vmatprep.subr.mxu0 0.0
      %2542 = vmatpush2.xpose.msra.mxu0 0.0
      %2543 = vmatprep.subr.mxu0 0.0
      %2544 = vmatpush2.xpose.msra.mxu0 0.0
      %2545 = vmatprep.subr.mxu0 0.0
      %2546 = vmatpush2.xpose.msra.mxu0 0.0
      %2547 = vmatprep.subr.mxu0 0.0
      %2548 = vmatpush2.xpose.msra.mxu0 0.0
      %2549 = vmatprep.subr.mxu0 0.0
      %2550 = vmatpush2.xpose.msra.mxu0 0.0
      %2551 = vmatprep.subr.mxu0 0.0
      %2552 = vmatpush2.xpose.msra.mxu0 0.0
      %2553 = vmatprep.subr.mxu0 0.0
      %2554 = vmatpush2.xpose.msra.mxu0 0.0
      %2555 = vmatprep.subr.mxu0 0.0
      %2556 = vmatpush2.xpose.msra.mxu0 0.0
      %2557 = vmatprep.subr.mxu0 0.0
      %2558 = vmatpush2.xpose.msra.mxu0 0.0
      %2559 = vmatprep.subr.mxu0 0.0
      %2560 = vmatpush2.xpose.msra.mxu0 0.0
      %2561 = vmatprep.mubr.f32.mxu0 0.0
      %2562 = vmatmul.mubr.f32.gmra.mxu0 %v2493
      %v2563 = vpop.f32.mrf.mxu0
      %v2564 = vadd.f32 0.0, %v2563
      %v2565 = vpop.f32.mrf.mxu0
      %2566 = vdwg.mxu0
      %v2567 = vmul.f32 %v2564, 0.35355338
      %v2568 = vsel %vm712, %v2567, -inf
      %2569 = vmax.xlane.f32.xlu0 %v2568
      %v2570 = vpop.xlane.xlu0 %2569
      %v2571 = vsub.f32 %v2567, %v2570
      %v2572 = vmul.f32 %v2571, 1.442695
      %v2573 = vpow.pop %v2572
      %v2574 = vsel %vm712, %v2573, 0.0
      %2575 = vadd.xlane.f32.xlu0 %v2574
      %v2576 = vpop.xlane.xlu0 %2575
      %v2577 = vrcp.pop %v2576
      %v2578 = vmul.f32 %v2573, %v2577
      %2579 = vrot.lane.b32.xlu0 %v2484, 64
      %v2580 = vpop.permute.xlu0 %2579
      %v2583 = vsel %vm712, %v2578, 0
      %2585 = vmatprep.subr.mxu0 0.0
      %2586 = vmatpush1.msra.mxu0 0.0
      %2587 = vmatprep.subr.mxu0 0.0
      %2588 = vmatpush1.msra.mxu0 0.0
      %2589 = vmatprep.subr.mxu0 0.0
      %2590 = vmatpush1.msra.mxu0 0.0
      %2591 = vmatprep.subr.mxu0 0.0
      %2592 = vmatpush1.msra.mxu0 0.0
      %2593 = vmatprep.subr.mxu0 0.0
      %2594 = vmatpush1.msra.mxu0 0.0
      %2595 = vmatprep.subr.mxu0 0.0
      %2596 = vmatpush1.msra.mxu0 0.0
      %2597 = vmatprep.subr.mxu0 0.0
      %2598 = vmatpush1.msra.mxu0 0.0
      %2599 = vmatprep.subr.mxu0 0.0
      %2600 = vmatpush1.msra.mxu0 0.0
      %2601 = vmatprep.subr.mxu0 0.0
      %2602 = vmatpush1.msra.mxu0 0.0
      %2603 = vmatprep.subr.mxu0 0.0
      %2604 = vmatpush1.msra.mxu0 0.0
      %2605 = vmatprep.subr.mxu0 0.0
      %2606 = vmatpush1.msra.mxu0 0.0
      %2607 = vmatprep.subr.mxu0 0.0
      %2608 = vmatpush1.msra.mxu0 0.0
      %2609 = vmatprep.subr.mxu0 0.0
      %2610 = vmatpush1.msra.mxu0 0.0
      %2611 = vmatprep.subr.mxu0 0.0
      %2612 = vmatpush1.msra.mxu0 0.0
      %2613 = vmatprep.subr.mxu0 0.0
      %2614 = vmatpush1.msra.mxu0 0.0
      %2615 = vmatprep.subr.mxu0 0.0
      %2616 = vmatpush1.msra.mxu0 %v2580
      %2617 = vmatprep.subr.mxu0 0.0
      %2618 = vmatpush2.msra.mxu0 0.0
      %2619 = vmatprep.subr.mxu0 0.0
      %2620 = vmatpush2.msra.mxu0 0.0
      %2621 = vmatprep.subr.mxu0 0.0
      %2622 = vmatpush2.msra.mxu0 0.0
      %2623 = vmatprep.subr.mxu0 0.0
      %2624 = vmatpush2.msra.mxu0 0.0
      %2625 = vmatprep.subr.mxu0 0.0
      %2626 = vmatpush2.msra.mxu0 0.0
      %2627 = vmatprep.subr.mxu0 0.0
      %2628 = vmatpush2.msra.mxu0 0.0
      %2629 = vmatprep.subr.mxu0 0.0
      %2630 = vmatpush2.msra.mxu0 0.0
      %2631 = vmatprep.subr.mxu0 0.0
      %2632 = vmatpush2.msra.mxu0 0.0
      %2633 = vmatprep.subr.mxu0 0.0
      %2634 = vmatpush2.msra.mxu0 0.0
      %2635 = vmatprep.subr.mxu0 0.0
      %2636 = vmatpush2.msra.mxu0 0.0
      %2637 = vmatprep.subr.mxu0 0.0
      %2638 = vmatpush2.msra.mxu0 0.0
      %2639 = vmatprep.subr.mxu0 0.0
      %2640 = vmatpush2.msra.mxu0 0.0
      %2641 = vmatprep.subr.mxu0 0.0
      %2642 = vmatpush2.msra.mxu0 0.0
      %2643 = vmatprep.subr.mxu0 0.0
      %2644 = vmatpush2.msra.mxu0 0.0
      %2645 = vmatprep.subr.mxu0 0.0
      %2646 = vmatpush2.msra.mxu0 0.0
      %2647 = vmatprep.subr.mxu0 0.0
      %2648 = vmatpush2.msra.mxu0 0.0
      %2649 = vmatprep.mubr.f32.mxu0 0.0
      %2650 = vmatmul.mubr.f32.gmra.mxu0 %v2583
      %v2651 = vpop.f32.mrf.mxu0
      %v2652 = vadd.f32 0.0, %v2651
      %v2653 = vpop.f32.mrf.mxu0
      %2654 = vdwg.mxu0
      %2655 = vrot.lane.b32.xlu0 %v2484, 120
      %v2656 = vpop.permute.xlu0 %2655
      %2657 = vrot.lane.b32.xlu0 %v2484, 88
      %v2658 = vpop.permute.xlu0 %2657
      %v2659 = vsel %vm712, %v2656, 0
      %v2661 = vsel %vm712, %v2658, 0
      %2663 = vmatprep.subr.mxu0 0.0
      %2664 = vmatpush1.xpose.msra.mxu0 0.0
      %2665 = vmatprep.subr.mxu0 0.0
      %2666 = vmatpush1.xpose.msra.mxu0 0.0
      %2667 = vmatprep.subr.mxu0 0.0
      %2668 = vmatpush1.xpose.msra.mxu0 0.0
      %2669 = vmatprep.subr.mxu0 0.0
      %2670 = vmatpush1.xpose.msra.mxu0 0.0
      %2671 = vmatprep.subr.mxu0 0.0
      %2672 = vmatpush1.xpose.msra.mxu0 0.0
      %2673 = vmatprep.subr.mxu0 0.0
      %2674 = vmatpush1.xpose.msra.mxu0 0.0
      %2675 = vmatprep.subr.mxu0 0.0
      %2676 = vmatpush1.xpose.msra.mxu0 0.0
      %2677 = vmatprep.subr.mxu0 0.0
      %2678 = vmatpush1.xpose.msra.mxu0 0.0
      %2679 = vmatprep.subr.mxu0 0.0
      %2680 = vmatpush1.xpose.msra.mxu0 0.0
      %2681 = vmatprep.subr.mxu0 0.0
      %2682 = vmatpush1.xpose.msra.mxu0 0.0
      %2683 = vmatprep.subr.mxu0 0.0
      %2684 = vmatpush1.xpose.msra.mxu0 0.0
      %2685 = vmatprep.subr.mxu0 0.0
      %2686 = vmatpush1.xpose.msra.mxu0 0.0
      %2687 = vmatprep.subr.mxu0 0.0
      %2688 = vmatpush1.xpose.msra.mxu0 0.0
      %2689 = vmatprep.subr.mxu0 0.0
      %2690 = vmatpush1.xpose.msra.mxu0 0.0
      %2691 = vmatprep.subr.mxu0 0.0
      %2692 = vmatpush1.xpose.msra.mxu0 0.0
      %2693 = vmatprep.subr.mxu0 0.0
      %2694 = vmatpush1.xpose.msra.mxu0 %v2661
      %2695 = vmatprep.subr.mxu0 0.0
      %2696 = vmatpush2.xpose.msra.mxu0 0.0
      %2697 = vmatprep.subr.mxu0 0.0
      %2698 = vmatpush2.xpose.msra.mxu0 0.0
      %2699 = vmatprep.subr.mxu0 0.0
      %2700 = vmatpush2.xpose.msra.mxu0 0.0
      %2701 = vmatprep.subr.mxu0 0.0
      %2702 = vmatpush2.xpose.msra.mxu0 0.0
      %2703 = vmatprep.subr.mxu0 0.0
      %2704 = vmatpush2.xpose.msra.mxu0 0.0
      %2705 = vmatprep.subr.mxu0 0.0
      %2706 = vmatpush2.xpose.msra.mxu0 0.0
      %2707 = vmatprep.subr.mxu0 0.0
      %2708 = vmatpush2.xpose.msra.mxu0 0.0
      %2709 = vmatprep.subr.mxu0 0.0
      %2710 = vmatpush2.xpose.msra.mxu0 0.0
      %2711 = vmatprep.subr.mxu0 0.0
      %2712 = vmatpush2.xpose.msra.mxu0 0.0
      %2713 = vmatprep.subr.mxu0 0.0
      %2714 = vmatpush2.xpose.msra.mxu0 0.0
      %2715 = vmatprep.subr.mxu0 0.0
      %2716 = vmatpush2.xpose.msra.mxu0 0.0
      %2717 = vmatprep.subr.mxu0 0.0
      %2718 = vmatpush2.xpose.msra.mxu0 0.0
      %2719 = vmatprep.subr.mxu0 0.0
      %2720 = vmatpush2.xpose.msra.mxu0 0.0
      %2721 = vmatprep.subr.mxu0 0.0
      %2722 = vmatpush2.xpose.msra.mxu0 0.0
      %2723 = vmatprep.subr.mxu0 0.0
      %2724 = vmatpush2.xpose.msra.mxu0 0.0
      %2725 = vmatprep.subr.mxu0 0.0
      %2726 = vmatpush2.xpose.msra.mxu0 0.0
      %2727 = vmatprep.mubr.f32.mxu0 0.0
      %2728 = vmatmul.mubr.f32.gmra.mxu0 %v2659
      %v2729 = vpop.f32.mrf.mxu0
      %v2730 = vadd.f32 0.0, %v2729
      %v2731 = vpop.f32.mrf.mxu0
      %2732 = vdwg.mxu0
      %v2733 = vmul.f32 %v2730, 0.35355338
      %v2734 = vsel %vm712, %v2733, -inf
      %2735 = vmax.xlane.f32.xlu0 %v2734
      %v2736 = vpop.xlane.xlu0 %2735
      %v2737 = vsub.f32 %v2733, %v2736
      %v2738 = vmul.f32 %v2737, 1.442695
      %v2739 = vpow.pop %v2738
      %v2740 = vsel %vm712, %v2739, 0.0
      %2741 = vadd.xlane.f32.xlu0 %v2740
      %v2742 = vpop.xlane.xlu0 %2741
      %v2743 = vrcp.pop %v2742
      %v2744 = vmul.f32 %v2739, %v2743
      %2745 = vrot.lane.b32.xlu0 %v2484, 56
      %v2746 = vpop.permute.xlu0 %2745
      %v2749 = vsel %vm712, %v2744, 0
      %2751 = vmatprep.subr.mxu0 0.0
      %2752 = vmatpush1.msra.mxu0 0.0
      %2753 = vmatprep.subr.mxu0 0.0
      %2754 = vmatpush1.msra.mxu0 0.0
      %2755 = vmatprep.subr.mxu0 0.0
      %2756 = vmatpush1.msra.mxu0 0.0
      %2757 = vmatprep.subr.mxu0 0.0
      %2758 = vmatpush1.msra.mxu0 0.0
      %2759 = vmatprep.subr.mxu0 0.0
      %2760 = vmatpush1.msra.mxu0 0.0
      %2761 = vmatprep.subr.mxu0 0.0
      %2762 = vmatpush1.msra.mxu0 0.0
      %2763 = vmatprep.subr.mxu0 0.0
      %2764 = vmatpush1.msra.mxu0 0.0
      %2765 = vmatprep.subr.mxu0 0.0
      %2766 = vmatpush1.msra.mxu0 0.0
      %2767 = vmatprep.subr.mxu0 0.0
      %2768 = vmatpush1.msra.mxu0 0.0
      %2769 = vmatprep.subr.mxu0 0.0
      %2770 = vmatpush1.msra.mxu0 0.0
      %2771 = vmatprep.subr.mxu0 0.0
      %2772 = vmatpush1.msra.mxu0 0.0
      %2773 = vmatprep.subr.mxu0 0.0
      %2774 = vmatpush1.msra.mxu0 0.0
      %2775 = vmatprep.subr.mxu0 0.0
      %2776 = vmatpush1.msra.mxu0 0.0
      %2777 = vmatprep.subr.mxu0 0.0
      %2778 = vmatpush1.msra.mxu0 0.0
      %2779 = vmatprep.subr.mxu0 0.0
      %2780 = vmatpush1.msra.mxu0 0.0
      %2781 = vmatprep.subr.mxu0 0.0
      %2782 = vmatpush1.msra.mxu0 %v2746
      %2783 = vmatprep.subr.mxu0 0.0
      %2784 = vmatpush2.msra.mxu0 0.0
      %2785 = vmatprep.subr.mxu0 0.0
      %2786 = vmatpush2.msra.mxu0 0.0
      %2787 = vmatprep.subr.mxu0 0.0
      %2788 = vmatpush2.msra.mxu0 0.0
      %2789 = vmatprep.subr.mxu0 0.0
      %2790 = vmatpush2.msra.mxu0 0.0
      %2791 = vmatprep.subr.mxu0 0.0
      %2792 = vmatpush2.msra.mxu0 0.0
      %2793 = vmatprep.subr.mxu0 0.0
      %2794 = vmatpush2.msra.mxu0 0.0
      %2795 = vmatprep.subr.mxu0 0.0
      %2796 = vmatpush2.msra.mxu0 0.0
      %2797 = vmatprep.subr.mxu0 0.0
      %2798 = vmatpush2.msra.mxu0 0.0
      %2799 = vmatprep.subr.mxu0 0.0
      %2800 = vmatpush2.msra.mxu0 0.0
      %2801 = vmatprep.subr.mxu0 0.0
      %2802 = vmatpush2.msra.mxu0 0.0
      %2803 = vmatprep.subr.mxu0 0.0
      %2804 = vmatpush2.msra.mxu0 0.0
      %2805 = vmatprep.subr.mxu0 0.0
      %2806 = vmatpush2.msra.mxu0 0.0
      %2807 = vmatprep.subr.mxu0 0.0
      %2808 = vmatpush2.msra.mxu0 0.0
      %2809 = vmatprep.subr.mxu0 0.0
      %2810 = vmatpush2.msra.mxu0 0.0
      %2811 = vmatprep.subr.mxu0 0.0
      %2812 = vmatpush2.msra.mxu0 0.0
      %2813 = vmatprep.subr.mxu0 0.0
      %2814 = vmatpush2.msra.mxu0 0.0
      %2815 = vmatprep.mubr.f32.mxu0 0.0
      %2816 = vmatmul.mubr.f32.gmra.mxu0 %v2749
      %v2817 = vpop.f32.mrf.mxu0
      %v2818 = vadd.f32 0.0, %v2817
      %v2819 = vpop.f32.mrf.mxu0
      %2820 = vdwg.mxu0
      %2821 = vrot.lane.b32.xlu0 %v2484, 112
      %v2822 = vpop.permute.xlu0 %2821
      %2823 = vrot.lane.b32.xlu0 %v2484, 80
      %v2824 = vpop.permute.xlu0 %2823
      %v2825 = vsel %vm712, %v2822, 0
      %v2827 = vsel %vm712, %v2824, 0
      %2829 = vmatprep.subr.mxu0 0.0
      %2830 = vmatpush1.xpose.msra.mxu0 0.0
      %2831 = vmatprep.subr.mxu0 0.0
      %2832 = vmatpush1.xpose.msra.mxu0 0.0
      %2833 = vmatprep.subr.mxu0 0.0
      %2834 = vmatpush1.xpose.msra.mxu0 0.0
      %2835 = vmatprep.subr.mxu0 0.0
      %2836 = vmatpush1.xpose.msra.mxu0 0.0
      %2837 = vmatprep.subr.mxu0 0.0
      %2838 = vmatpush1.xpose.msra.mxu0 0.0
      %2839 = vmatprep.subr.mxu0 0.0
      %2840 = vmatpush1.xpose.msra.mxu0 0.0
      %2841 = vmatprep.subr.mxu0 0.0
      %2842 = vmatpush1.xpose.msra.mxu0 0.0
      %2843 = vmatprep.subr.mxu0 0.0
      %2844 = vmatpush1.xpose.msra.mxu0 0.0
      %2845 = vmatprep.subr.mxu0 0.0
      %2846 = vmatpush1.xpose.msra.mxu0 0.0
      %2847 = vmatprep.subr.mxu0 0.0
      %2848 = vmatpush1.xpose.msra.mxu0 0.0
      %2849 = vmatprep.subr.mxu0 0.0
      %2850 = vmatpush1.xpose.msra.mxu0 0.0
      %2851 = vmatprep.subr.mxu0 0.0
      %2852 = vmatpush1.xpose.msra.mxu0 0.0
      %2853 = vmatprep.subr.mxu0 0.0
      %2854 = vmatpush1.xpose.msra.mxu0 0.0
      %2855 = vmatprep.subr.mxu0 0.0
      %2856 = vmatpush1.xpose.msra.mxu0 0.0
      %2857 = vmatprep.subr.mxu0 0.0
      %2858 = vmatpush1.xpose.msra.mxu0 0.0
      %2859 = vmatprep.subr.mxu0 0.0
      %2860 = vmatpush1.xpose.msra.mxu0 %v2827
      %2861 = vmatprep.subr.mxu0 0.0
      %2862 = vmatpush2.xpose.msra.mxu0 0.0
      %2863 = vmatprep.subr.mxu0 0.0
      %2864 = vmatpush2.xpose.msra.mxu0 0.0
      %2865 = vmatprep.subr.mxu0 0.0
      %2866 = vmatpush2.xpose.msra.mxu0 0.0
      %2867 = vmatprep.subr.mxu0 0.0
      %2868 = vmatpush2.xpose.msra.mxu0 0.0
      %2869 = vmatprep.subr.mxu0 0.0
      %2870 = vmatpush2.xpose.msra.mxu0 0.0
      %2871 = vmatprep.subr.mxu0 0.0
      %2872 = vmatpush2.xpose.msra.mxu0 0.0
      %2873 = vmatprep.subr.mxu0 0.0
      %2874 = vmatpush2.xpose.msra.mxu0 0.0
      %2875 = vmatprep.subr.mxu0 0.0
      %2876 = vmatpush2.xpose.msra.mxu0 0.0
      %2877 = vmatprep.subr.mxu0 0.0
      %2878 = vmatpush2.xpose.msra.mxu0 0.0
      %2879 = vmatprep.subr.mxu0 0.0
      %2880 = vmatpush2.xpose.msra.mxu0 0.0
      %2881 = vmatprep.subr.mxu0 0.0
      %2882 = vmatpush2.xpose.msra.mxu0 0.0
      %2883 = vmatprep.subr.mxu0 0.0
      %2884 = vmatpush2.xpose.msra.mxu0 0.0
      %2885 = vmatprep.subr.mxu0 0.0
      %2886 = vmatpush2.xpose.msra.mxu0 0.0
      %2887 = vmatprep.subr.mxu0 0.0
      %2888 = vmatpush2.xpose.msra.mxu0 0.0
      %2889 = vmatprep.subr.mxu0 0.0
      %2890 = vmatpush2.xpose.msra.mxu0 0.0
      %2891 = vmatprep.subr.mxu0 0.0
      %2892 = vmatpush2.xpose.msra.mxu0 0.0
      %2893 = vmatprep.mubr.f32.mxu0 0.0
      %2894 = vmatmul.mubr.f32.gmra.mxu0 %v2825
      %v2895 = vpop.f32.mrf.mxu0
      %v2896 = vadd.f32 0.0, %v2895
      %v2897 = vpop.f32.mrf.mxu0
      %2898 = vdwg.mxu0
      %v2899 = vmul.f32 %v2896, 0.35355338
      %v2900 = vsel %vm712, %v2899, -inf
      %2901 = vmax.xlane.f32.xlu0 %v2900
      %v2902 = vpop.xlane.xlu0 %2901
      %v2903 = vsub.f32 %v2899, %v2902
      %v2904 = vmul.f32 %v2903, 1.442695
      %v2905 = vpow.pop %v2904
      %v2906 = vsel %vm712, %v2905, 0.0
      %2907 = vadd.xlane.f32.xlu0 %v2906
      %v2908 = vpop.xlane.xlu0 %2907
      %v2909 = vrcp.pop %v2908
      %v2910 = vmul.f32 %v2905, %v2909
      %2911 = vrot.lane.b32.xlu0 %v2484, 48
      %v2912 = vpop.permute.xlu0 %2911
      %v2915 = vsel %vm712, %v2910, 0
      %2917 = vmatprep.subr.mxu0 0.0
      %2918 = vmatpush1.msra.mxu0 0.0
      %2919 = vmatprep.subr.mxu0 0.0
      %2920 = vmatpush1.msra.mxu0 0.0
      %2921 = vmatprep.subr.mxu0 0.0
      %2922 = vmatpush1.msra.mxu0 0.0
      %2923 = vmatprep.subr.mxu0 0.0
      %2924 = vmatpush1.msra.mxu0 0.0
      %2925 = vmatprep.subr.mxu0 0.0
      %2926 = vmatpush1.msra.mxu0 0.0
      %2927 = vmatprep.subr.mxu0 0.0
      %2928 = vmatpush1.msra.mxu0 0.0
      %2929 = vmatprep.subr.mxu0 0.0
      %2930 = vmatpush1.msra.mxu0 0.0
      %2931 = vmatprep.subr.mxu0 0.0
      %2932 = vmatpush1.msra.mxu0 0.0
      %2933 = vmatprep.subr.mxu0 0.0
      %2934 = vmatpush1.msra.mxu0 0.0
      %2935 = vmatprep.subr.mxu0 0.0
      %2936 = vmatpush1.msra.mxu0 0.0
      %2937 = vmatprep.subr.mxu0 0.0
      %2938 = vmatpush1.msra.mxu0 0.0
      %2939 = vmatprep.subr.mxu0 0.0
      %2940 = vmatpush1.msra.mxu0 0.0
      %2941 = vmatprep.subr.mxu0 0.0
      %2942 = vmatpush1.msra.mxu0 0.0
      %2943 = vmatprep.subr.mxu0 0.0
      %2944 = vmatpush1.msra.mxu0 0.0
      %2945 = vmatprep.subr.mxu0 0.0
      %2946 = vmatpush1.msra.mxu0 0.0
      %2947 = vmatprep.subr.mxu0 0.0
      %2948 = vmatpush1.msra.mxu0 %v2912
      %2949 = vmatprep.subr.mxu0 0.0
      %2950 = vmatpush2.msra.mxu0 0.0
      %2951 = vmatprep.subr.mxu0 0.0
      %2952 = vmatpush2.msra.mxu0 0.0
      %2953 = vmatprep.subr.mxu0 0.0
      %2954 = vmatpush2.msra.mxu0 0.0
      %2955 = vmatprep.subr.mxu0 0.0
      %2956 = vmatpush2.msra.mxu0 0.0
      %2957 = vmatprep.subr.mxu0 0.0
      %2958 = vmatpush2.msra.mxu0 0.0
      %2959 = vmatprep.subr.mxu0 0.0
      %2960 = vmatpush2.msra.mxu0 0.0
      %2961 = vmatprep.subr.mxu0 0.0
      %2962 = vmatpush2.msra.mxu0 0.0
      %2963 = vmatprep.subr.mxu0 0.0
      %2964 = vmatpush2.msra.mxu0 0.0
      %2965 = vmatprep.subr.mxu0 0.0
      %2966 = vmatpush2.msra.mxu0 0.0
      %2967 = vmatprep.subr.mxu0 0.0
      %2968 = vmatpush2.msra.mxu0 0.0
      %2969 = vmatprep.subr.mxu0 0.0
      %2970 = vmatpush2.msra.mxu0 0.0
      %2971 = vmatprep.subr.mxu0 0.0
      %2972 = vmatpush2.msra.mxu0 0.0
      %2973 = vmatprep.subr.mxu0 0.0
      %2974 = vmatpush2.msra.mxu0 0.0
      %2975 = vmatprep.subr.mxu0 0.0
      %2976 = vmatpush2.msra.mxu0 0.0
      %2977 = vmatprep.subr.mxu0 0.0
      %2978 = vmatpush2.msra.mxu0 0.0
      %2979 = vmatprep.subr.mxu0 0.0
      %2980 = vmatpush2.msra.mxu0 0.0
      %2981 = vmatprep.mubr.f32.mxu0 0.0
      %2982 = vmatmul.mubr.f32.gmra.mxu0 %v2915
      %v2983 = vpop.f32.mrf.mxu0
      %v2984 = vadd.f32 0.0, %v2983
      %v2985 = vpop.f32.mrf.mxu0
      %2986 = vdwg.mxu0
      %2987 = vrot.lane.b32.xlu0 %v2484, 104
      %v2988 = vpop.permute.xlu0 %2987
      %2989 = vrot.lane.b32.xlu0 %v2484, 72
      %v2990 = vpop.permute.xlu0 %2989
      %v2991 = vsel %vm712, %v2988, 0
      %v2993 = vsel %vm712, %v2990, 0
      %2995 = vmatprep.subr.mxu0 0.0
      %2996 = vmatpush1.xpose.msra.mxu0 0.0
      %2997 = vmatprep.subr.mxu0 0.0
      %2998 = vmatpush1.xpose.msra.mxu0 0.0
      %2999 = vmatprep.subr.mxu0 0.0
      %3000 = vmatpush1.xpose.msra.mxu0 0.0
      %3001 = vmatprep.subr.mxu0 0.0
      %3002 = vmatpush1.xpose.msra.mxu0 0.0
      %3003 = vmatprep.subr.mxu0 0.0
      %3004 = vmatpush1.xpose.msra.mxu0 0.0
      %3005 = vmatprep.subr.mxu0 0.0
      %3006 = vmatpush1.xpose.msra.mxu0 0.0
      %3007 = vmatprep.subr.mxu0 0.0
      %3008 = vmatpush1.xpose.msra.mxu0 0.0
      %3009 = vmatprep.subr.mxu0 0.0
      %3010 = vmatpush1.xpose.msra.mxu0 0.0
      %3011 = vmatprep.subr.mxu0 0.0
      %3012 = vmatpush1.xpose.msra.mxu0 0.0
      %3013 = vmatprep.subr.mxu0 0.0
      %3014 = vmatpush1.xpose.msra.mxu0 0.0
      %3015 = vmatprep.subr.mxu0 0.0
      %3016 = vmatpush1.xpose.msra.mxu0 0.0
      %3017 = vmatprep.subr.mxu0 0.0
      %3018 = vmatpush1.xpose.msra.mxu0 0.0
      %3019 = vmatprep.subr.mxu0 0.0
      %3020 = vmatpush1.xpose.msra.mxu0 0.0
      %3021 = vmatprep.subr.mxu0 0.0
      %3022 = vmatpush1.xpose.msra.mxu0 0.0
      %3023 = vmatprep.subr.mxu0 0.0
      %3024 = vmatpush1.xpose.msra.mxu0 0.0
      %3025 = vmatprep.subr.mxu0 0.0
      %3026 = vmatpush1.xpose.msra.mxu0 %v2993
      %3027 = vmatprep.subr.mxu0 0.0
      %3028 = vmatpush2.xpose.msra.mxu0 0.0
      %3029 = vmatprep.subr.mxu0 0.0
      %3030 = vmatpush2.xpose.msra.mxu0 0.0
      %3031 = vmatprep.subr.mxu0 0.0
      %3032 = vmatpush2.xpose.msra.mxu0 0.0
      %3033 = vmatprep.subr.mxu0 0.0
      %3034 = vmatpush2.xpose.msra.mxu0 0.0
      %3035 = vmatprep.subr.mxu0 0.0
      %3036 = vmatpush2.xpose.msra.mxu0 0.0
      %3037 = vmatprep.subr.mxu0 0.0
      %3038 = vmatpush2.xpose.msra.mxu0 0.0
      %3039 = vmatprep.subr.mxu0 0.0
      %3040 = vmatpush2.xpose.msra.mxu0 0.0
      %3041 = vmatprep.subr.mxu0 0.0
      %3042 = vmatpush2.xpose.msra.mxu0 0.0
      %3043 = vmatprep.subr.mxu0 0.0
      %3044 = vmatpush2.xpose.msra.mxu0 0.0
      %3045 = vmatprep.subr.mxu0 0.0
      %3046 = vmatpush2.xpose.msra.mxu0 0.0
      %3047 = vmatprep.subr.mxu0 0.0
      %3048 = vmatpush2.xpose.msra.mxu0 0.0
      %3049 = vmatprep.subr.mxu0 0.0
      %3050 = vmatpush2.xpose.msra.mxu0 0.0
      %3051 = vmatprep.subr.mxu0 0.0
      %3052 = vmatpush2.xpose.msra.mxu0 0.0
      %3053 = vmatprep.subr.mxu0 0.0
      %3054 = vmatpush2.xpose.msra.mxu0 0.0
      %3055 = vmatprep.subr.mxu0 0.0
      %3056 = vmatpush2.xpose.msra.mxu0 0.0
      %3057 = vmatprep.subr.mxu0 0.0
      %3058 = vmatpush2.xpose.msra.mxu0 0.0
      %3059 = vmatprep.mubr.f32.mxu0 0.0
      %3060 = vmatmul.mubr.f32.gmra.mxu0 %v2991
      %v3061 = vpop.f32.mrf.mxu0
      %v3062 = vadd.f32 0.0, %v3061
      %v3063 = vpop.f32.mrf.mxu0
      %3064 = vdwg.mxu0
      %v3065 = vmul.f32 %v3062, 0.35355338
      %v3066 = vsel %vm712, %v3065, -inf
      %3067 = vmax.xlane.f32.xlu0 %v3066
      %v3068 = vpop.xlane.xlu0 %3067
      %v3069 = vsub.f32 %v3065, %v3068
      %v3070 = vmul.f32 %v3069, 1.442695
      %v3071 = vpow.pop %v3070
      %v3072 = vsel %vm712, %v3071, 0.0
      %3073 = vadd.xlane.f32.xlu0 %v3072
      %v3074 = vpop.xlane.xlu0 %3073
      %v3075 = vrcp.pop %v3074
      %v3076 = vmul.f32 %v3071, %v3075
      %3077 = vrot.lane.b32.xlu0 %v2484, 40
      %v3078 = vpop.permute.xlu0 %3077
      %v3081 = vsel %vm712, %v3076, 0
      %3083 = vmatprep.subr.mxu0 0.0
      %3084 = vmatpush1.msra.mxu0 0.0
      %3085 = vmatprep.subr.mxu0 0.0
      %3086 = vmatpush1.msra.mxu0 0.0
      %3087 = vmatprep.subr.mxu0 0.0
      %3088 = vmatpush1.msra.mxu0 0.0
      %3089 = vmatprep.subr.mxu0 0.0
      %3090 = vmatpush1.msra.mxu0 0.0
      %3091 = vmatprep.subr.mxu0 0.0
      %3092 = vmatpush1.msra.mxu0 0.0
      %3093 = vmatprep.subr.mxu0 0.0
      %3094 = vmatpush1.msra.mxu0 0.0
      %3095 = vmatprep.subr.mxu0 0.0
      %3096 = vmatpush1.msra.mxu0 0.0
      %3097 = vmatprep.subr.mxu0 0.0
      %3098 = vmatpush1.msra.mxu0 0.0
      %3099 = vmatprep.subr.mxu0 0.0
      %3100 = vmatpush1.msra.mxu0 0.0
      %3101 = vmatprep.subr.mxu0 0.0
      %3102 = vmatpush1.msra.mxu0 0.0
      %3103 = vmatprep.subr.mxu0 0.0
      %3104 = vmatpush1.msra.mxu0 0.0
      %3105 = vmatprep.subr.mxu0 0.0
      %3106 = vmatpush1.msra.mxu0 0.0
      %3107 = vmatprep.subr.mxu0 0.0
      %3108 = vmatpush1.msra.mxu0 0.0
      %3109 = vmatprep.subr.mxu0 0.0
      %3110 = vmatpush1.msra.mxu0 0.0
      %3111 = vmatprep.subr.mxu0 0.0
      %3112 = vmatpush1.msra.mxu0 0.0
      %3113 = vmatprep.subr.mxu0 0.0
      %3114 = vmatpush1.msra.mxu0 %v3078
      %3115 = vmatprep.subr.mxu0 0.0
      %3116 = vmatpush2.msra.mxu0 0.0
      %3117 = vmatprep.subr.mxu0 0.0
      %3118 = vmatpush2.msra.mxu0 0.0
      %3119 = vmatprep.subr.mxu0 0.0
      %3120 = vmatpush2.msra.mxu0 0.0
      %3121 = vmatprep.subr.mxu0 0.0
      %3122 = vmatpush2.msra.mxu0 0.0
      %3123 = vmatprep.subr.mxu0 0.0
      %3124 = vmatpush2.msra.mxu0 0.0
      %3125 = vmatprep.subr.mxu0 0.0
      %3126 = vmatpush2.msra.mxu0 0.0
      %3127 = vmatprep.subr.mxu0 0.0
      %3128 = vmatpush2.msra.mxu0 0.0
      %3129 = vmatprep.subr.mxu0 0.0
      %3130 = vmatpush2.msra.mxu0 0.0
      %3131 = vmatprep.subr.mxu0 0.0
      %3132 = vmatpush2.msra.mxu0 0.0
      %3133 = vmatprep.subr.mxu0 0.0
      %3134 = vmatpush2.msra.mxu0 0.0
      %3135 = vmatprep.subr.mxu0 0.0
      %3136 = vmatpush2.msra.mxu0 0.0
      %3137 = vmatprep.subr.mxu0 0.0
      %3138 = vmatpush2.msra.mxu0 0.0
      %3139 = vmatprep.subr.mxu0 0.0
      %3140 = vmatpush2.msra.mxu0 0.0
      %3141 = vmatprep.subr.mxu0 0.0
      %3142 = vmatpush2.msra.mxu0 0.0
      %3143 = vmatprep.subr.mxu0 0.0
      %3144 = vmatpush2.msra.mxu0 0.0
      %3145 = vmatprep.subr.mxu0 0.0
      %3146 = vmatpush2.msra.mxu0 0.0
      %3147 = vmatprep.mubr.f32.mxu0 0.0
      %3148 = vmatmul.mubr.f32.gmra.mxu0 %v3081
      %v3149 = vpop.f32.mrf.mxu0
      %v3150 = vadd.f32 0.0, %v3149
      %v3151 = vpop.f32.mrf.mxu0
      %3152 = vdwg.mxu0
      %3154 = vrot.lane.b32.xlu0 %v2818, 8
      %v3155 = vpop.permute.xlu0 %3154
      %3158 = vrot.lane.b32.xlu0 %v2984, 16
      %v3159 = vpop.permute.xlu0 %3158
      %3162 = vrot.lane.b32.xlu0 %v3150, 24
      %v3163 = vpop.permute.xlu0 %3162
      %v3165 = vsel %vm712, %v2652, %v3155
      %v3166 = vsel %vm1386, %v3165, %v3159
      %v3167 = vsel %vm1388, %v3166, %v3163
      %3169 = vrot.lane.b32.xlu0 %v2487, 96
      %v3170 = vpop.permute.xlu0 %3169
      %v3171 = vsel %vm712, %v2487, 0
      %v3173 = vsel %vm712, %v3170, 0
      %3175 = vmatprep.subr.mxu0 0.0
      %3176 = vmatpush1.xpose.msra.mxu0 0.0
      %3177 = vmatprep.subr.mxu0 0.0
      %3178 = vmatpush1.xpose.msra.mxu0 0.0
      %3179 = vmatprep.subr.mxu0 0.0
      %3180 = vmatpush1.xpose.msra.mxu0 0.0
      %3181 = vmatprep.subr.mxu0 0.0
      %3182 = vmatpush1.xpose.msra.mxu0 0.0
      %3183 = vmatprep.subr.mxu0 0.0
      %3184 = vmatpush1.xpose.msra.mxu0 0.0
      %3185 = vmatprep.subr.mxu0 0.0
      %3186 = vmatpush1.xpose.msra.mxu0 0.0
      %3187 = vmatprep.subr.mxu0 0.0
      %3188 = vmatpush1.xpose.msra.mxu0 0.0
      %3189 = vmatprep.subr.mxu0 0.0
      %3190 = vmatpush1.xpose.msra.mxu0 0.0
      %3191 = vmatprep.subr.mxu0 0.0
      %3192 = vmatpush1.xpose.msra.mxu0 0.0
      %3193 = vmatprep.subr.mxu0 0.0
      %3194 = vmatpush1.xpose.msra.mxu0 0.0
      %3195 = vmatprep.subr.mxu0 0.0
      %3196 = vmatpush1.xpose.msra.mxu0 0.0
      %3197 = vmatprep.subr.mxu0 0.0
      %3198 = vmatpush1.xpose.msra.mxu0 0.0
      %3199 = vmatprep.subr.mxu0 0.0
      %3200 = vmatpush1.xpose.msra.mxu0 0.0
      %3201 = vmatprep.subr.mxu0 0.0
      %3202 = vmatpush1.xpose.msra.mxu0 0.0
      %3203 = vmatprep.subr.mxu0 0.0
      %3204 = vmatpush1.xpose.msra.mxu0 0.0
      %3205 = vmatprep.subr.mxu0 0.0
      %3206 = vmatpush1.xpose.msra.mxu0 %v3173
      %3207 = vmatprep.subr.mxu0 0.0
      %3208 = vmatpush2.xpose.msra.mxu0 0.0
      %3209 = vmatprep.subr.mxu0 0.0
      %3210 = vmatpush2.xpose.msra.mxu0 0.0
      %3211 = vmatprep.subr.mxu0 0.0
      %3212 = vmatpush2.xpose.msra.mxu0 0.0
      %3213 = vmatprep.subr.mxu0 0.0
      %3214 = vmatpush2.xpose.msra.mxu0 0.0
      %3215 = vmatprep.subr.mxu0 0.0
      %3216 = vmatpush2.xpose.msra.mxu0 0.0
      %3217 = vmatprep.subr.mxu0 0.0
      %3218 = vmatpush2.xpose.msra.mxu0 0.0
      %3219 = vmatprep.subr.mxu0 0.0
      %3220 = vmatpush2.xpose.msra.mxu0 0.0
      %3221 = vmatprep.subr.mxu0 0.0
      %3222 = vmatpush2.xpose.msra.mxu0 0.0
      %3223 = vmatprep.subr.mxu0 0.0
      %3224 = vmatpush2.xpose.msra.mxu0 0.0
      %3225 = vmatprep.subr.mxu0 0.0
      %3226 = vmatpush2.xpose.msra.mxu0 0.0
      %3227 = vmatprep.subr.mxu0 0.0
      %3228 = vmatpush2.xpose.msra.mxu0 0.0
      %3229 = vmatprep.subr.mxu0 0.0
      %3230 = vmatpush2.xpose.msra.mxu0 0.0
      %3231 = vmatprep.subr.mxu0 0.0
      %3232 = vmatpush2.xpose.msra.mxu0 0.0
      %3233 = vmatprep.subr.mxu0 0.0
      %3234 = vmatpush2.xpose.msra.mxu0 0.0
      %3235 = vmatprep.subr.mxu0 0.0
      %3236 = vmatpush2.xpose.msra.mxu0 0.0
      %3237 = vmatprep.subr.mxu0 0.0
      %3238 = vmatpush2.xpose.msra.mxu0 0.0
      %3239 = vmatprep.mubr.f32.mxu0 0.0
      %3240 = vmatmul.mubr.f32.gmra.mxu0 %v3171
      %v3241 = vpop.f32.mrf.mxu0
      %v3242 = vadd.f32 0.0, %v3241
      %v3243 = vpop.f32.mrf.mxu0
      %3244 = vdwg.mxu0
      %v3245 = vmul.f32 %v3242, 0.35355338
      %v3246 = vsel %vm712, %v3245, -inf
      %3247 = vmax.xlane.f32.xlu0 %v3246
      %v3248 = vpop.xlane.xlu0 %3247
      %v3249 = vsub.f32 %v3245, %v3248
      %v3250 = vmul.f32 %v3249, 1.442695
      %v3251 = vpow.pop %v3250
      %v3252 = vsel %vm712, %v3251, 0.0
      %3253 = vadd.xlane.f32.xlu0 %v3252
      %v3254 = vpop.xlane.xlu0 %3253
      %v3255 = vrcp.pop %v3254
      %v3256 = vmul.f32 %v3251, %v3255
      %3257 = vrot.lane.b32.xlu0 %v2487, 64
      %v3258 = vpop.permute.xlu0 %3257
      %v3261 = vsel %vm712, %v3256, 0
      %3263 = vmatprep.subr.mxu0 0.0
      %3264 = vmatpush1.msra.mxu0 0.0
      %3265 = vmatprep.subr.mxu0 0.0
      %3266 = vmatpush1.msra.mxu0 0.0
      %3267 = vmatprep.subr.mxu0 0.0
      %3268 = vmatpush1.msra.mxu0 0.0
      %3269 = vmatprep.subr.mxu0 0.0
      %3270 = vmatpush1.msra.mxu0 0.0
      %3271 = vmatprep.subr.mxu0 0.0
      %3272 = vmatpush1.msra.mxu0 0.0
      %3273 = vmatprep.subr.mxu0 0.0
      %3274 = vmatpush1.msra.mxu0 0.0
      %3275 = vmatprep.subr.mxu0 0.0
      %3276 = vmatpush1.msra.mxu0 0.0
      %3277 = vmatprep.subr.mxu0 0.0
      %3278 = vmatpush1.msra.mxu0 0.0
      %3279 = vmatprep.subr.mxu0 0.0
      %3280 = vmatpush1.msra.mxu0 0.0
      %3281 = vmatprep.subr.mxu0 0.0
      %3282 = vmatpush1.msra.mxu0 0.0
      %3283 = vmatprep.subr.mxu0 0.0
      %3284 = vmatpush1.msra.mxu0 0.0
      %3285 = vmatprep.subr.mxu0 0.0
      %3286 = vmatpush1.msra.mxu0 0.0
      %3287 = vmatprep.subr.mxu0 0.0
      %3288 = vmatpush1.msra.mxu0 0.0
      %3289 = vmatprep.subr.mxu0 0.0
      %3290 = vmatpush1.msra.mxu0 0.0
      %3291 = vmatprep.subr.mxu0 0.0
      %3292 = vmatpush1.msra.mxu0 0.0
      %3293 = vmatprep.subr.mxu0 0.0
      %3294 = vmatpush1.msra.mxu0 %v3258
      %3295 = vmatprep.subr.mxu0 0.0
      %3296 = vmatpush2.msra.mxu0 0.0
      %3297 = vmatprep.subr.mxu0 0.0
      %3298 = vmatpush2.msra.mxu0 0.0
      %3299 = vmatprep.subr.mxu0 0.0
      %3300 = vmatpush2.msra.mxu0 0.0
      %3301 = vmatprep.subr.mxu0 0.0
      %3302 = vmatpush2.msra.mxu0 0.0
      %3303 = vmatprep.subr.mxu0 0.0
      %3304 = vmatpush2.msra.mxu0 0.0
      %3305 = vmatprep.subr.mxu0 0.0
      %3306 = vmatpush2.msra.mxu0 0.0
      %3307 = vmatprep.subr.mxu0 0.0
      %3308 = vmatpush2.msra.mxu0 0.0
      %3309 = vmatprep.subr.mxu0 0.0
      %3310 = vmatpush2.msra.mxu0 0.0
      %3311 = vmatprep.subr.mxu0 0.0
      %3312 = vmatpush2.msra.mxu0 0.0
      %3313 = vmatprep.subr.mxu0 0.0
      %3314 = vmatpush2.msra.mxu0 0.0
      %3315 = vmatprep.subr.mxu0 0.0
      %3316 = vmatpush2.msra.mxu0 0.0
      %3317 = vmatprep.subr.mxu0 0.0
      %3318 = vmatpush2.msra.mxu0 0.0
      %3319 = vmatprep.subr.mxu0 0.0
      %3320 = vmatpush2.msra.mxu0 0.0
      %3321 = vmatprep.subr.mxu0 0.0
      %3322 = vmatpush2.msra.mxu0 0.0
      %3323 = vmatprep.subr.mxu0 0.0
      %3324 = vmatpush2.msra.mxu0 0.0
      %3325 = vmatprep.subr.mxu0 0.0
      %3326 = vmatpush2.msra.mxu0 0.0
      %3327 = vmatprep.mubr.f32.mxu0 0.0
      %3328 = vmatmul.mubr.f32.gmra.mxu0 %v3261
      %v3329 = vpop.f32.mrf.mxu0
      %v3330 = vadd.f32 0.0, %v3329
      %v3331 = vpop.f32.mrf.mxu0
      %3332 = vdwg.mxu0
      %3333 = vrot.lane.b32.xlu0 %v2487, 120
      %v3334 = vpop.permute.xlu0 %3333
      %3335 = vrot.lane.b32.xlu0 %v2487, 88
      %v3336 = vpop.permute.xlu0 %3335
      %v3337 = vsel %vm712, %v3334, 0
      %v3339 = vsel %vm712, %v3336, 0
      %3341 = vmatprep.subr.mxu0 0.0
      %3342 = vmatpush1.xpose.msra.mxu0 0.0
      %3343 = vmatprep.subr.mxu0 0.0
      %3344 = vmatpush1.xpose.msra.mxu0 0.0
      %3345 = vmatprep.subr.mxu0 0.0
      %3346 = vmatpush1.xpose.msra.mxu0 0.0
      %3347 = vmatprep.subr.mxu0 0.0
      %3348 = vmatpush1.xpose.msra.mxu0 0.0
      %3349 = vmatprep.subr.mxu0 0.0
      %3350 = vmatpush1.xpose.msra.mxu0 0.0
      %3351 = vmatprep.subr.mxu0 0.0
      %3352 = vmatpush1.xpose.msra.mxu0 0.0
      %3353 = vmatprep.subr.mxu0 0.0
      %3354 = vmatpush1.xpose.msra.mxu0 0.0
      %3355 = vmatprep.subr.mxu0 0.0
      %3356 = vmatpush1.xpose.msra.mxu0 0.0
      %3357 = vmatprep.subr.mxu0 0.0
      %3358 = vmatpush1.xpose.msra.mxu0 0.0
      %3359 = vmatprep.subr.mxu0 0.0
      %3360 = vmatpush1.xpose.msra.mxu0 0.0
      %3361 = vmatprep.subr.mxu0 0.0
      %3362 = vmatpush1.xpose.msra.mxu0 0.0
      %3363 = vmatprep.subr.mxu0 0.0
      %3364 = vmatpush1.xpose.msra.mxu0 0.0
      %3365 = vmatprep.subr.mxu0 0.0
      %3366 = vmatpush1.xpose.msra.mxu0 0.0
      %3367 = vmatprep.subr.mxu0 0.0
      %3368 = vmatpush1.xpose.msra.mxu0 0.0
      %3369 = vmatprep.subr.mxu0 0.0
      %3370 = vmatpush1.xpose.msra.mxu0 0.0
      %3371 = vmatprep.subr.mxu0 0.0
      %3372 = vmatpush1.xpose.msra.mxu0 %v3339
      %3373 = vmatprep.subr.mxu0 0.0
      %3374 = vmatpush2.xpose.msra.mxu0 0.0
      %3375 = vmatprep.subr.mxu0 0.0
      %3376 = vmatpush2.xpose.msra.mxu0 0.0
      %3377 = vmatprep.subr.mxu0 0.0
      %3378 = vmatpush2.xpose.msra.mxu0 0.0
      %3379 = vmatprep.subr.mxu0 0.0
      %3380 = vmatpush2.xpose.msra.mxu0 0.0
      %3381 = vmatprep.subr.mxu0 0.0
      %3382 = vmatpush2.xpose.msra.mxu0 0.0
      %3383 = vmatprep.subr.mxu0 0.0
      %3384 = vmatpush2.xpose.msra.mxu0 0.0
      %3385 = vmatprep.subr.mxu0 0.0
      %3386 = vmatpush2.xpose.msra.mxu0 0.0
      %3387 = vmatprep.subr.mxu0 0.0
      %3388 = vmatpush2.xpose.msra.mxu0 0.0
      %3389 = vmatprep.subr.mxu0 0.0
      %3390 = vmatpush2.xpose.msra.mxu0 0.0
      %3391 = vmatprep.subr.mxu0 0.0
      %3392 = vmatpush2.xpose.msra.mxu0 0.0
      %3393 = vmatprep.subr.mxu0 0.0
      %3394 = vmatpush2.xpose.msra.mxu0 0.0
      %3395 = vmatprep.subr.mxu0 0.0
      %3396 = vmatpush2.xpose.msra.mxu0 0.0
      %3397 = vmatprep.subr.mxu0 0.0
      %3398 = vmatpush2.xpose.msra.mxu0 0.0
      %3399 = vmatprep.subr.mxu0 0.0
      %3400 = vmatpush2.xpose.msra.mxu0 0.0
      %3401 = vmatprep.subr.mxu0 0.0
      %3402 = vmatpush2.xpose.msra.mxu0 0.0
      %3403 = vmatprep.subr.mxu0 0.0
      %3404 = vmatpush2.xpose.msra.mxu0 0.0
      %3405 = vmatprep.mubr.f32.mxu0 0.0
      %3406 = vmatmul.mubr.f32.gmra.mxu0 %v3337
      %v3407 = vpop.f32.mrf.mxu0
      %v3408 = vadd.f32 0.0, %v3407
      %v3409 = vpop.f32.mrf.mxu0
      %3410 = vdwg.mxu0
      %v3411 = vmul.f32 %v3408, 0.35355338
      %v3412 = vsel %vm712, %v3411, -inf
      %3413 = vmax.xlane.f32.xlu0 %v3412
      %v3414 = vpop.xlane.xlu0 %3413
      %v3415 = vsub.f32 %v3411, %v3414
      %v3416 = vmul.f32 %v3415, 1.442695
      %v3417 = vpow.pop %v3416
      %v3418 = vsel %vm712, %v3417, 0.0
      %3419 = vadd.xlane.f32.xlu0 %v3418
      %v3420 = vpop.xlane.xlu0 %3419
      %v3421 = vrcp.pop %v3420
      %v3422 = vmul.f32 %v3417, %v3421
      %3423 = vrot.lane.b32.xlu0 %v2487, 56
      %v3424 = vpop.permute.xlu0 %3423
      %v3427 = vsel %vm712, %v3422, 0
      %3429 = vmatprep.subr.mxu0 0.0
      %3430 = vmatpush1.msra.mxu0 0.0
      %3431 = vmatprep.subr.mxu0 0.0
      %3432 = vmatpush1.msra.mxu0 0.0
      %3433 = vmatprep.subr.mxu0 0.0
      %3434 = vmatpush1.msra.mxu0 0.0
      %3435 = vmatprep.subr.mxu0 0.0
      %3436 = vmatpush1.msra.mxu0 0.0
      %3437 = vmatprep.subr.mxu0 0.0
      %3438 = vmatpush1.msra.mxu0 0.0
      %3439 = vmatprep.subr.mxu0 0.0
      %3440 = vmatpush1.msra.mxu0 0.0
      %3441 = vmatprep.subr.mxu0 0.0
      %3442 = vmatpush1.msra.mxu0 0.0
      %3443 = vmatprep.subr.mxu0 0.0
      %3444 = vmatpush1.msra.mxu0 0.0
      %3445 = vmatprep.subr.mxu0 0.0
      %3446 = vmatpush1.msra.mxu0 0.0
      %3447 = vmatprep.subr.mxu0 0.0
      %3448 = vmatpush1.msra.mxu0 0.0
      %3449 = vmatprep.subr.mxu0 0.0
      %3450 = vmatpush1.msra.mxu0 0.0
      %3451 = vmatprep.subr.mxu0 0.0
      %3452 = vmatpush1.msra.mxu0 0.0
      %3453 = vmatprep.subr.mxu0 0.0
      %3454 = vmatpush1.msra.mxu0 0.0
      %3455 = vmatprep.subr.mxu0 0.0
      %3456 = vmatpush1.msra.mxu0 0.0
      %3457 = vmatprep.subr.mxu0 0.0
      %3458 = vmatpush1.msra.mxu0 0.0
      %3459 = vmatprep.subr.mxu0 0.0
      %3460 = vmatpush1.msra.mxu0 %v3424
      %3461 = vmatprep.subr.mxu0 0.0
      %3462 = vmatpush2.msra.mxu0 0.0
      %3463 = vmatprep.subr.mxu0 0.0
      %3464 = vmatpush2.msra.mxu0 0.0
      %3465 = vmatprep.subr.mxu0 0.0
      %3466 = vmatpush2.msra.mxu0 0.0
      %3467 = vmatprep.subr.mxu0 0.0
      %3468 = vmatpush2.msra.mxu0 0.0
      %3469 = vmatprep.subr.mxu0 0.0
      %3470 = vmatpush2.msra.mxu0 0.0
      %3471 = vmatprep.subr.mxu0 0.0
      %3472 = vmatpush2.msra.mxu0 0.0
      %3473 = vmatprep.subr.mxu0 0.0
      %3474 = vmatpush2.msra.mxu0 0.0
      %3475 = vmatprep.subr.mxu0 0.0
      %3476 = vmatpush2.msra.mxu0 0.0
      %3477 = vmatprep.subr.mxu0 0.0
      %3478 = vmatpush2.msra.mxu0 0.0
      %3479 = vmatprep.subr.mxu0 0.0
      %3480 = vmatpush2.msra.mxu0 0.0
      %3481 = vmatprep.subr.mxu0 0.0
      %3482 = vmatpush2.msra.mxu0 0.0
      %3483 = vmatprep.subr.mxu0 0.0
      %3484 = vmatpush2.msra.mxu0 0.0
      %3485 = vmatprep.subr.mxu0 0.0
      %3486 = vmatpush2.msra.mxu0 0.0
      %3487 = vmatprep.subr.mxu0 0.0
      %3488 = vmatpush2.msra.mxu0 0.0
      %3489 = vmatprep.subr.mxu0 0.0
      %3490 = vmatpush2.msra.mxu0 0.0
      %3491 = vmatprep.subr.mxu0 0.0
      %3492 = vmatpush2.msra.mxu0 0.0
      %3493 = vmatprep.mubr.f32.mxu0 0.0
      %3494 = vmatmul.mubr.f32.gmra.mxu0 %v3427
      %v3495 = vpop.f32.mrf.mxu0
      %v3496 = vadd.f32 0.0, %v3495
      %v3497 = vpop.f32.mrf.mxu0
      %3498 = vdwg.mxu0
      %3499 = vrot.lane.b32.xlu0 %v2487, 112
      %v3500 = vpop.permute.xlu0 %3499
      %3501 = vrot.lane.b32.xlu0 %v2487, 80
      %v3502 = vpop.permute.xlu0 %3501
      %v3503 = vsel %vm712, %v3500, 0
      %v3505 = vsel %vm712, %v3502, 0
      %3507 = vmatprep.subr.mxu0 0.0
      %3508 = vmatpush1.xpose.msra.mxu0 0.0
      %3509 = vmatprep.subr.mxu0 0.0
      %3510 = vmatpush1.xpose.msra.mxu0 0.0
      %3511 = vmatprep.subr.mxu0 0.0
      %3512 = vmatpush1.xpose.msra.mxu0 0.0
      %3513 = vmatprep.subr.mxu0 0.0
      %3514 = vmatpush1.xpose.msra.mxu0 0.0
      %3515 = vmatprep.subr.mxu0 0.0
      %3516 = vmatpush1.xpose.msra.mxu0 0.0
      %3517 = vmatprep.subr.mxu0 0.0
      %3518 = vmatpush1.xpose.msra.mxu0 0.0
      %3519 = vmatprep.subr.mxu0 0.0
      %3520 = vmatpush1.xpose.msra.mxu0 0.0
      %3521 = vmatprep.subr.mxu0 0.0
      %3522 = vmatpush1.xpose.msra.mxu0 0.0
      %3523 = vmatprep.subr.mxu0 0.0
      %3524 = vmatpush1.xpose.msra.mxu0 0.0
      %3525 = vmatprep.subr.mxu0 0.0
      %3526 = vmatpush1.xpose.msra.mxu0 0.0
      %3527 = vmatprep.subr.mxu0 0.0
      %3528 = vmatpush1.xpose.msra.mxu0 0.0
      %3529 = vmatprep.subr.mxu0 0.0
      %3530 = vmatpush1.xpose.msra.mxu0 0.0
      %3531 = vmatprep.subr.mxu0 0.0
      %3532 = vmatpush1.xpose.msra.mxu0 0.0
      %3533 = vmatprep.subr.mxu0 0.0
      %3534 = vmatpush1.xpose.msra.mxu0 0.0
      %3535 = vmatprep.subr.mxu0 0.0
      %3536 = vmatpush1.xpose.msra.mxu0 0.0
      %3537 = vmatprep.subr.mxu0 0.0
      %3538 = vmatpush1.xpose.msra.mxu0 %v3505
      %3539 = vmatprep.subr.mxu0 0.0
      %3540 = vmatpush2.xpose.msra.mxu0 0.0
      %3541 = vmatprep.subr.mxu0 0.0
      %3542 = vmatpush2.xpose.msra.mxu0 0.0
      %3543 = vmatprep.subr.mxu0 0.0
      %3544 = vmatpush2.xpose.msra.mxu0 0.0
      %3545 = vmatprep.subr.mxu0 0.0
      %3546 = vmatpush2.xpose.msra.mxu0 0.0
      %3547 = vmatprep.subr.mxu0 0.0
      %3548 = vmatpush2.xpose.msra.mxu0 0.0
      %3549 = vmatprep.subr.mxu0 0.0
      %3550 = vmatpush2.xpose.msra.mxu0 0.0
      %3551 = vmatprep.subr.mxu0 0.0
      %3552 = vmatpush2.xpose.msra.mxu0 0.0
      %3553 = vmatprep.subr.mxu0 0.0
      %3554 = vmatpush2.xpose.msra.mxu0 0.0
      %3555 = vmatprep.subr.mxu0 0.0
      %3556 = vmatpush2.xpose.msra.mxu0 0.0
      %3557 = vmatprep.subr.mxu0 0.0
      %3558 = vmatpush2.xpose.msra.mxu0 0.0
      %3559 = vmatprep.subr.mxu0 0.0
      %3560 = vmatpush2.xpose.msra.mxu0 0.0
      %3561 = vmatprep.subr.mxu0 0.0
      %3562 = vmatpush2.xpose.msra.mxu0 0.0
      %3563 = vmatprep.subr.mxu0 0.0
      %3564 = vmatpush2.xpose.msra.mxu0 0.0
      %3565 = vmatprep.subr.mxu0 0.0
      %3566 = vmatpush2.xpose.msra.mxu0 0.0
      %3567 = vmatprep.subr.mxu0 0.0
      %3568 = vmatpush2.xpose.msra.mxu0 0.0
      %3569 = vmatprep.subr.mxu0 0.0
      %3570 = vmatpush2.xpose.msra.mxu0 0.0
      %3571 = vmatprep.mubr.f32.mxu0 0.0
      %3572 = vmatmul.mubr.f32.gmra.mxu0 %v3503
      %v3573 = vpop.f32.mrf.mxu0
      %v3574 = vadd.f32 0.0, %v3573
      %v3575 = vpop.f32.mrf.mxu0
      %3576 = vdwg.mxu0
      %v3577 = vmul.f32 %v3574, 0.35355338
      %v3578 = vsel %vm712, %v3577, -inf
      %3579 = vmax.xlane.f32.xlu0 %v3578
      %v3580 = vpop.xlane.xlu0 %3579
      %v3581 = vsub.f32 %v3577, %v3580
      %v3582 = vmul.f32 %v3581, 1.442695
      %v3583 = vpow.pop %v3582
      %v3584 = vsel %vm712, %v3583, 0.0
      %3585 = vadd.xlane.f32.xlu0 %v3584
      %v3586 = vpop.xlane.xlu0 %3585
      %v3587 = vrcp.pop %v3586
      %v3588 = vmul.f32 %v3583, %v3587
      %3589 = vrot.lane.b32.xlu0 %v2487, 48
      %v3590 = vpop.permute.xlu0 %3589
      %v3593 = vsel %vm712, %v3588, 0
      %3595 = vmatprep.subr.mxu0 0.0
      %3596 = vmatpush1.msra.mxu0 0.0
      %3597 = vmatprep.subr.mxu0 0.0
      %3598 = vmatpush1.msra.mxu0 0.0
      %3599 = vmatprep.subr.mxu0 0.0
      %3600 = vmatpush1.msra.mxu0 0.0
      %3601 = vmatprep.subr.mxu0 0.0
      %3602 = vmatpush1.msra.mxu0 0.0
      %3603 = vmatprep.subr.mxu0 0.0
      %3604 = vmatpush1.msra.mxu0 0.0
      %3605 = vmatprep.subr.mxu0 0.0
      %3606 = vmatpush1.msra.mxu0 0.0
      %3607 = vmatprep.subr.mxu0 0.0
      %3608 = vmatpush1.msra.mxu0 0.0
      %3609 = vmatprep.subr.mxu0 0.0
      %3610 = vmatpush1.msra.mxu0 0.0
      %3611 = vmatprep.subr.mxu0 0.0
      %3612 = vmatpush1.msra.mxu0 0.0
      %3613 = vmatprep.subr.mxu0 0.0
      %3614 = vmatpush1.msra.mxu0 0.0
      %3615 = vmatprep.subr.mxu0 0.0
      %3616 = vmatpush1.msra.mxu0 0.0
      %3617 = vmatprep.subr.mxu0 0.0
      %3618 = vmatpush1.msra.mxu0 0.0
      %3619 = vmatprep.subr.mxu0 0.0
      %3620 = vmatpush1.msra.mxu0 0.0
      %3621 = vmatprep.subr.mxu0 0.0
      %3622 = vmatpush1.msra.mxu0 0.0
      %3623 = vmatprep.subr.mxu0 0.0
      %3624 = vmatpush1.msra.mxu0 0.0
      %3625 = vmatprep.subr.mxu0 0.0
      %3626 = vmatpush1.msra.mxu0 %v3590
      %3627 = vmatprep.subr.mxu0 0.0
      %3628 = vmatpush2.msra.mxu0 0.0
      %3629 = vmatprep.subr.mxu0 0.0
      %3630 = vmatpush2.msra.mxu0 0.0
      %3631 = vmatprep.subr.mxu0 0.0
      %3632 = vmatpush2.msra.mxu0 0.0
      %3633 = vmatprep.subr.mxu0 0.0
      %3634 = vmatpush2.msra.mxu0 0.0
      %3635 = vmatprep.subr.mxu0 0.0
      %3636 = vmatpush2.msra.mxu0 0.0
      %3637 = vmatprep.subr.mxu0 0.0
      %3638 = vmatpush2.msra.mxu0 0.0
      %3639 = vmatprep.subr.mxu0 0.0
      %3640 = vmatpush2.msra.mxu0 0.0
      %3641 = vmatprep.subr.mxu0 0.0
      %3642 = vmatpush2.msra.mxu0 0.0
      %3643 = vmatprep.subr.mxu0 0.0
      %3644 = vmatpush2.msra.mxu0 0.0
      %3645 = vmatprep.subr.mxu0 0.0
      %3646 = vmatpush2.msra.mxu0 0.0
      %3647 = vmatprep.subr.mxu0 0.0
      %3648 = vmatpush2.msra.mxu0 0.0
      %3649 = vmatprep.subr.mxu0 0.0
      %3650 = vmatpush2.msra.mxu0 0.0
      %3651 = vmatprep.subr.mxu0 0.0
      %3652 = vmatpush2.msra.mxu0 0.0
      %3653 = vmatprep.subr.mxu0 0.0
      %3654 = vmatpush2.msra.mxu0 0.0
      %3655 = vmatprep.subr.mxu0 0.0
      %3656 = vmatpush2.msra.mxu0 0.0
      %3657 = vmatprep.subr.mxu0 0.0
      %3658 = vmatpush2.msra.mxu0 0.0
      %3659 = vmatprep.mubr.f32.mxu0 0.0
      %3660 = vmatmul.mubr.f32.gmra.mxu0 %v3593
      %v3661 = vpop.f32.mrf.mxu0
      %v3662 = vadd.f32 0.0, %v3661
      %v3663 = vpop.f32.mrf.mxu0
      %3664 = vdwg.mxu0
      %3665 = vrot.lane.b32.xlu0 %v2487, 104
      %v3666 = vpop.permute.xlu0 %3665
      %3667 = vrot.lane.b32.xlu0 %v2487, 72
      %v3668 = vpop.permute.xlu0 %3667
      %v3669 = vsel %vm712, %v3666, 0
      %v3671 = vsel %vm712, %v3668, 0
      %3673 = vmatprep.subr.mxu0 0.0
      %3674 = vmatpush1.xpose.msra.mxu0 0.0
      %3675 = vmatprep.subr.mxu0 0.0
      %3676 = vmatpush1.xpose.msra.mxu0 0.0
      %3677 = vmatprep.subr.mxu0 0.0
      %3678 = vmatpush1.xpose.msra.mxu0 0.0
      %3679 = vmatprep.subr.mxu0 0.0
      %3680 = vmatpush1.xpose.msra.mxu0 0.0
      %3681 = vmatprep.subr.mxu0 0.0
      %3682 = vmatpush1.xpose.msra.mxu0 0.0
      %3683 = vmatprep.subr.mxu0 0.0
      %3684 = vmatpush1.xpose.msra.mxu0 0.0
      %3685 = vmatprep.subr.mxu0 0.0
      %3686 = vmatpush1.xpose.msra.mxu0 0.0
      %3687 = vmatprep.subr.mxu0 0.0
      %3688 = vmatpush1.xpose.msra.mxu0 0.0
      %3689 = vmatprep.subr.mxu0 0.0
      %3690 = vmatpush1.xpose.msra.mxu0 0.0
      %3691 = vmatprep.subr.mxu0 0.0
      %3692 = vmatpush1.xpose.msra.mxu0 0.0
      %3693 = vmatprep.subr.mxu0 0.0
      %3694 = vmatpush1.xpose.msra.mxu0 0.0
      %3695 = vmatprep.subr.mxu0 0.0
      %3696 = vmatpush1.xpose.msra.mxu0 0.0
      %3697 = vmatprep.subr.mxu0 0.0
      %3698 = vmatpush1.xpose.msra.mxu0 0.0
      %3699 = vmatprep.subr.mxu0 0.0
      %3700 = vmatpush1.xpose.msra.mxu0 0.0
      %3701 = vmatprep.subr.mxu0 0.0
      %3702 = vmatpush1.xpose.msra.mxu0 0.0
      %3703 = vmatprep.subr.mxu0 0.0
      %3704 = vmatpush1.xpose.msra.mxu0 %v3671
      %3705 = vmatprep.subr.mxu0 0.0
      %3706 = vmatpush2.xpose.msra.mxu0 0.0
      %3707 = vmatprep.subr.mxu0 0.0
      %3708 = vmatpush2.xpose.msra.mxu0 0.0
      %3709 = vmatprep.subr.mxu0 0.0
      %3710 = vmatpush2.xpose.msra.mxu0 0.0
      %3711 = vmatprep.subr.mxu0 0.0
      %3712 = vmatpush2.xpose.msra.mxu0 0.0
      %3713 = vmatprep.subr.mxu0 0.0
      %3714 = vmatpush2.xpose.msra.mxu0 0.0
      %3715 = vmatprep.subr.mxu0 0.0
      %3716 = vmatpush2.xpose.msra.mxu0 0.0
      %3717 = vmatprep.subr.mxu0 0.0
      %3718 = vmatpush2.xpose.msra.mxu0 0.0
      %3719 = vmatprep.subr.mxu0 0.0
      %3720 = vmatpush2.xpose.msra.mxu0 0.0
      %3721 = vmatprep.subr.mxu0 0.0
      %3722 = vmatpush2.xpose.msra.mxu0 0.0
      %3723 = vmatprep.subr.mxu0 0.0
      %3724 = vmatpush2.xpose.msra.mxu0 0.0
      %3725 = vmatprep.subr.mxu0 0.0
      %3726 = vmatpush2.xpose.msra.mxu0 0.0
      %3727 = vmatprep.subr.mxu0 0.0
      %3728 = vmatpush2.xpose.msra.mxu0 0.0
      %3729 = vmatprep.subr.mxu0 0.0
      %3730 = vmatpush2.xpose.msra.mxu0 0.0
      %3731 = vmatprep.subr.mxu0 0.0
      %3732 = vmatpush2.xpose.msra.mxu0 0.0
      %3733 = vmatprep.subr.mxu0 0.0
      %3734 = vmatpush2.xpose.msra.mxu0 0.0
      %3735 = vmatprep.subr.mxu0 0.0
      %3736 = vmatpush2.xpose.msra.mxu0 0.0
      %3737 = vmatprep.mubr.f32.mxu0 0.0
      %3738 = vmatmul.mubr.f32.gmra.mxu0 %v3669
      %v3739 = vpop.f32.mrf.mxu0
      %v3740 = vadd.f32 0.0, %v3739
      %v3741 = vpop.f32.mrf.mxu0
      %3742 = vdwg.mxu0
      %v3743 = vmul.f32 %v3740, 0.35355338
      %v3744 = vsel %vm712, %v3743, -inf
      %3745 = vmax.xlane.f32.xlu0 %v3744
      %v3746 = vpop.xlane.xlu0 %3745
      %v3747 = vsub.f32 %v3743, %v3746
      %v3748 = vmul.f32 %v3747, 1.442695
      %v3749 = vpow.pop %v3748
      %v3750 = vsel %vm712, %v3749, 0.0
      %3751 = vadd.xlane.f32.xlu0 %v3750
      %v3752 = vpop.xlane.xlu0 %3751
      %v3753 = vrcp.pop %v3752
      %v3754 = vmul.f32 %v3749, %v3753
      %3755 = vrot.lane.b32.xlu0 %v2487, 40
      %v3756 = vpop.permute.xlu0 %3755
      %v3759 = vsel %vm712, %v3754, 0
      %3761 = vmatprep.subr.mxu0 0.0
      %3762 = vmatpush1.msra.mxu0 0.0
      %3763 = vmatprep.subr.mxu0 0.0
      %3764 = vmatpush1.msra.mxu0 0.0
      %3765 = vmatprep.subr.mxu0 0.0
      %3766 = vmatpush1.msra.mxu0 0.0
      %3767 = vmatprep.subr.mxu0 0.0
      %3768 = vmatpush1.msra.mxu0 0.0
      %3769 = vmatprep.subr.mxu0 0.0
      %3770 = vmatpush1.msra.mxu0 0.0
      %3771 = vmatprep.subr.mxu0 0.0
      %3772 = vmatpush1.msra.mxu0 0.0
      %3773 = vmatprep.subr.mxu0 0.0
      %3774 = vmatpush1.msra.mxu0 0.0
      %3775 = vmatprep.subr.mxu0 0.0
      %3776 = vmatpush1.msra.mxu0 0.0
      %3777 = vmatprep.subr.mxu0 0.0
      %3778 = vmatpush1.msra.mxu0 0.0
      %3779 = vmatprep.subr.mxu0 0.0
      %3780 = vmatpush1.msra.mxu0 0.0
      %3781 = vmatprep.subr.mxu0 0.0
      %3782 = vmatpush1.msra.mxu0 0.0
      %3783 = vmatprep.subr.mxu0 0.0
      %3784 = vmatpush1.msra.mxu0 0.0
      %3785 = vmatprep.subr.mxu0 0.0
      %3786 = vmatpush1.msra.mxu0 0.0
      %3787 = vmatprep.subr.mxu0 0.0
      %3788 = vmatpush1.msra.mxu0 0.0
      %3789 = vmatprep.subr.mxu0 0.0
      %3790 = vmatpush1.msra.mxu0 0.0
      %3791 = vmatprep.subr.mxu0 0.0
      %3792 = vmatpush1.msra.mxu0 %v3756
      %3793 = vmatprep.subr.mxu0 0.0
      %3794 = vmatpush2.msra.mxu0 0.0
      %3795 = vmatprep.subr.mxu0 0.0
      %3796 = vmatpush2.msra.mxu0 0.0
      %3797 = vmatprep.subr.mxu0 0.0
      %3798 = vmatpush2.msra.mxu0 0.0
      %3799 = vmatprep.subr.mxu0 0.0
      %3800 = vmatpush2.msra.mxu0 0.0
      %3801 = vmatprep.subr.mxu0 0.0
      %3802 = vmatpush2.msra.mxu0 0.0
      %3803 = vmatprep.subr.mxu0 0.0
      %3804 = vmatpush2.msra.mxu0 0.0
      %3805 = vmatprep.subr.mxu0 0.0
      %3806 = vmatpush2.msra.mxu0 0.0
      %3807 = vmatprep.subr.mxu0 0.0
      %3808 = vmatpush2.msra.mxu0 0.0
      %3809 = vmatprep.subr.mxu0 0.0
      %3810 = vmatpush2.msra.mxu0 0.0
      %3811 = vmatprep.subr.mxu0 0.0
      %3812 = vmatpush2.msra.mxu0 0.0
      %3813 = vmatprep.subr.mxu0 0.0
      %3814 = vmatpush2.msra.mxu0 0.0
      %3815 = vmatprep.subr.mxu0 0.0
      %3816 = vmatpush2.msra.mxu0 0.0
      %3817 = vmatprep.subr.mxu0 0.0
      %3818 = vmatpush2.msra.mxu0 0.0
      %3819 = vmatprep.subr.mxu0 0.0
      %3820 = vmatpush2.msra.mxu0 0.0
      %3821 = vmatprep.subr.mxu0 0.0
      %3822 = vmatpush2.msra.mxu0 0.0
      %3823 = vmatprep.subr.mxu0 0.0
      %3824 = vmatpush2.msra.mxu0 0.0
      %3825 = vmatprep.mubr.f32.mxu0 0.0
      %3826 = vmatmul.mubr.f32.gmra.mxu0 %v3759
      %v3827 = vpop.f32.mrf.mxu0
      %v3828 = vadd.f32 0.0, %v3827
      %v3829 = vpop.f32.mrf.mxu0
      %3830 = vdwg.mxu0
      %3832 = vrot.lane.b32.xlu0 %v3496, 8
      %v3833 = vpop.permute.xlu0 %3832
      %3836 = vrot.lane.b32.xlu0 %v3662, 16
      %v3837 = vpop.permute.xlu0 %3836
      %3840 = vrot.lane.b32.xlu0 %v3828, 24
      %v3841 = vpop.permute.xlu0 %3840
      %v3843 = vsel %vm712, %v3330, %v3833
      %v3844 = vsel %vm1386, %v3843, %v3837
      %v3845 = vsel %vm1388, %v3844, %v3841
      %v3846 = vpack.c.bf16 %v3845, %v3167
      %s3847 = scalar_lea.vmem %s593, 16
      %v3848 = vld [vmem:[%s3847] sm:$0xf]
      %v3849 = vld [vmem:[%s3847 + $0x4] sm:$0xf]
      %v3850 = vld [vmem:[%s3847 + $0x8] sm:$0xf]
      %v3851 = vld [vmem:[%s3847 + $0xc] sm:$0xf]
      %s3852 = scalar_lea.vmem %s597, 1
      %v3853 = vld [vmem:[%s3852] sm:$0x1]
      %v3855 = vlaneseq
      %v3856 = vshrl.u32 %v3855, 7
      %v3857 = vsub.s32 0, %v3856
      %v3858 = vrot.slane %v3853, %v3857
      %v3864 = vunpack.c.l.b16 %v3848
      %v3865 = vunpack.c.l.b16 %v3849
      %v3866 = vunpack.c.l.b16 %v3850
      %v3867 = vunpack.c.l.b16 %v3851
      %v3868 = vpack.c.b16 %v3865, %v3864
      %v3869 = vpack.c.b16 %v3867, %v3866
      %v3873 = vsel %vm664, %v3846, 0
      %3875 = vmatprep.subr.bf16.mxu0 0
      %3876 = vmatpush1.bf16.msra.mxu0 0
      %3877 = vmatprep.subr.bf16.mxu0 0
      %3878 = vmatpush1.bf16.msra.mxu0 0
      %3879 = vmatprep.subr.bf16.mxu0 0
      %3880 = vmatpush1.bf16.msra.mxu0 0
      %3881 = vmatprep.subr.bf16.mxu0 0
      %3882 = vmatpush1.bf16.msra.mxu0 0
      %3883 = vmatprep.subr.bf16.mxu0 0
      %3884 = vmatpush1.bf16.msra.mxu0 0
      %3885 = vmatprep.subr.bf16.mxu0 0
      %3886 = vmatpush1.bf16.msra.mxu0 0
      %3887 = vmatprep.subr.bf16.mxu0 0
      %3888 = vmatpush1.bf16.msra.mxu0 %v3869
      %3889 = vmatprep.subr.bf16.mxu0 0
      %3890 = vmatpush1.bf16.msra.mxu0 %v3868
      %3891 = vmatprep.subr.bf16.mxu0 0
      %3892 = vmatpush2.bf16.msra.mxu0 0
      %3893 = vmatprep.subr.bf16.mxu0 0
      %3894 = vmatpush2.bf16.msra.mxu0 0
      %3895 = vmatprep.subr.bf16.mxu0 0
      %3896 = vmatpush2.bf16.msra.mxu0 0
      %3897 = vmatprep.subr.bf16.mxu0 0
      %3898 = vmatpush2.bf16.msra.mxu0 0
      %3899 = vmatprep.subr.bf16.mxu0 0
      %3900 = vmatpush2.bf16.msra.mxu0 0
      %3901 = vmatprep.subr.bf16.mxu0 0
      %3902 = vmatpush2.bf16.msra.mxu0 0
      %3903 = vmatprep.subr.bf16.mxu0 0
      %3904 = vmatpush2.bf16.msra.mxu0 0
      %3905 = vmatprep.subr.bf16.mxu0 0
      %3906 = vmatpush2.bf16.msra.mxu0 0
      %3907 = vmatprep.mubr.bf16.mxu0 0
      %3908 = vmatmul.mubr.bf16.gmra.mxu0 %v3873
      %v3909 = vpop.f32.mrf.mxu0
      %v3910 = vadd.f32 %v3858, %v3909
      %v3911 = vpop.f32.mrf.mxu0
      %v3912 = vpop.f32.mrf.mxu0
      %v3913 = vadd.f32 %v3858, %v3912
      %v3914 = vpop.f32.mrf.mxu0
      %3915 = vdwg.mxu0
      %v3916 = vadd.f32 %v3910, %v2418
      %v3917 = vadd.f32 %v3913, %v2419
      %s3918 = scalar_lea.vmem %s601, 1
      %v3919 = vld [vmem:[%s3918] sm:$0x1]
      %s3920 = scalar_lea.vmem %s605, 1
      %v3921 = vld [vmem:[%s3920] sm:$0x1]
      %v3922 = vsel %vm664, %v3916, 0.0
      %3923 = vadd.xlane.f32.xlu0 %v3922
      %v3924 = vpop.xlane.xlu0 %3923
      %v3925 = vsel %vm664, %v3917, 0.0
      %3926 = vadd.xlane.f32.xlu0 %v3925
      %v3927 = vpop.xlane.xlu0 %3926
      %v3928 = vmul.f32 %v3924, %v2146
      %v3929 = vmul.f32 %v3927, %v2146
      %v3930 = vsub.f32 %v3916, %v3928
      %v3931 = vsub.f32 %v3917, %v3929
      %v3932 = vmul.f32 %v3930, %v3930
      %v3933 = vmul.f32 %v3931, %v3931
      %v3934 = vsel %vm664, %v3932, 0.0
      %3935 = vadd.xlane.f32.xlu0 %v3934
      %v3936 = vpop.xlane.xlu0 %3935
      %v3937 = vsel %vm664, %v3933, 0.0
      %3938 = vadd.xlane.f32.xlu0 %v3937
      %v3939 = vpop.xlane.xlu0 %3938
      %v3940 = vmul.f32 %v3936, %v2146
      %v3941 = vmul.f32 %v3939, %v2146
      %v3942 = vadd.f32 %v3940, 1e-05
      %v3943 = vadd.f32 %v3941, 1e-05
      %v3944 = vrsqrt.pop %v3942
      %v3945 = vrsqrt.pop %v3943
      %v3946 = vmul.f32 %v3930, %v3944
      %v3947 = vmul.f32 %v3931, %v3945
      %v3949 = vlaneseq
      %v3950 = vshrl.u32 %v3949, 7
      %v3951 = vsub.s32 0, %v3950
      %v3952 = vrot.slane %v3919, %v3951
      %v3954 = vmul.f32 %v3946, %v3952
      %v3955 = vmul.f32 %v3947, %v3952
      %v3957 = vlaneseq
      %v3958 = vshrl.u32 %v3957, 7
      %v3959 = vsub.s32 0, %v3958
      %v3960 = vrot.slane %v3921, %v3959
      %v3962 = vadd.f32 %v3954, %v3960
      %v3963 = vadd.f32 %v3955, %v3960
      %v3964 = vpack.c.bf16 %v3963, %v3962
      %s3965 = scalar_lea.vmem %s610, 16
      %v3966 = vld [vmem:[%s3965] sm:$0xf]
      %v3967 = vld [vmem:[%s3965 + $0x4] sm:$0xf]
      %v3968 = vld [vmem:[%s3965 + $0x8] sm:$0xf]
      %v3969 = vld [vmem:[%s3965 + $0xc] sm:$0xf]
      %s3970 = scalar_lea.vmem %s614, 1
      %v3971 = vld [vmem:[%s3970] sm:$0x1]
      %v3973 = vlaneseq
      %v3974 = vshrl.u32 %v3973, 7
      %v3975 = vsub.s32 0, %v3974
      %v3976 = vrot.slane %v3971, %v3975
      %v3982 = vunpack.c.l.b16 %v3966
      %v3983 = vunpack.c.l.b16 %v3967
      %v3984 = vunpack.c.l.b16 %v3968
      %v3985 = vunpack.c.l.b16 %v3969
      %v3986 = vpack.c.b16 %v3983, %v3982
      %v3987 = vpack.c.b16 %v3985, %v3984
      %v3991 = vsel %vm664, %v3964, 0
      %3993 = vmatprep.subr.bf16.mxu0 0
      %3994 = vmatpush1.bf16.msra.mxu0 0
      %3995 = vmatprep.subr.bf16.mxu0 0
      %3996 = vmatpush1.bf16.msra.mxu0 0
      %3997 = vmatprep.subr.bf16.mxu0 0
      %3998 = vmatpush1.bf16.msra.mxu0 0
      %3999 = vmatprep.subr.bf16.mxu0 0
      %4000 = vmatpush1.bf16.msra.mxu0 0
      %4001 = vmatprep.subr.bf16.mxu0 0
      %4002 = vmatpush1.bf16.msra.mxu0 0
      %4003 = vmatprep.subr.bf16.mxu0 0
      %4004 = vmatpush1.bf16.msra.mxu0 0
      %4005 = vmatprep.subr.bf16.mxu0 0
      %4006 = vmatpush1.bf16.msra.mxu0 %v3987
      %4007 = vmatprep.subr.bf16.mxu0 0
      %4008 = vmatpush1.bf16.msra.mxu0 %v3986
      %4009 = vmatprep.subr.bf16.mxu0 0
      %4010 = vmatpush2.bf16.msra.mxu0 0
      %4011 = vmatprep.subr.bf16.mxu0 0
      %4012 = vmatpush2.bf16.msra.mxu0 0
      %4013 = vmatprep.subr.bf16.mxu0 0
      %4014 = vmatpush2.bf16.msra.mxu0 0
      %4015 = vmatprep.subr.bf16.mxu0 0
      %4016 = vmatpush2.bf16.msra.mxu0 0
      %4017 = vmatprep.subr.bf16.mxu0 0
      %4018 = vmatpush2.bf16.msra.mxu0 0
      %4019 = vmatprep.subr.bf16.mxu0 0
      %4020 = vmatpush2.bf16.msra.mxu0 0
      %4021 = vmatprep.subr.bf16.mxu0 0
      %4022 = vmatpush2.bf16.msra.mxu0 0
      %4023 = vmatprep.subr.bf16.mxu0 0
      %4024 = vmatpush2.bf16.msra.mxu0 0
      %4025 = vmatprep.mubr.bf16.mxu0 0
      %4026 = vmatmul.mubr.bf16.gmra.mxu0 %v3991
      %v4027 = vpop.f32.mrf.mxu0
      %v4028 = vadd.f32 %v3976, %v4027
      %v4029 = vpop.f32.mrf.mxu0
      %v4030 = vpop.f32.mrf.mxu0
      %v4031 = vadd.f32 %v3976, %v4030
      %v4032 = vpop.f32.mrf.mxu0
      %4033 = vdwg.mxu0
      %v4034 = vmul.f32 %v4028, 0.5
      %v4035 = vmul.f32 %v4031, 0.5
      %v4036 = vmul.f32 %v4028, 0.70710677
      %v4037 = vmul.f32 %v4031, 0.70710677
      %v4038 = verf.f32.pop %v4036
      %v4039 = verf.f32.pop %v4037
      %v4040 = vadd.f32 %v4038, 1.0
      %v4041 = vadd.f32 %v4039, 1.0
      %v4042 = vmul.f32 %v4034, %v4040
      %v4043 = vmul.f32 %v4035, %v4041
      %v4044 = vpack.c.bf16 %v4043, %v4042
      %s4045 = scalar_lea.vmem %s619, 64
      %v4046 = vld [vmem:[%s4045] sm:$0xf]
      %v4047 = vld [vmem:[%s4045 + $0x4] sm:$0xf]
      %v4048 = vld [vmem:[%s4045 + $0x8] sm:$0xf]
      %v4049 = vld [vmem:[%s4045 + $0xc] sm:$0xf]
      %v4050 = vld [vmem:[%s4045 + $0x10] sm:$0xf]
      %v4051 = vld [vmem:[%s4045 + $0x14] sm:$0xf]
      %v4052 = vld [vmem:[%s4045 + $0x18] sm:$0xf]
      %v4053 = vld [vmem:[%s4045 + $0x1c] sm:$0xf]
      %v4054 = vld [vmem:[%s4045 + $0x20] sm:$0xf]
      %v4055 = vld [vmem:[%s4045 + $0x24] sm:$0xf]
      %v4056 = vld [vmem:[%s4045 + $0x28] sm:$0xf]
      %v4057 = vld [vmem:[%s4045 + $0x2c] sm:$0xf]
      %v4058 = vld [vmem:[%s4045 + $0x30] sm:$0xf]
      %v4059 = vld [vmem:[%s4045 + $0x34] sm:$0xf]
      %v4060 = vld [vmem:[%s4045 + $0x38] sm:$0xf]
      %v4061 = vld [vmem:[%s4045 + $0x3c] sm:$0xf]
      %s4062 = scalar_lea.vmem %s623, 1
      %v4063 = vld [vmem:[%s4062] sm:$0x1]
      %v4065 = vlaneseq
      %v4066 = vshrl.u32 %v4065, 7
      %v4067 = vsub.s32 0, %v4066
      %v4068 = vrot.slane %v4063, %v4067
      %v4086 = vunpack.c.l.b16 %v4046
      %v4087 = vunpack.c.l.b16 %v4047
      %v4088 = vunpack.c.l.b16 %v4048
      %v4089 = vunpack.c.l.b16 %v4049
      %v4090 = vunpack.c.l.b16 %v4050
      %v4091 = vunpack.c.l.b16 %v4051
      %v4092 = vunpack.c.l.b16 %v4052
      %v4093 = vunpack.c.l.b16 %v4053
      %v4094 = vunpack.c.l.b16 %v4054
      %v4095 = vunpack.c.l.b16 %v4055
      %v4096 = vunpack.c.l.b16 %v4056
      %v4097 = vunpack.c.l.b16 %v4057
      %v4098 = vunpack.c.l.b16 %v4058
      %v4099 = vunpack.c.l.b16 %v4059
      %v4100 = vunpack.c.l.b16 %v4060
      %v4101 = vunpack.c.l.b16 %v4061
      %v4102 = vpack.c.b16 %v4087, %v4086
      %v4103 = vpack.c.b16 %v4089, %v4088
      %v4104 = vpack.c.b16 %v4091, %v4090
      %v4105 = vpack.c.b16 %v4093, %v4092
      %v4106 = vpack.c.b16 %v4095, %v4094
      %v4107 = vpack.c.b16 %v4097, %v4096
      %v4108 = vpack.c.b16 %v4099, %v4098
      %v4109 = vpack.c.b16 %v4101, %v4100
      %4118 = vmatprep.subr.bf16.mxu0 0
      %4119 = vmatpush1.bf16.msra.mxu0 %v4109
      %4120 = vmatprep.subr.bf16.mxu0 0
      %4121 = vmatpush1.bf16.msra.mxu0 %v4108
      %4122 = vmatprep.subr.bf16.mxu0 0
      %4123 = vmatpush1.bf16.msra.mxu0 %v4107
      %4124 = vmatprep.subr.bf16.mxu0 0
      %4125 = vmatpush1.bf16.msra.mxu0 %v4106
      %4126 = vmatprep.subr.bf16.mxu0 0
      %4127 = vmatpush1.bf16.msra.mxu0 %v4105
      %4128 = vmatprep.subr.bf16.mxu0 0
      %4129 = vmatpush1.bf16.msra.mxu0 %v4104
      %4130 = vmatprep.subr.bf16.mxu0 0
      %4131 = vmatpush1.bf16.msra.mxu0 %v4103
      %4132 = vmatprep.subr.bf16.mxu0 0
      %4133 = vmatpush1.bf16.msra.mxu0 %v4102
      %4134 = vmatprep.subr.bf16.mxu0 0
      %4135 = vmatpush2.bf16.msra.mxu0 0
      %4136 = vmatprep.subr.bf16.mxu0 0
      %4137 = vmatpush2.bf16.msra.mxu0 0
      %4138 = vmatprep.subr.bf16.mxu0 0
      %4139 = vmatpush2.bf16.msra.mxu0 0
      %4140 = vmatprep.subr.bf16.mxu0 0
      %4141 = vmatpush2.bf16.msra.mxu0 0
      %4142 = vmatprep.subr.bf16.mxu0 0
      %4143 = vmatpush2.bf16.msra.mxu0 0
      %4144 = vmatprep.subr.bf16.mxu0 0
      %4145 = vmatpush2.bf16.msra.mxu0 0
      %4146 = vmatprep.subr.bf16.mxu0 0
      %4147 = vmatpush2.bf16.msra.mxu0 0
      %4148 = vmatprep.subr.bf16.mxu0 0
      %4149 = vmatpush2.bf16.msra.mxu0 0
      %4150 = vmatprep.mubr.bf16.mxu0 0
      %4151 = vmatmul.mubr.bf16.gmra.mxu0 %v4044
      %v4152 = vpop.f32.mrf.mxu0
      %v4153 = vadd.f32 %v4068, %v4152
      %v4154 = vpop.f32.mrf.mxu0
      %v4155 = vpop.f32.mrf.mxu0
      %v4156 = vadd.f32 %v4068, %v4155
      %v4157 = vpop.f32.mrf.mxu0
      %4158 = vdwg.mxu0
      %v4159 = vadd.f32 %v4153, %v3962
      %v4160 = vadd.f32 %v4156, %v3963
      %s4161 = scalar_lea.vmem %s627, 1
      %v4162 = vld [vmem:[%s4161] sm:$0x1]
      %s4163 = scalar_lea.vmem %s631, 1
      %v4164 = vld [vmem:[%s4163] sm:$0x1]
      %v4165 = vsel %vm664, %v4159, 0.0
      %4166 = vadd.xlane.f32.xlu0 %v4165
      %v4167 = vpop.xlane.xlu0 %4166
      %v4168 = vsel %vm664, %v4160, 0.0
      %4169 = vadd.xlane.f32.xlu0 %v4168
      %v4170 = vpop.xlane.xlu0 %4169
      %v4171 = vmul.f32 %v4167, %v2146
      %v4172 = vmul.f32 %v4170, %v2146
      %v4173 = vsub.f32 %v4159, %v4171
      %v4174 = vsub.f32 %v4160, %v4172
      %v4175 = vmul.f32 %v4173, %v4173
      %v4176 = vmul.f32 %v4174, %v4174
      %v4177 = vsel %vm664, %v4175, 0.0
      %4178 = vadd.xlane.f32.xlu0 %v4177
      %v4179 = vpop.xlane.xlu0 %4178
      %v4180 = vsel %vm664, %v4176, 0.0
      %4181 = vadd.xlane.f32.xlu0 %v4180
      %v4182 = vpop.xlane.xlu0 %4181
      %v4183 = vmul.f32 %v4179, %v2146
      %v4184 = vmul.f32 %v4182, %v2146
      %v4185 = vadd.f32 %v4183, 1e-05
      %v4186 = vadd.f32 %v4184, 1e-05
      %v4187 = vrsqrt.pop %v4185
      %v4188 = vrsqrt.pop %v4186
      %v4189 = vmul.f32 %v4173, %v4187
      %v4190 = vmul.f32 %v4174, %v4188
      %v4192 = vlaneseq
      %v4193 = vshrl.u32 %v4192, 7
      %v4194 = vsub.s32 0, %v4193
      %v4195 = vrot.slane %v4162, %v4194
      %v4197 = vmul.f32 %v4189, %v4195
      %v4198 = vmul.f32 %v4190, %v4195
      %v4200 = vlaneseq
      %v4201 = vshrl.u32 %v4200, 7
      %v4202 = vsub.s32 0, %v4201
      %v4203 = vrot.slane %v4164, %v4202
      %v4205 = vadd.f32 %v4197, %v4203
      %v4206 = vadd.f32 %v4198, %v4203
      %4207 = vst.msk [vmem:[%s636] sm:$0xff] %vm664, %v4205
      %4208 = vst.msk [vmem:[%s636 + $0x8] sm:$0xff] %vm664, %v4206
      %p4209 = scmp.lt.s32.totalorder %s24, 1
      %s4210 = scalar_select %p4209, %s24, 1
      %s4211 = smul.addr %s4210, 2
      %s4212 = smul.addr %s4211, 8
      %s4213 = scalar_lea.vmem %s13, %s4212
      // Predicated region
      $region73: #{forward.4} parent=71 // pred_check
        %p4214 = pneg %p375
      $region74: #{forward.4} parent=71 // pred_check_branch
        %4216 = sbr.rel (%p4214) target = $region76
      $region75: #{forward.4} parent=71 // pred_region
        _
      $region76: #{forward.4} parent=71 // pred_fallthru
        _
    $region72: #{forward.4} parent=5 // pred_fallthru
      _
    %p4217 = scmp.le.s32.totalorder 2, %s19
    // Predicated region
    $region77: #{forward.4} parent=5 // pred_check
      %p4218 = pneg %p4217
    $region78: #{forward.4} parent=5 // pred_check_branch
      %4220 = sbr.rel (%p4218) target = $region80
    $region79: #{forward.4} parent=5 // pred_region
      %s4221 = ssub.s32 %s19, 2
      // Predicated region
      $region81: #{forward.4} parent=79 // pred_check
        %p4222 = pneg %p381
      $region82: #{forward.4} parent=79 // pred_check_branch
        %4224 = sbr.rel (%p4222) target = $region84
      $region83: #{forward.4} parent=79 // pred_region
        %p4225 = scmp.lt.s32.totalorder %s25, 1
        %s4226 = scalar_select %p4225, %s25, 1
        %s4227 = smul.addr %s4226, 2
        %s4228 = smul.addr %s4227, 8
        %s4229 = scalar_lea.vmem %s13, %s4228
      $region84: #{forward.4} parent=79 // pred_fallthru
        _
    $region80: #{forward.4} parent=5 // pred_fallthru
      _
  $region6: #{forward.4} parent=0 // loop_footer
    %s23 = sadd.s32 1, %s19
  $region7: #{forward.4} parent=0 // loop_footer_branch
    %18 = sbr.rel target = $region3
  $region8: #{forward.4} parent=0 // loop_exit
    _

</llo_original>
